<compile_context>
chip_gen: v6e
topology: v6e:2x2x1
jax: 0.10.0
libtpu: 0.0.40
codegen_flags: <defaults>
</compile_context>

<pallas_src>
import jax
import jax.numpy as jnp
import numpy as np
from jax.experimental import pallas as pl
from jax.experimental.pallas import tpu as pltpu

# ----------------------------- configuration --------------------------------
BATCH = 64          # batch size (toy); for real batches use b_tile=256-512
IN_CHANNELS = 16    # flow_in_channels (must be even)
EMB_CHANNELS = 16   # flow_embedding_channels (defaults to flow_in_channels)
NUM_CLASSES = 10    # flow_num_classes
MID_CHANNELS = 32   # flow_mid_channels (hidden width of coupling MLPs)
HIDDEN_DEPTH = 2    # flow_hidden_depth
N_FLOWS = 2         # n_flows
LEAKY_SLOPE = 0.01  # nn.LeakyReLU default negative_slope


# ------------------------------ Pallas kernel -------------------------------
def flow_kernel(onehot_ref, x_ref,
                cond_w_ref, w1x_ref, whid_ref, bhid_ref,
                wout_ref, bout_ref, shuf_ref, cvec_ref,
                out_ref, ld_ref):
    """Fused forward of the whole conditional flow for one batch tile."""
    f32, bf16 = jnp.float32, jnp.bfloat16
    n_c, half, h2 = w1x_ref.shape            # (#couplings, C/2, 2*hidden)
    depth = whid_ref.shape[0] // n_c
    n_flows = shuf_ref.shape[0]

    # All couplings' conditioning pre-activations (embedder + conditioning half of the
    # fused first layer + its bias, folded offline) in ONE 256-wide MXU dot, computed up
    # front and therefore off the data-dependent serial chain.
    cond_all = jnp.dot(onehot_ref[...], cond_w_ref[...], preferred_element_type=f32)
    cond = [cond_all[:, n * h2:(n + 1) * h2] for n in range(n_c)]

    # Flow-0 ActNorm (elementwise, exact f32). ActNorms of flows 1.. are folded into the
    # fused shuffle matmuls; the batch-independent logdet is folded on the host.
    x = x_ref[...].astype(f32)
    h = cvec_ref[1:2, :] * (x + cvec_ref[0:1, :])
    a, b = h[:, :half], h[:, half:]

    s_acc = jnp.zeros((x.shape[0], half), f32)    # deferred coupling-logdet accumulator

    for f in range(n_flows):
        for i in range(2):
            if i == 1:
                a, b = b, a                       # "alternate chunking" as a var swap
            n = 2 * f + i
            # fused s/t MLP: bf16 operands on the MXU, f32 accumulate + f32 elementwise
            y = jnp.dot(a.astype(bf16), w1x_ref[n],
                        preferred_element_type=f32) + cond[n]
            y = jnp.where(y > 0, y, LEAKY_SLOPE * y)
            for d in range(depth):
                j = n * depth + d
                y = jnp.dot(y.astype(bf16), whid_ref[j],
                            preferred_element_type=f32) + bhid_ref[j]
                y = jnp.where(y > 0, y, LEAKY_SLOPE * y)
            # fused (s | t) output head, one dot; static lane split afterwards
            raw = jnp.dot(y.astype(bf16), wout_ref[n],
                          preferred_element_type=f32) + bout_ref[n]
            s = jnp.tanh(raw[:, :half])
            t = raw[:, half:]
            b = b * jnp.exp(s) + t
            s_acc = s_acc + s

        # Shuffle_f (and, for non-final flows, ActNorm_{f+1}) as ONE (C, C) matmul.
        h = jnp.concatenate([a, b], axis=1)
        h = jnp.dot(h.astype(bf16), shuf_ref[f], preferred_element_type=f32)
        if f < n_flows - 1:
            h = h + cvec_ref[2 + f:3 + f, :]      # scale_{f+1} * loc_{f+1}
            a, b = h[:, :half], h[:, half:]

    out_ref[...] = h.astype(out_ref.dtype)
    ld_ref[...] = jnp.sum(s_acc, axis=1, keepdims=True)


# ------------------------------ wrapper --------------------------------------
def supervised_transformer_forward(x, labels, packed_weights, actnorm_logdet, *,
                                   num_classes, b_tile=None):
    """Forward pass.  For real batches use b_tile in [256, 512] (and on v7x pick it so
    the grid length is an even multiple >= 4, giving each TensorCore >= 2 pipelined
    steps); for small batches leave b_tile=None -> one grid step."""
    B, C = x.shape
    onehot = jax.nn.one_hot(labels, num_classes, dtype=jnp.float32)
    # ones-column pairs with the bias row folded into the conditioning weight matrix
    onehot_aug = jnp.concatenate([onehot, jnp.ones((B, 1), jnp.float32)],
                                 axis=1).astype(jnp.bfloat16)

    if b_tile is None:
        b_tile = B
    assert B % b_tile == 0 and (b_tile % 8 == 0 or b_tile == B)
    grid = (B // b_tile,)

    def batch_spec(width):
        return pl.BlockSpec((b_tile, width), lambda i: (i, 0))

    def resident_spec(arr):  # full array, same block for every grid step
        nd = arr.ndim
        return pl.BlockSpec(arr.shape, lambda i, _nd=nd: (0,) * _nd)

    out, ld = pl.pallas_call(
        flow_kernel,
        grid=grid,
        in_specs=[batch_spec(num_classes + 1), batch_spec(C)]
                 + [resident_spec(w) for w in packed_weights],
        out_specs=(batch_spec(C), batch_spec(1)),
        out_shape=(jax.ShapeDtypeStruct((B, C), jnp.float32),
                   jax.ShapeDtypeStruct((B, 1), jnp.float32)),
        compiler_params=pltpu.CompilerParams(dimension_semantics=("parallel",)),
    )(onehot_aug, x, *packed_weights)

    # Batch-independent ActNorm logdet, folded offline and added once here.
    return out, ld[:, 0] + actnorm_logdet


# --------------------------- deterministic params ----------------------------
def init_params(key, *, C, E, H, depth, n_flows, num_classes):
    """Unpacked, PyTorch-equivalent synthetic params (weights stored as (in, out))."""
    half = C // 2
    n_c = n_flows * 2
    in_dim = half + E
    ks = jax.random.split(key, 16)

    def uni(k, shape, fan_in):
        bound = 1.0 / np.sqrt(fan_in)
        return jax.random.uniform(k, shape, jnp.float32, -bound, bound)

    p = {
        "w_emb_t": uni(ks[0], (num_classes, E), num_classes),  # embedder.weight.T
        # s-nets (tanh head) and t-nets, one of each per coupling
        "s_w_in":  uni(ks[1], (n_c, in_dim, H), in_dim),
        "s_b_in":  uni(ks[2], (n_c, H), in_dim),
        "s_w_hid": uni(ks[3], (n_c, depth, H, H), H),
        "s_b_hid": uni(ks[4], (n_c, depth, H), H),
        "s_w_out": uni(ks[5], (n_c, H, half), H),
        "s_b_out": uni(ks[6], (n_c, half), H),
        "t_w_in":  uni(ks[7], (n_c, in_dim, H), in_dim),
        "t_b_in":  uni(ks[8], (n_c, H), in_dim),
        "t_w_hid": uni(ks[9], (n_c, depth, H, H), H),
        "t_b_hid": uni(ks[10], (n_c, depth, H), H),
        "t_w_out": uni(ks[11], (n_c, H, half), H),
        "t_b_out": uni(ks[12], (n_c, half), H),
        # ActNorm affine params (pretend already data-initialized)
        "loc":   0.1 * jax.random.normal(ks[13], (n_flows, 1, C), jnp.float32),
        "scale": 1.0 + 0.1 * jax.random.normal(ks[14], (n_flows, 1, C), jnp.float32),
    }
    perm_keys = jax.random.split(ks[15], n_flows)
    p["perm"] = jnp.stack([jax.random.permutation(k, C) for k in perm_keys])
    return p


def pack_params(p, *, C, H, depth, n_flows):
    """Offline weight packing: fuse s/t nets, fold embedder + biases, fold each
    shuffle with the following ActNorm, convert all matmul operands to bf16."""
    half = C // 2
    n_c = n_flows * 2
    H2 = 2 * H
    f32, bf16 = jnp.float32, jnp.bfloat16

    # fused (s|t) first layer, split into the x_a part and the conditioning part
    w1x = jnp.concatenate([p["s_w_in"][:, :half, :], p["t_w_in"][:, :half, :]], axis=-1)
    w1c = jnp.concatenate([p["s_w_in"][:, half:, :], p["t_w_in"][:, half:, :]], axis=-1)
    # embedder folded in, all couplings fused along lanes -> ONE (NC+1, n_c*2H) matrix;
    # the extra row is the first-layer bias (driven by an appended ones-column).
    cond_w = jnp.einsum("ce,neh->nch", p["w_emb_t"], w1c)             # (n_c, NC, 2H)
    nc_cls = p["w_emb_t"].shape[0]
    cond_w_all = cond_w.transpose(1, 0, 2).reshape(nc_cls, n_c * H2)
    cond_b_all = jnp.concatenate([p["s_b_in"], p["t_b_in"]], axis=-1).reshape(1, n_c * H2)
    cond_w_aug = jnp.concatenate([cond_w_all, cond_b_all], axis=0).astype(bf16)

    # block-diagonal hidden layers (s-net on channels [0,H), t-net on [H,2H)).
    # NOTE(v5e): with 2H <= 128 (here 64) the fusion costs no extra MXU tiles anywhere;
    # split back into two HxH matmuls on v5e if MID_CHANNELS is ever scaled past 64.
    zhh = jnp.zeros((n_c, depth, H, H), f32)
    whid = jnp.concatenate([jnp.concatenate([p["s_w_hid"], zhh], axis=-1),
                            jnp.concatenate([zhh, p["t_w_hid"]], axis=-1)], axis=-2)
    whid = whid.reshape(n_c * depth, H2, H2).astype(bf16)
    bhid = jnp.concatenate([p["s_b_hid"], p["t_b_hid"]],
                           axis=-1).reshape(n_c * depth, 1, H2).astype(f32)

    # fused (s | t) output head: one (2H, C) matrix + one (1, C) bias per coupling
    zh = jnp.zeros((n_c, H, half), f32)
    wout = jnp.concatenate([jnp.concatenate([p["s_w_out"], zh], axis=2),
                            jnp.concatenate([zh, p["t_w_out"]], axis=2)], axis=1)
    wout = wout.astype(bf16)                                           # (n_c, 2H, C)
    bout = jnp.concatenate([p["s_b_out"], p["t_b_out"]],
                           axis=-1)[:, None, :].astype(f32)            # (n_c, 1, C)

    # shuffle_f (+ folded ActNorm_{f+1} scale) as one (C, C) matrix per flow
    eye = jnp.eye(C, dtype=f32)
    shuf_mats, mbias_rows = [], []
    for f in range(n_flows):
        P = eye[p["perm"][f]].T                                        # h @ P == h[:, perm]
        if f < n_flows - 1:
            sc, lc = p["scale"][f + 1][0], p["loc"][f + 1][0]          # (C,)
            shuf_mats.append(P * sc[None, :])                          # P . diag(scale_{f+1})
            mbias_rows.append(sc * lc)                                 # scale_{f+1} * loc_{f+1}
        else:
            shuf_mats.append(P)                                        # final pure permutation
    shuf = jnp.stack(shuf_mats).astype(bf16)                           # (n_flows, C, C)

    # small f32 constants: row 0 = loc_0, row 1 = scale_0, rows 2.. = fused-shuffle biases
    cvec = jnp.stack([p["loc"][0][0], p["scale"][0][0]] + mbias_rows).astype(f32)

    # batch-independent ActNorm logdet (all flows), folded on the host
    actnorm_logdet = jnp.sum(jnp.log(jnp.abs(p["scale"])))

    packed = (cond_w_aug, w1x.astype(bf16), whid, bhid, wout, bout, shuf, cvec)
    return packed, actnorm_logdet


# ------------------------------ pure-JAX reference ---------------------------
def reference_forward(x, labels, p, *, n_flows, depth, num_classes):
    """Faithful (unfused, f32) re-implementation of the PyTorch forward."""
    C = x.shape[1]
    half = C // 2
    onehot = jax.nn.one_hot(labels, num_classes, dtype=jnp.float32)
    emb = onehot @ p["w_emb_t"]
    h = x
    ld = jnp.zeros((x.shape[0],), jnp.float32)

    def lrelu(y):
        return jnp.where(y > 0, y, LEAKY_SLOPE * y)

    def net(z, pre, n, use_tanh):
        y = lrelu(z @ p[pre + "_w_in"][n] + p[pre + "_b_in"][n])
        for d in range(depth):
            y = lrelu(y @ p[pre + "_w_hid"][n, d] + p[pre + "_b_hid"][n, d])
        y = y @ p[pre + "_w_out"][n] + p[pre + "_b_out"][n]
        return jnp.tanh(y) if use_tanh else y

    for f in range(n_flows):
        h = p["scale"][f] * (h + p["loc"][f])
        ld = ld + jnp.sum(jnp.log(jnp.abs(p["scale"][f])))
        for i in range(2):
            if i % 2 != 0:
                h = jnp.concatenate([h[:, half:], h[:, :half]], axis=1)
            xa, xb = h[:, :half], h[:, half:]
            ci = jnp.concatenate([xa, emb], axis=1)
            n = f * 2 + i
            s = net(ci, "s", n, True)
            t = net(ci, "t", n, False)
            h = jnp.concatenate([xa, xb * jnp.exp(s) + t], axis=1)
            ld = ld + jnp.sum(s, axis=1)
        h = h[:, p["perm"][f]]
    return h, ld


# ---------------------------------- main --------------------------------------
if __name__ == "__main__":
    key = jax.random.PRNGKey(0)
    k_x, k_l, k_p = jax.random.split(key, 3)

    x = jax.random.normal(k_x, (BATCH, IN_CHANNELS), jnp.float32)
    labels = jax.random.randint(k_l, (BATCH,), 0, NUM_CLASSES)

    params = init_params(k_p, C=IN_CHANNELS, E=EMB_CHANNELS, H=MID_CHANNELS,
                         depth=HIDDEN_DEPTH, n_flows=N_FLOWS, num_classes=NUM_CLASSES)
    packed, actnorm_ld = pack_params(params, C=IN_CHANNELS, H=MID_CHANNELS,
                                     depth=HIDDEN_DEPTH, n_flows=N_FLOWS)

    # toy batch: b_tile=None -> full batch, grid=(1,) (no wasted per-step overhead)
    out, logdet = supervised_transformer_forward(
        x, labels, packed, actnorm_ld, num_classes=NUM_CLASSES, b_tile=None)
    out = jax.block_until_ready(out)
    logdet = jax.block_until_ready(logdet)

    ref_out, ref_ld = reference_forward(x, labels, params, n_flows=N_FLOWS,
                                        depth=HIDDEN_DEPTH, num_classes=NUM_CLASSES)
    assert out.shape == (BATCH, IN_CHANNELS) and logdet.shape == (BATCH,)
    # tolerances sized for bf16 MXU operands accumulating through ~18 dependent matmuls;
    # structural bugs (wrong permutation / weight routing / sign) show up as O(1) errors.
    assert jnp.allclose(out, ref_out, atol=5e-2, rtol=5e-2), "output mismatch vs reference"
    assert jnp.allclose(logdet, ref_ld, atol=1e-1, rtol=5e-2), "logdet mismatch vs reference"

    print("KERNEL_OK")
</pallas_src>

<mosaic_0001>
module attributes {stable_mosaic.version = 11 : i64} {
  func.func @flow_kernel(%arg0: i32, %arg1: memref<64x11xbf16, #tpu.memory_space<vmem>>, %arg2: memref<64x16xf32, #tpu.memory_space<vmem>>, %arg3: memref<11x256xbf16, #tpu.memory_space<vmem>>, %arg4: memref<4x8x64xbf16, #tpu.memory_space<vmem>>, %arg5: memref<8x64x64xbf16, #tpu.memory_space<vmem>>, %arg6: memref<8x1x64xf32, #tpu.memory_space<vmem>>, %arg7: memref<4x64x16xbf16, #tpu.memory_space<vmem>>, %arg8: memref<4x1x16xf32, #tpu.memory_space<vmem>>, %arg9: memref<2x16x16xbf16, #tpu.memory_space<vmem>>, %arg10: memref<3x16xf32, #tpu.memory_space<vmem>>, %arg11: memref<64x16xf32, #tpu.memory_space<vmem>>, %arg12: memref<64x1xf32, #tpu.memory_space<vmem>>) attributes {dimension_semantics = [#tpu.dimension_semantics<parallel>], iteration_bounds = array<i64: 1>, scalar_prefetch = 0 : i64, scratch_operands = 0 : i64, tpu.core_type = #tpu.core_type<tc>, window_params = [{transform_indices = @transform_0, window_bounds = array<i64: 64, 11>}, {transform_indices = @transform_1, window_bounds = array<i64: 64, 16>}, {pipeline_mode = #tpu.pipeline_mode<synchronous>, transform_indices = @transform_2, window_bounds = array<i64: 11, 256>}, {pipeline_mode = #tpu.pipeline_mode<synchronous>, transform_indices = @transform_3, window_bounds = array<i64: 4, 8, 64>}, {pipeline_mode = #tpu.pipeline_mode<synchronous>, transform_indices = @transform_4, window_bounds = array<i64: 8, 64, 64>}, {pipeline_mode = #tpu.pipeline_mode<synchronous>, transform_indices = @transform_5, window_bounds = array<i64: 8, 1, 64>}, {pipeline_mode = #tpu.pipeline_mode<synchronous>, transform_indices = @transform_6, window_bounds = array<i64: 4, 64, 16>}, {pipeline_mode = #tpu.pipeline_mode<synchronous>, transform_indices = @transform_7, window_bounds = array<i64: 4, 1, 16>}, {pipeline_mode = #tpu.pipeline_mode<synchronous>, transform_indices = @transform_8, window_bounds = array<i64: 2, 16, 16>}, {pipeline_mode = #tpu.pipeline_mode<synchronous>, transform_indices = @transform_9, window_bounds = array<i64: 3, 16>}, {transform_indices = @transform_10, window_bounds = array<i64: 64, 16>}, {transform_indices = @transform_11, window_bounds = array<i64: 64, 1>}]} {
    %c0 = arith.constant 0 : index
    %c0_0 = arith.constant 0 : index
    %0 = vector.load %arg1[%c0, %c0_0] : memref<64x11xbf16, #tpu.memory_space<vmem>>, vector<64x11xbf16>
    %c0_1 = arith.constant 0 : index
    %c0_2 = arith.constant 0 : index
    %1 = vector.load %arg3[%c0_1, %c0_2] : memref<11x256xbf16, #tpu.memory_space<vmem>>, vector<11x256xbf16>
    %cst = arith.constant dense<0.000000e+00> : vector<64x256xf32>
    %2 = tpu.matmul %0, %1, %cst {dimension_numbers = #tpu.dot_dimension_numbers<[1], [0], [0], [1], [0, 0, 1, 1], [], []>} : vector<64x11xbf16>, vector<11x256xbf16>, vector<64x256xf32> -> vector<64x256xf32>
    %3 = vector.extract_strided_slice %2 {offsets = [0, 0], sizes = [64, 64], strides = [1, 1]} : vector<64x256xf32> to vector<64x64xf32>
    %4 = vector.extract_strided_slice %2 {offsets = [0, 64], sizes = [64, 64], strides = [1, 1]} : vector<64x256xf32> to vector<64x64xf32>
    %5 = vector.extract_strided_slice %2 {offsets = [0, 128], sizes = [64, 64], strides = [1, 1]} : vector<64x256xf32> to vector<64x64xf32>
    %6 = vector.extract_strided_slice %2 {offsets = [0, 192], sizes = [64, 64], strides = [1, 1]} : vector<64x256xf32> to vector<64x64xf32>
    %c0_3 = arith.constant 0 : index
    %c0_4 = arith.constant 0 : index
    %7 = vector.load %arg2[%c0_3, %c0_4] : memref<64x16xf32, #tpu.memory_space<vmem>>, vector<64x16xf32>
    %c1 = arith.constant 1 : index
    %c0_5 = arith.constant 0 : index
    %8 = vector.load %arg10[%c1, %c0_5] : memref<3x16xf32, #tpu.memory_space<vmem>>, vector<1x16xf32>
    %c0_6 = arith.constant 0 : index
    %c0_7 = arith.constant 0 : index
    %9 = vector.load %arg10[%c0_6, %c0_7] : memref<3x16xf32, #tpu.memory_space<vmem>>, vector<1x16xf32>
    %10 = vector.broadcast %9 : vector<1x16xf32> to vector<64x16xf32>
    %11 = arith.addf %7, %10 : vector<64x16xf32>
    %12 = vector.broadcast %8 : vector<1x16xf32> to vector<64x16xf32>
    %13 = arith.mulf %12, %11 : vector<64x16xf32>
    %14 = vector.extract_strided_slice %13 {offsets = [0, 0], sizes = [64, 8], strides = [1, 1]} : vector<64x16xf32> to vector<64x8xf32>
    %15 = vector.extract_strided_slice %13 {offsets = [0, 8], sizes = [64, 8], strides = [1, 1]} : vector<64x16xf32> to vector<64x8xf32>
    %cst_8 = arith.constant 0.000000e+00 : f32
    %16 = vector.broadcast %cst_8 : f32 to vector<64x8xf32>
    %17 = arith.truncf %14 : vector<64x8xf32> to vector<64x8xbf16>
    %c0_9 = arith.constant 0 : index
    %c0_10 = arith.constant 0 : index
    %c0_11 = arith.constant 0 : index
    %18 = vector.load %arg4[%c0_9, %c0_10, %c0_11] : memref<4x8x64xbf16, #tpu.memory_space<vmem>>, vector<1x8x64xbf16>
    %19 = vector.shape_cast %18 : vector<1x8x64xbf16> to vector<8x64xbf16>
    %cst_12 = arith.constant dense<0.000000e+00> : vector<64x64xf32>
    %20 = tpu.matmul %17, %19, %cst_12 {dimension_numbers = #tpu.dot_dimension_numbers<[1], [0], [0], [1], [0, 0, 1, 1], [], []>} : vector<64x8xbf16>, vector<8x64xbf16>, vector<64x64xf32> -> vector<64x64xf32>
    %21 = arith.addf %20, %3 : vector<64x64xf32>
    %cst_13 = arith.constant 0.000000e+00 : f32
    %22 = vector.broadcast %cst_13 : f32 to vector<64x64xf32>
    %23 = arith.cmpf ogt, %21, %22 : vector<64x64xf32>
    %cst_14 = arith.constant 0.00999999977 : f32
    %24 = vector.broadcast %cst_14 : f32 to vector<64x64xf32>
    %25 = arith.mulf %24, %21 : vector<64x64xf32>
    %26 = arith.select %23, %21, %25 : vector<64x64xi1>, vector<64x64xf32>
    %27 = arith.truncf %26 : vector<64x64xf32> to vector<64x64xbf16>
    %c0_15 = arith.constant 0 : index
    %c0_16 = arith.constant 0 : index
    %c0_17 = arith.constant 0 : index
    %28 = vector.load %arg5[%c0_15, %c0_16, %c0_17] : memref<8x64x64xbf16, #tpu.memory_space<vmem>>, vector<1x64x64xbf16>
    %29 = vector.shape_cast %28 : vector<1x64x64xbf16> to vector<64x64xbf16>
    %cst_18 = arith.constant dense<0.000000e+00> : vector<64x64xf32>
    %30 = tpu.matmul %27, %29, %cst_18 {dimension_numbers = #tpu.dot_dimension_numbers<[1], [0], [0], [1], [0, 0, 1, 1], [], []>} : vector<64x64xbf16>, vector<64x64xbf16>, vector<64x64xf32> -> vector<64x64xf32>
    %c0_19 = arith.constant 0 : index
    %c0_20 = arith.constant 0 : index
    %c0_21 = arith.constant 0 : index
    %31 = vector.load %arg6[%c0_19, %c0_20, %c0_21] : memref<8x1x64xf32, #tpu.memory_space<vmem>>, vector<1x1x64xf32>
    %32 = vector.shape_cast %31 : vector<1x1x64xf32> to vector<1x64xf32>
    %33 = vector.broadcast %32 : vector<1x64xf32> to vector<64x64xf32>
    %34 = arith.addf %30, %33 : vector<64x64xf32>
    %cst_22 = arith.constant 0.000000e+00 : f32
    %35 = vector.broadcast %cst_22 : f32 to vector<64x64xf32>
    %36 = arith.cmpf ogt, %34, %35 : vector<64x64xf32>
    %cst_23 = arith.constant 0.00999999977 : f32
    %37 = vector.broadcast %cst_23 : f32 to vector<64x64xf32>
    %38 = arith.mulf %37, %34 : vector<64x64xf32>
    %39 = arith.select %36, %34, %38 : vector<64x64xi1>, vector<64x64xf32>
    %40 = arith.truncf %39 : vector<64x64xf32> to vector<64x64xbf16>
    %c1_24 = arith.constant 1 : index
    %c0_25 = arith.constant 0 : index
    %c0_26 = arith.constant 0 : index
    %41 = vector.load %arg5[%c1_24, %c0_25, %c0_26] : memref<8x64x64xbf16, #tpu.memory_space<vmem>>, vector<1x64x64xbf16>
    %42 = vector.shape_cast %41 : vector<1x64x64xbf16> to vector<64x64xbf16>
    %cst_27 = arith.constant dense<0.000000e+00> : vector<64x64xf32>
    %43 = tpu.matmul %40, %42, %cst_27 {dimension_numbers = #tpu.dot_dimension_numbers<[1], [0], [0], [1], [0, 0, 1, 1], [], []>} : vector<64x64xbf16>, vector<64x64xbf16>, vector<64x64xf32> -> vector<64x64xf32>
    %c1_28 = arith.constant 1 : index
    %c0_29 = arith.constant 0 : index
    %c0_30 = arith.constant 0 : index
    %44 = vector.load %arg6[%c1_28, %c0_29, %c0_30] : memref<8x1x64xf32, #tpu.memory_space<vmem>>, vector<1x1x64xf32>
    %45 = vector.shape_cast %44 : vector<1x1x64xf32> to vector<1x64xf32>
    %46 = vector.broadcast %45 : vector<1x64xf32> to vector<64x64xf32>
    %47 = arith.addf %43, %46 : vector<64x64xf32>
    %cst_31 = arith.constant 0.000000e+00 : f32
    %48 = vector.broadcast %cst_31 : f32 to vector<64x64xf32>
    %49 = arith.cmpf ogt, %47, %48 : vector<64x64xf32>
    %cst_32 = arith.constant 0.00999999977 : f32
    %50 = vector.broadcast %cst_32 : f32 to vector<64x64xf32>
    %51 = arith.mulf %50, %47 : vector<64x64xf32>
    %52 = arith.select %49, %47, %51 : vector<64x64xi1>, vector<64x64xf32>
    %53 = arith.truncf %52 : vector<64x64xf32> to vector<64x64xbf16>
    %c0_33 = arith.constant 0 : index
    %c0_34 = arith.constant 0 : index
    %c0_35 = arith.constant 0 : index
    %54 = vector.load %arg7[%c0_33, %c0_34, %c0_35] : memref<4x64x16xbf16, #tpu.memory_space<vmem>>, vector<1x64x16xbf16>
    %55 = vector.shape_cast %54 : vector<1x64x16xbf16> to vector<64x16xbf16>
    %cst_36 = arith.constant dense<0.000000e+00> : vector<64x16xf32>
    %56 = tpu.matmul %53, %55, %cst_36 {dimension_numbers = #tpu.dot_dimension_numbers<[1], [0], [0], [1], [0, 0, 1, 1], [], []>} : vector<64x64xbf16>, vector<64x16xbf16>, vector<64x16xf32> -> vector<64x16xf32>
    %c0_37 = arith.constant 0 : index
    %c0_38 = arith.constant 0 : index
    %c0_39 = arith.constant 0 : index
    %57 = vector.load %arg8[%c0_37, %c0_38, %c0_39] : memref<4x1x16xf32, #tpu.memory_space<vmem>>, vector<1x1x16xf32>
    %58 = vector.shape_cast %57 : vector<1x1x16xf32> to vector<1x16xf32>
    %59 = vector.broadcast %58 : vector<1x16xf32> to vector<64x16xf32>
    %60 = arith.addf %56, %59 : vector<64x16xf32>
    %61 = vector.extract_strided_slice %60 {offsets = [0, 0], sizes = [64, 8], strides = [1, 1]} : vector<64x16xf32> to vector<64x8xf32>
    %62 = math.tanh %61 : vector<64x8xf32>
    %63 = vector.extract_strided_slice %60 {offsets = [0, 8], sizes = [64, 8], strides = [1, 1]} : vector<64x16xf32> to vector<64x8xf32>
    %64 = math.exp %62 : vector<64x8xf32>
    %65 = arith.mulf %15, %64 : vector<64x8xf32>
    %66 = arith.addf %65, %63 : vector<64x8xf32>
    %67 = arith.addf %16, %62 : vector<64x8xf32>
    %68 = arith.truncf %66 : vector<64x8xf32> to vector<64x8xbf16>
    %c1_40 = arith.constant 1 : index
    %c0_41 = arith.constant 0 : index
    %c0_42 = arith.constant 0 : index
    %69 = vector.load %arg4[%c1_40, %c0_41, %c0_42] : memref<4x8x64xbf16, #tpu.memory_space<vmem>>, vector<1x8x64xbf16>
    %70 = vector.shape_cast %69 : vector<1x8x64xbf16> to vector<8x64xbf16>
    %cst_43 = arith.constant dense<0.000000e+00> : vector<64x64xf32>
    %71 = tpu.matmul %68, %70, %cst_43 {dimension_numbers = #tpu.dot_dimension_numbers<[1], [0], [0], [1], [0, 0, 1, 1], [], []>} : vector<64x8xbf16>, vector<8x64xbf16>, vector<64x64xf32> -> vector<64x64xf32>
    %72 = arith.addf %71, %4 : vector<64x64xf32>
    %cst_44 = arith.constant 0.000000e+00 : f32
    %73 = vector.broadcast %cst_44 : f32 to vector<64x64xf32>
    %74 = arith.cmpf ogt, %72, %73 : vector<64x64xf32>
    %cst_45 = arith.constant 0.00999999977 : f32
    %75 = vector.broadcast %cst_45 : f32 to vector<64x64xf32>
    %76 = arith.mulf %75, %72 : vector<64x64xf32>
    %77 = arith.select %74, %72, %76 : vector<64x64xi1>, vector<64x64xf32>
    %78 = arith.truncf %77 : vector<64x64xf32> to vector<64x64xbf16>
    %c2 = arith.constant 2 : index
    %c0_46 = arith.constant 0 : index
    %c0_47 = arith.constant 0 : index
    %79 = vector.load %arg5[%c2, %c0_46, %c0_47] : memref<8x64x64xbf16, #tpu.memory_space<vmem>>, vector<1x64x64xbf16>
    %80 = vector.shape_cast %79 : vector<1x64x64xbf16> to vector<64x64xbf16>
    %cst_48 = arith.constant dense<0.000000e+00> : vector<64x64xf32>
    %81 = tpu.matmul %78, %80, %cst_48 {dimension_numbers = #tpu.dot_dimension_numbers<[1], [0], [0], [1], [0, 0, 1, 1], [], []>} : vector<64x64xbf16>, vector<64x64xbf16>, vector<64x64xf32> -> vector<64x64xf32>
    %c2_49 = arith.constant 2 : index
    %c0_50 = arith.constant 0 : index
    %c0_51 = arith.constant 0 : index
    %82 = vector.load %arg6[%c2_49, %c0_50, %c0_51] : memref<8x1x64xf32, #tpu.memory_space<vmem>>, vector<1x1x64xf32>
    %83 = vector.shape_cast %82 : vector<1x1x64xf32> to vector<1x64xf32>
    %84 = vector.broadcast %83 : vector<1x64xf32> to vector<64x64xf32>
    %85 = arith.addf %81, %84 : vector<64x64xf32>
    %cst_52 = arith.constant 0.000000e+00 : f32
    %86 = vector.broadcast %cst_52 : f32 to vector<64x64xf32>
    %87 = arith.cmpf ogt, %85, %86 : vector<64x64xf32>
    %cst_53 = arith.constant 0.00999999977 : f32
    %88 = vector.broadcast %cst_53 : f32 to vector<64x64xf32>
    %89 = arith.mulf %88, %85 : vector<64x64xf32>
    %90 = arith.select %87, %85, %89 : vector<64x64xi1>, vector<64x64xf32>
    %91 = arith.truncf %90 : vector<64x64xf32> to vector<64x64xbf16>
    %c3 = arith.constant 3 : index
    %c0_54 = arith.constant 0 : index
    %c0_55 = arith.constant 0 : index
    %92 = vector.load %arg5[%c3, %c0_54, %c0_55] : memref<8x64x64xbf16, #tpu.memory_space<vmem>>, vector<1x64x64xbf16>
    %93 = vector.shape_cast %92 : vector<1x64x64xbf16> to vector<64x64xbf16>
    %cst_56 = arith.constant dense<0.000000e+00> : vector<64x64xf32>
    %94 = tpu.matmul %91, %93, %cst_56 {dimension_numbers = #tpu.dot_dimension_numbers<[1], [0], [0], [1], [0, 0, 1, 1], [], []>} : vector<64x64xbf16>, vector<64x64xbf16>, vector<64x64xf32> -> vector<64x64xf32>
    %c3_57 = arith.constant 3 : index
    %c0_58 = arith.constant 0 : index
    %c0_59 = arith.constant 0 : index
    %95 = vector.load %arg6[%c3_57, %c0_58, %c0_59] : memref<8x1x64xf32, #tpu.memory_space<vmem>>, vector<1x1x64xf32>
    %96 = vector.shape_cast %95 : vector<1x1x64xf32> to vector<1x64xf32>
    %97 = vector.broadcast %96 : vector<1x64xf32> to vector<64x64xf32>
    %98 = arith.addf %94, %97 : vector<64x64xf32>
    %cst_60 = arith.constant 0.000000e+00 : f32
    %99 = vector.broadcast %cst_60 : f32 to vector<64x64xf32>
    %100 = arith.cmpf ogt, %98, %99 : vector<64x64xf32>
    %cst_61 = arith.constant 0.00999999977 : f32
    %101 = vector.broadcast %cst_61 : f32 to vector<64x64xf32>
    %102 = arith.mulf %101, %98 : vector<64x64xf32>
    %103 = arith.select %100, %98, %102 : vector<64x64xi1>, vector<64x64xf32>
    %104 = arith.truncf %103 : vector<64x64xf32> to vector<64x64xbf16>
    %c1_62 = arith.constant 1 : index
    %c0_63 = arith.constant 0 : index
    %c0_64 = arith.constant 0 : index
    %105 = vector.load %arg7[%c1_62, %c0_63, %c0_64] : memref<4x64x16xbf16, #tpu.memory_space<vmem>>, vector<1x64x16xbf16>
    %106 = vector.shape_cast %105 : vector<1x64x16xbf16> to vector<64x16xbf16>
    %cst_65 = arith.constant dense<0.000000e+00> : vector<64x16xf32>
    %107 = tpu.matmul %104, %106, %cst_65 {dimension_numbers = #tpu.dot_dimension_numbers<[1], [0], [0], [1], [0, 0, 1, 1], [], []>} : vector<64x64xbf16>, vector<64x16xbf16>, vector<64x16xf32> -> vector<64x16xf32>
    %c1_66 = arith.constant 1 : index
    %c0_67 = arith.constant 0 : index
    %c0_68 = arith.constant 0 : index
    %108 = vector.load %arg8[%c1_66, %c0_67, %c0_68] : memref<4x1x16xf32, #tpu.memory_space<vmem>>, vector<1x1x16xf32>
    %109 = vector.shape_cast %108 : vector<1x1x16xf32> to vector<1x16xf32>
    %110 = vector.broadcast %109 : vector<1x16xf32> to vector<64x16xf32>
    %111 = arith.addf %107, %110 : vector<64x16xf32>
    %112 = vector.extract_strided_slice %111 {offsets = [0, 0], sizes = [64, 8], strides = [1, 1]} : vector<64x16xf32> to vector<64x8xf32>
    %113 = math.tanh %112 : vector<64x8xf32>
    %114 = vector.extract_strided_slice %111 {offsets = [0, 8], sizes = [64, 8], strides = [1, 1]} : vector<64x16xf32> to vector<64x8xf32>
    %115 = math.exp %113 : vector<64x8xf32>
    %116 = arith.mulf %14, %115 : vector<64x8xf32>
    %117 = arith.addf %116, %114 : vector<64x8xf32>
    %118 = arith.addf %67, %113 : vector<64x8xf32>
    %119 = tpu.concatenate %66, %117 in 1 : vector<64x8xf32>, vector<64x8xf32> -> vector<64x16xf32>
    %120 = arith.truncf %119 : vector<64x16xf32> to vector<64x16xbf16>
    %c0_69 = arith.constant 0 : index
    %c0_70 = arith.constant 0 : index
    %c0_71 = arith.constant 0 : index
    %121 = vector.load %arg9[%c0_69, %c0_70, %c0_71] : memref<2x16x16xbf16, #tpu.memory_space<vmem>>, vector<1x16x16xbf16>
    %122 = vector.shape_cast %121 : vector<1x16x16xbf16> to vector<16x16xbf16>
    %cst_72 = arith.constant dense<0.000000e+00> : vector<64x16xf32>
    %123 = tpu.matmul %120, %122, %cst_72 {dimension_numbers = #tpu.dot_dimension_numbers<[1], [0], [0], [1], [0, 0, 1, 1], [], []>} : vector<64x16xbf16>, vector<16x16xbf16>, vector<64x16xf32> -> vector<64x16xf32>
    %c2_73 = arith.constant 2 : index
    %c0_74 = arith.constant 0 : index
    %124 = vector.load %arg10[%c2_73, %c0_74] : memref<3x16xf32, #tpu.memory_space<vmem>>, vector<1x16xf32>
    %125 = vector.broadcast %124 : vector<1x16xf32> to vector<64x16xf32>
    %126 = arith.addf %123, %125 : vector<64x16xf32>
    %127 = vector.extract_strided_slice %126 {offsets = [0, 0], sizes = [64, 8], strides = [1, 1]} : vector<64x16xf32> to vector<64x8xf32>
    %128 = vector.extract_strided_slice %126 {offsets = [0, 8], sizes = [64, 8], strides = [1, 1]} : vector<64x16xf32> to vector<64x8xf32>
    %129 = arith.truncf %127 : vector<64x8xf32> to vector<64x8xbf16>
    %c2_75 = arith.constant 2 : index
    %c0_76 = arith.constant 0 : index
    %c0_77 = arith.constant 0 : index
    %130 = vector.load %arg4[%c2_75, %c0_76, %c0_77] : memref<4x8x64xbf16, #tpu.memory_space<vmem>>, vector<1x8x64xbf16>
    %131 = vector.shape_cast %130 : vector<1x8x64xbf16> to vector<8x64xbf16>
    %cst_78 = arith.constant dense<0.000000e+00> : vector<64x64xf32>
    %132 = tpu.matmul %129, %131, %cst_78 {dimension_numbers = #tpu.dot_dimension_numbers<[1], [0], [0], [1], [0, 0, 1, 1], [], []>} : vector<64x8xbf16>, vector<8x64xbf16>, vector<64x64xf32> -> vector<64x64xf32>
    %133 = arith.addf %132, %5 : vector<64x64xf32>
    %cst_79 = arith.constant 0.000000e+00 : f32
    %134 = vector.broadcast %cst_79 : f32 to vector<64x64xf32>
    %135 = arith.cmpf ogt, %133, %134 : vector<64x64xf32>
    %cst_80 = arith.constant 0.00999999977 : f32
    %136 = vector.broadcast %cst_80 : f32 to vector<64x64xf32>
    %137 = arith.mulf %136, %133 : vector<64x64xf32>
    %138 = arith.select %135, %133, %137 : vector<64x64xi1>, vector<64x64xf32>
    %139 = arith.truncf %138 : vector<64x64xf32> to vector<64x64xbf16>
    %c4 = arith.constant 4 : index
    %c0_81 = arith.constant 0 : index
    %c0_82 = arith.constant 0 : index
    %140 = vector.load %arg5[%c4, %c0_81, %c0_82] : memref<8x64x64xbf16, #tpu.memory_space<vmem>>, vector<1x64x64xbf16>
    %141 = vector.shape_cast %140 : vector<1x64x64xbf16> to vector<64x64xbf16>
    %cst_83 = arith.constant dense<0.000000e+00> : vector<64x64xf32>
    %142 = tpu.matmul %139, %141, %cst_83 {dimension_numbers = #tpu.dot_dimension_numbers<[1], [0], [0], [1], [0, 0, 1, 1], [], []>} : vector<64x64xbf16>, vector<64x64xbf16>, vector<64x64xf32> -> vector<64x64xf32>
    %c4_84 = arith.constant 4 : index
    %c0_85 = arith.constant 0 : index
    %c0_86 = arith.constant 0 : index
    %143 = vector.load %arg6[%c4_84, %c0_85, %c0_86] : memref<8x1x64xf32, #tpu.memory_space<vmem>>, vector<1x1x64xf32>
    %144 = vector.shape_cast %143 : vector<1x1x64xf32> to vector<1x64xf32>
    %145 = vector.broadcast %144 : vector<1x64xf32> to vector<64x64xf32>
    %146 = arith.addf %142, %145 : vector<64x64xf32>
    %cst_87 = arith.constant 0.000000e+00 : f32
    %147 = vector.broadcast %cst_87 : f32 to vector<64x64xf32>
    %148 = arith.cmpf ogt, %146, %147 : vector<64x64xf32>
    %cst_88 = arith.constant 0.00999999977 : f32
    %149 = vector.broadcast %cst_88 : f32 to vector<64x64xf32>
    %150 = arith.mulf %149, %146 : vector<64x64xf32>
    %151 = arith.select %148, %146, %150 : vector<64x64xi1>, vector<64x64xf32>
    %152 = arith.truncf %151 : vector<64x64xf32> to vector<64x64xbf16>
    %c5 = arith.constant 5 : index
    %c0_89 = arith.constant 0 : index
    %c0_90 = arith.constant 0 : index
    %153 = vector.load %arg5[%c5, %c0_89, %c0_90] : memref<8x64x64xbf16, #tpu.memory_space<vmem>>, vector<1x64x64xbf16>
    %154 = vector.shape_cast %153 : vector<1x64x64xbf16> to vector<64x64xbf16>
    %cst_91 = arith.constant dense<0.000000e+00> : vector<64x64xf32>
    %155 = tpu.matmul %152, %154, %cst_91 {dimension_numbers = #tpu.dot_dimension_numbers<[1], [0], [0], [1], [0, 0, 1, 1], [], []>} : vector<64x64xbf16>, vector<64x64xbf16>, vector<64x64xf32> -> vector<64x64xf32>
    %c5_92 = arith.constant 5 : index
    %c0_93 = arith.constant 0 : index
    %c0_94 = arith.constant 0 : index
    %156 = vector.load %arg6[%c5_92, %c0_93, %c0_94] : memref<8x1x64xf32, #tpu.memory_space<vmem>>, vector<1x1x64xf32>
    %157 = vector.shape_cast %156 : vector<1x1x64xf32> to vector<1x64xf32>
    %158 = vector.broadcast %157 : vector<1x64xf32> to vector<64x64xf32>
    %159 = arith.addf %155, %158 : vector<64x64xf32>
    %cst_95 = arith.constant 0.000000e+00 : f32
    %160 = vector.broadcast %cst_95 : f32 to vector<64x64xf32>
    %161 = arith.cmpf ogt, %159, %160 : vector<64x64xf32>
    %cst_96 = arith.constant 0.00999999977 : f32
    %162 = vector.broadcast %cst_96 : f32 to vector<64x64xf32>
    %163 = arith.mulf %162, %159 : vector<64x64xf32>
    %164 = arith.select %161, %159, %163 : vector<64x64xi1>, vector<64x64xf32>
    %165 = arith.truncf %164 : vector<64x64xf32> to vector<64x64xbf16>
    %c2_97 = arith.constant 2 : index
    %c0_98 = arith.constant 0 : index
    %c0_99 = arith.constant 0 : index
    %166 = vector.load %arg7[%c2_97, %c0_98, %c0_99] : memref<4x64x16xbf16, #tpu.memory_space<vmem>>, vector<1x64x16xbf16>
    %167 = vector.shape_cast %166 : vector<1x64x16xbf16> to vector<64x16xbf16>
    %cst_100 = arith.constant dense<0.000000e+00> : vector<64x16xf32>
    %168 = tpu.matmul %165, %167, %cst_100 {dimension_numbers = #tpu.dot_dimension_numbers<[1], [0], [0], [1], [0, 0, 1, 1], [], []>} : vector<64x64xbf16>, vector<64x16xbf16>, vector<64x16xf32> -> vector<64x16xf32>
    %c2_101 = arith.constant 2 : index
    %c0_102 = arith.constant 0 : index
    %c0_103 = arith.constant 0 : index
    %169 = vector.load %arg8[%c2_101, %c0_102, %c0_103] : memref<4x1x16xf32, #tpu.memory_space<vmem>>, vector<1x1x16xf32>
    %170 = vector.shape_cast %169 : vector<1x1x16xf32> to vector<1x16xf32>
    %171 = vector.broadcast %170 : vector<1x16xf32> to vector<64x16xf32>
    %172 = arith.addf %168, %171 : vector<64x16xf32>
    %173 = vector.extract_strided_slice %172 {offsets = [0, 0], sizes = [64, 8], strides = [1, 1]} : vector<64x16xf32> to vector<64x8xf32>
    %174 = math.tanh %173 : vector<64x8xf32>
    %175 = vector.extract_strided_slice %172 {offsets = [0, 8], sizes = [64, 8], strides = [1, 1]} : vector<64x16xf32> to vector<64x8xf32>
    %176 = math.exp %174 : vector<64x8xf32>
    %177 = arith.mulf %128, %176 : vector<64x8xf32>
    %178 = arith.addf %177, %175 : vector<64x8xf32>
    %179 = arith.addf %118, %174 : vector<64x8xf32>
    %180 = arith.truncf %178 : vector<64x8xf32> to vector<64x8xbf16>
    %c3_104 = arith.constant 3 : index
    %c0_105 = arith.constant 0 : index
    %c0_106 = arith.constant 0 : index
    %181 = vector.load %arg4[%c3_104, %c0_105, %c0_106] : memref<4x8x64xbf16, #tpu.memory_space<vmem>>, vector<1x8x64xbf16>
    %182 = vector.shape_cast %181 : vector<1x8x64xbf16> to vector<8x64xbf16>
    %cst_107 = arith.constant dense<0.000000e+00> : vector<64x64xf32>
    %183 = tpu.matmul %180, %182, %cst_107 {dimension_numbers = #tpu.dot_dimension_numbers<[1], [0], [0], [1], [0, 0, 1, 1], [], []>} : vector<64x8xbf16>, vector<8x64xbf16>, vector<64x64xf32> -> vector<64x64xf32>
    %184 = arith.addf %183, %6 : vector<64x64xf32>
    %cst_108 = arith.constant 0.000000e+00 : f32
    %185 = vector.broadcast %cst_108 : f32 to vector<64x64xf32>
    %186 = arith.cmpf ogt, %184, %185 : vector<64x64xf32>
    %cst_109 = arith.constant 0.00999999977 : f32
    %187 = vector.broadcast %cst_109 : f32 to vector<64x64xf32>
    %188 = arith.mulf %187, %184 : vector<64x64xf32>
    %189 = arith.select %186, %184, %188 : vector<64x64xi1>, vector<64x64xf32>
    %190 = arith.truncf %189 : vector<64x64xf32> to vector<64x64xbf16>
    %c6 = arith.constant 6 : index
    %c0_110 = arith.constant 0 : index
    %c0_111 = arith.constant 0 : index
    %191 = vector.load %arg5[%c6, %c0_110, %c0_111] : memref<8x64x64xbf16, #tpu.memory_space<vmem>>, vector<1x64x64xbf16>
    %192 = vector.shape_cast %191 : vector<1x64x64xbf16> to vector<64x64xbf16>
    %cst_112 = arith.constant dense<0.000000e+00> : vector<64x64xf32>
    %193 = tpu.matmul %190, %192, %cst_112 {dimension_numbers = #tpu.dot_dimension_numbers<[1], [0], [0], [1], [0, 0, 1, 1], [], []>} : vector<64x64xbf16>, vector<64x64xbf16>, vector<64x64xf32> -> vector<64x64xf32>
    %c6_113 = arith.constant 6 : index
    %c0_114 = arith.constant 0 : index
    %c0_115 = arith.constant 0 : index
    %194 = vector.load %arg6[%c6_113, %c0_114, %c0_115] : memref<8x1x64xf32, #tpu.memory_space<vmem>>, vector<1x1x64xf32>
    %195 = vector.shape_cast %194 : vector<1x1x64xf32> to vector<1x64xf32>
    %196 = vector.broadcast %195 : vector<1x64xf32> to vector<64x64xf32>
    %197 = arith.addf %193, %196 : vector<64x64xf32>
    %cst_116 = arith.constant 0.000000e+00 : f32
    %198 = vector.broadcast %cst_116 : f32 to vector<64x64xf32>
    %199 = arith.cmpf ogt, %197, %198 : vector<64x64xf32>
    %cst_117 = arith.constant 0.00999999977 : f32
    %200 = vector.broadcast %cst_117 : f32 to vector<64x64xf32>
    %201 = arith.mulf %200, %197 : vector<64x64xf32>
    %202 = arith.select %199, %197, %201 : vector<64x64xi1>, vector<64x64xf32>
    %203 = arith.truncf %202 : vector<64x64xf32> to vector<64x64xbf16>
    %c7 = arith.constant 7 : index
    %c0_118 = arith.constant 0 : index
    %c0_119 = arith.constant 0 : index
    %204 = vector.load %arg5[%c7, %c0_118, %c0_119] : memref<8x64x64xbf16, #tpu.memory_space<vmem>>, vector<1x64x64xbf16>
    %205 = vector.shape_cast %204 : vector<1x64x64xbf16> to vector<64x64xbf16>
    %cst_120 = arith.constant dense<0.000000e+00> : vector<64x64xf32>
    %206 = tpu.matmul %203, %205, %cst_120 {dimension_numbers = #tpu.dot_dimension_numbers<[1], [0], [0], [1], [0, 0, 1, 1], [], []>} : vector<64x64xbf16>, vector<64x64xbf16>, vector<64x64xf32> -> vector<64x64xf32>
    %c7_121 = arith.constant 7 : index
    %c0_122 = arith.constant 0 : index
    %c0_123 = arith.constant 0 : index
    %207 = vector.load %arg6[%c7_121, %c0_122, %c0_123] : memref<8x1x64xf32, #tpu.memory_space<vmem>>, vector<1x1x64xf32>
    %208 = vector.shape_cast %207 : vector<1x1x64xf32> to vector<1x64xf32>
    %209 = vector.broadcast %208 : vector<1x64xf32> to vector<64x64xf32>
    %210 = arith.addf %206, %209 : vector<64x64xf32>
    %cst_124 = arith.constant 0.000000e+00 : f32
    %211 = vector.broadcast %cst_124 : f32 to vector<64x64xf32>
    %212 = arith.cmpf ogt, %210, %211 : vector<64x64xf32>
    %cst_125 = arith.constant 0.00999999977 : f32
    %213 = vector.broadcast %cst_125 : f32 to vector<64x64xf32>
    %214 = arith.mulf %213, %210 : vector<64x64xf32>
    %215 = arith.select %212, %210, %214 : vector<64x64xi1>, vector<64x64xf32>
    %216 = arith.truncf %215 : vector<64x64xf32> to vector<64x64xbf16>
    %c3_126 = arith.constant 3 : index
    %c0_127 = arith.constant 0 : index
    %c0_128 = arith.constant 0 : index
    %217 = vector.load %arg7[%c3_126, %c0_127, %c0_128] : memref<4x64x16xbf16, #tpu.memory_space<vmem>>, vector<1x64x16xbf16>
    %218 = vector.shape_cast %217 : vector<1x64x16xbf16> to vector<64x16xbf16>
    %cst_129 = arith.constant dense<0.000000e+00> : vector<64x16xf32>
    %219 = tpu.matmul %216, %218, %cst_129 {dimension_numbers = #tpu.dot_dimension_numbers<[1], [0], [0], [1], [0, 0, 1, 1], [], []>} : vector<64x64xbf16>, vector<64x16xbf16>, vector<64x16xf32> -> vector<64x16xf32>
    %c3_130 = arith.constant 3 : index
    %c0_131 = arith.constant 0 : index
    %c0_132 = arith.constant 0 : index
    %220 = vector.load %arg8[%c3_130, %c0_131, %c0_132] : memref<4x1x16xf32, #tpu.memory_space<vmem>>, vector<1x1x16xf32>
    %221 = vector.shape_cast %220 : vector<1x1x16xf32> to vector<1x16xf32>
    %222 = vector.broadcast %221 : vector<1x16xf32> to vector<64x16xf32>
    %223 = arith.addf %219, %222 : vector<64x16xf32>
    %224 = vector.extract_strided_slice %223 {offsets = [0, 0], sizes = [64, 8], strides = [1, 1]} : vector<64x16xf32> to vector<64x8xf32>
    %225 = math.tanh %224 : vector<64x8xf32>
    %226 = vector.extract_strided_slice %223 {offsets = [0, 8], sizes = [64, 8], strides = [1, 1]} : vector<64x16xf32> to vector<64x8xf32>
    %227 = math.exp %225 : vector<64x8xf32>
    %228 = arith.mulf %127, %227 : vector<64x8xf32>
    %229 = arith.addf %228, %226 : vector<64x8xf32>
    %230 = arith.addf %179, %225 : vector<64x8xf32>
    %231 = tpu.concatenate %178, %229 in 1 : vector<64x8xf32>, vector<64x8xf32> -> vector<64x16xf32>
    %232 = arith.truncf %231 : vector<64x16xf32> to vector<64x16xbf16>
    %c1_133 = arith.constant 1 : index
    %c0_134 = arith.constant 0 : index
    %c0_135 = arith.constant 0 : index
    %233 = vector.load %arg9[%c1_133, %c0_134, %c0_135] : memref<2x16x16xbf16, #tpu.memory_space<vmem>>, vector<1x16x16xbf16>
    %234 = vector.shape_cast %233 : vector<1x16x16xbf16> to vector<16x16xbf16>
    %cst_136 = arith.constant dense<0.000000e+00> : vector<64x16xf32>
    %235 = tpu.matmul %232, %234, %cst_136 {dimension_numbers = #tpu.dot_dimension_numbers<[1], [0], [0], [1], [0, 0, 1, 1], [], []>} : vector<64x16xbf16>, vector<16x16xbf16>, vector<64x16xf32> -> vector<64x16xf32>
    %c0_137 = arith.constant 0 : index
    %c0_138 = arith.constant 0 : index
    %236 = vector.load %arg11[%c0_137, %c0_138] : memref<64x16xf32, #tpu.memory_space<vmem>>, vector<64x16xf32>
    tpu.vector_store %arg11[%c0_137, %c0_138], %235 {strides = array<i32>} : memref<64x16xf32, #tpu.memory_space<vmem>>, vector<64x16xf32>,
    %cst_139 = arith.constant dense<0.000000e+00> : vector<64xf32>
    %237 = vector.multi_reduction <add>, %230, %cst_139 [1] : vector<64x8xf32> to vector<64xf32>
    %238 = vector.shape_cast %237 : vector<64xf32> to vector<64x1xf32>
    %c0_140 = arith.constant 0 : index
    %c0_141 = arith.constant 0 : index
    %239 = vector.load %arg12[%c0_140, %c0_141] : memref<64x1xf32, #tpu.memory_space<vmem>>, vector<64x1xf32>
    tpu.vector_store %arg12[%c0_140, %c0_141], %238 {strides = array<i32>} : memref<64x1xf32, #tpu.memory_space<vmem>>, vector<64x1xf32>,
    return
  }
  func.func @transform_0(%arg0: i32) -> (i32, i32) {
    %c0_i32 = arith.constant 0 : i32
    %c0_i32_0 = arith.constant 0 : i32
    return %arg0, %c0_i32 : i32, i32
  }
  func.func @transform_1(%arg0: i32) -> (i32, i32) {
    %c0_i32 = arith.constant 0 : i32
    %c0_i32_0 = arith.constant 0 : i32
    return %arg0, %c0_i32 : i32, i32
  }
  func.func @transform_2(%arg0: i32) -> (i32, i32) {
    %c0_i32 = arith.constant 0 : i32
    %c0_i32_0 = arith.constant 0 : i32
    %c0_i32_1 = arith.constant 0 : i32
    return %c0_i32, %c0_i32_0 : i32, i32
  }
  func.func @transform_3(%arg0: i32) -> (i32, i32, i32) {
    %c0_i32 = arith.constant 0 : i32
    %c0_i32_0 = arith.constant 0 : i32
    %c0_i32_1 = arith.constant 0 : i32
    %c0_i32_2 = arith.constant 0 : i32
    return %c0_i32, %c0_i32_0, %c0_i32_1 : i32, i32, i32
  }
  func.func @transform_4(%arg0: i32) -> (i32, i32, i32) {
    %c0_i32 = arith.constant 0 : i32
    %c0_i32_0 = arith.constant 0 : i32
    %c0_i32_1 = arith.constant 0 : i32
    %c0_i32_2 = arith.constant 0 : i32
    return %c0_i32, %c0_i32_0, %c0_i32_1 : i32, i32, i32
  }
  func.func @transform_5(%arg0: i32) -> (i32, i32, i32) {
    %c0_i32 = arith.constant 0 : i32
    %c0_i32_0 = arith.constant 0 : i32
    %c0_i32_1 = arith.constant 0 : i32
    %c0_i32_2 = arith.constant 0 : i32
    return %c0_i32, %c0_i32_0, %c0_i32_1 : i32, i32, i32
  }
  func.func @transform_6(%arg0: i32) -> (i32, i32, i32) {
    %c0_i32 = arith.constant 0 : i32
    %c0_i32_0 = arith.constant 0 : i32
    %c0_i32_1 = arith.constant 0 : i32
    %c0_i32_2 = arith.constant 0 : i32
    return %c0_i32, %c0_i32_0, %c0_i32_1 : i32, i32, i32
  }
  func.func @transform_7(%arg0: i32) -> (i32, i32, i32) {
    %c0_i32 = arith.constant 0 : i32
    %c0_i32_0 = arith.constant 0 : i32
    %c0_i32_1 = arith.constant 0 : i32
    %c0_i32_2 = arith.constant 0 : i32
    return %c0_i32, %c0_i32_0, %c0_i32_1 : i32, i32, i32
  }
  func.func @transform_8(%arg0: i32) -> (i32, i32, i32) {
    %c0_i32 = arith.constant 0 : i32
    %c0_i32_0 = arith.constant 0 : i32
    %c0_i32_1 = arith.constant 0 : i32
    %c0_i32_2 = arith.constant 0 : i32
    return %c0_i32, %c0_i32_0, %c0_i32_1 : i32, i32, i32
  }
  func.func @transform_9(%arg0: i32) -> (i32, i32) {
    %c0_i32 = arith.constant 0 : i32
    %c0_i32_0 = arith.constant 0 : i32
    %c0_i32_1 = arith.constant 0 : i32
    return %c0_i32, %c0_i32_0 : i32, i32
  }
  func.func @transform_10(%arg0: i32) -> (i32, i32) {
    %c0_i32 = arith.constant 0 : i32
    %c0_i32_0 = arith.constant 0 : i32
    return %arg0, %c0_i32 : i32, i32
  }
  func.func @transform_11(%arg0: i32) -> (i32, i32) {
    %c0_i32 = arith.constant 0 : i32
    %c0_i32_0 = arith.constant 0 : i32
    return %arg0, %c0_i32 : i32, i32
  }
}

</mosaic_0001>

<llo_original>
// kernel: tpu_custom_call.1
$region0: #{tpu_custom_call.1}
  #allocation0 [shape = 'u32[]', space=smem, size = 0x4, offset = 0x4, fixed_abs, tag = 'smem constant byte address 0x4 - core index']
  #allocation1 [shape = 'u32[144,128]{1,0:T(1,128)}', space=vmem, size = 0x12000, scoped, tag = 'internal scratch']
  %s0 = inlined_call_operand.vmem [shape: bf16[64,11], index: 0, kind: input, shape index: {}]
  %s1 = inlined_call_operand.vmem [shape: f32[64,16], index: 1, kind: input, shape index: {}]
  %s2 = inlined_call_operand.hbm [shape: bf16[11,256], index: 2, kind: input, shape index: {}]
  %s3 = inlined_call_operand.hbm [shape: bf16[4,8,64], index: 3, kind: input, shape index: {}]
  %s4 = inlined_call_operand.vmem [shape: bf16[8,64,64], index: 4, kind: input, shape index: {}]
  %s5 = inlined_call_operand.hbm [shape: f32[8,1,64], index: 5, kind: input, shape index: {}]
  %s6 = inlined_call_operand.vmem [shape: bf16[4,64,16], index: 6, kind: input, shape index: {}]
  %s7 = inlined_call_operand.hbm [shape: f32[4,1,16], index: 7, kind: input, shape index: {}]
  %s8 = inlined_call_operand.hbm [shape: bf16[2,16,16], index: 8, kind: input, shape index: {}]
  %s9 = inlined_call_operand.vmem [shape: f32[3,16], index: 9, kind: input, shape index: {}]
  %s10 = inlined_call_operand.vmem [shape: f32[64,16], index: 10, kind: output, shape index: {0}]
  %s11 = inlined_call_operand.vmem [shape: f32[64,1], index: 11, kind: output, shape index: {1}]
  %12 = xla_tuple %s10, %s11
  %s13 = sld [smem:[#allocation0]]
  $region78: #{tpu_custom_call.1} parent=0
    _
  %s15 = ssub.s32 1, %s13
  %s16 = scalar_select 0, %s15, %s13
  $region1: #{tpu_custom_call.1} parent=0
    #allocation2 [shape = 'u8[8192]{0}', space=vmem, size = 0x2000, scoped, tag = 'input window, operand 2, single buffered']
    #allocation3 [shape = 's32[1]{0}', space=sflag, size = 0x4, scoped, tag = 'scoped memory for tpu_custom_call.1']
    #allocation4 [shape = 'u8[8192]{0}', space=vmem, size = 0x2000, scoped, tag = 'input window, operand 3, single buffered']
    #allocation5 [shape = 's32[1]{0}', space=sflag, size = 0x4, scoped, tag = 'scoped memory for tpu_custom_call.1']
    #allocation6 [shape = 'u8[4096]{0}', space=vmem, size = 0x1000, scoped, tag = 'input window, operand 5, single buffered']
    #allocation7 [shape = 'u8[2048]{0}', space=vmem, size = 0x800, scoped, tag = 'input window, operand 7, single buffered']
    #allocation8 [shape = 's32[1]{0}', space=sflag, size = 0x4, scoped, tag = 'scoped memory for tpu_custom_call.1']
    #allocation9 [shape = 'u8[8192]{0}', space=vmem, size = 0x2000, scoped, tag = 'input window, operand 8, single buffered']
    %17 = vsyncpa [#allocation3], 0
    %18 = vsyncpa [#allocation5], 0
    %19 = vsyncpa [#allocation8], 0
    // Predicated region
    $region2: #{tpu_custom_call.1} parent=1 // pred_check
      _
    $region3: #{tpu_custom_call.1} parent=1 // pred_check_branch
      %21 = sbr.rel (0) target = $region5
    $region4: #{tpu_custom_call.1} parent=1 // pred_region
      _
    $region5: #{tpu_custom_call.1} parent=1 // pred_fallthru
      _
    // Predicated region
    $region6: #{tpu_custom_call.1} parent=1 // pred_check
      _
    $region7: #{tpu_custom_call.1} parent=1 // pred_check_branch
      %23 = sbr.rel (0) target = $region9
    $region8: #{tpu_custom_call.1} parent=1 // pred_region
      _
    $region9: #{tpu_custom_call.1} parent=1 // pred_fallthru
      _
    // Predicated region
    $region10: #{tpu_custom_call.1} parent=1 // pred_check
      _
    $region11: #{tpu_custom_call.1} parent=1 // pred_check_branch
      %25 = sbr.rel (0) target = $region13
    $region12: #{tpu_custom_call.1} parent=1 // pred_region
      %s27 = ssub.s32 256, 256
      %28 = vsyncadd [#allocation3], %s27
      %s29 = sshll.u32 [#allocation2], 4
      %s30 = int_to_ptr.vmem [resolvable:$true] %s29
      %35 = dma.hbm_to_vmem [thread:$0]  %s2, 256, %s30, [#allocation3], 128, 128, 8
    $region13: #{tpu_custom_call.1} parent=1 // pred_fallthru
      _
    // Predicated region
    $region14: #{tpu_custom_call.1} parent=1 // pred_check
      _
    $region15: #{tpu_custom_call.1} parent=1 // pred_check_branch
      %37 = sbr.rel (0) target = $region17
    $region16: #{tpu_custom_call.1} parent=1 // pred_region
      %s39 = ssub.s32 256, 256
      %40 = vsyncadd [#allocation5], %s39
      %s41 = sshll.u32 [#allocation4], 4
      %s42 = int_to_ptr.vmem [resolvable:$true] %s41
      %47 = dma.hbm_to_vmem [thread:$0]  %s3, 256, %s42, [#allocation5], 64, 64, 4
    $region17: #{tpu_custom_call.1} parent=1 // pred_fallthru
      _
    // Predicated region
    $region18: #{tpu_custom_call.1} parent=1 // pred_check
      _
    $region19: #{tpu_custom_call.1} parent=1 // pred_check_branch
      %49 = sbr.rel (0) target = $region21
    $region20: #{tpu_custom_call.1} parent=1 // pred_region
      _
    $region21: #{tpu_custom_call.1} parent=1 // pred_fallthru
      _
    // Predicated region
    $region22: #{tpu_custom_call.1} parent=1 // pred_check
      _
    $region23: #{tpu_custom_call.1} parent=1 // pred_check_branch
      %51 = sbr.rel (0) target = $region25
    $region24: #{tpu_custom_call.1} parent=1 // pred_region
      %s53 = ssub.s32 128, 128
      %54 = vsyncadd [#allocation5], %s53
      %s55 = sshll.u32 [#allocation6], 4
      %s56 = int_to_ptr.vmem [resolvable:$true] %s55
      %61 = dma.hbm_to_vmem [thread:$0]  %s5, 128, %s56, [#allocation5], 16, 16, 1
    $region25: #{tpu_custom_call.1} parent=1 // pred_fallthru
      _
    // Predicated region
    $region26: #{tpu_custom_call.1} parent=1 // pred_check
      _
    $region27: #{tpu_custom_call.1} parent=1 // pred_check_branch
      %63 = sbr.rel (0) target = $region29
    $region28: #{tpu_custom_call.1} parent=1 // pred_region
      _
    $region29: #{tpu_custom_call.1} parent=1 // pred_fallthru
      _
    // Predicated region
    $region30: #{tpu_custom_call.1} parent=1 // pred_check
      _
    $region31: #{tpu_custom_call.1} parent=1 // pred_check_branch
      %65 = sbr.rel (0) target = $region33
    $region32: #{tpu_custom_call.1} parent=1 // pred_region
      %s67 = ssub.s32 64, 64
      %68 = vsyncadd [#allocation8], %s67
      %s69 = sshll.u32 [#allocation7], 4
      %s70 = int_to_ptr.vmem [resolvable:$true] %s69
      %75 = dma.hbm_to_vmem [thread:$0]  %s7, 64, %s70, [#allocation8], 16, 16, 1
    $region33: #{tpu_custom_call.1} parent=1 // pred_fallthru
      _
    // Predicated region
    $region34: #{tpu_custom_call.1} parent=1 // pred_check
      _
    $region35: #{tpu_custom_call.1} parent=1 // pred_check_branch
      %77 = sbr.rel (0) target = $region37
    $region36: #{tpu_custom_call.1} parent=1 // pred_region
      %s79 = ssub.s32 256, 256
      %80 = vsyncadd [#allocation8], %s79
      %s81 = sshll.u32 [#allocation9], 4
      %s82 = int_to_ptr.vmem [resolvable:$true] %s81
      %87 = dma.hbm_to_vmem [thread:$0]  %s8, 256, %s82, [#allocation8], 64, 64, 4
    $region37: #{tpu_custom_call.1} parent=1 // pred_fallthru
      _
    // Predicated region
    $region38: #{tpu_custom_call.1} parent=1 // pred_check
      _
    $region39: #{tpu_custom_call.1} parent=1 // pred_check_branch
      %89 = sbr.rel (0) target = $region41
    $region40: #{tpu_custom_call.1} parent=1 // pred_region
      _
    $region41: #{tpu_custom_call.1} parent=1 // pred_fallthru
      _
    // Predicated region
    $region42: #{tpu_custom_call.1} parent=1 // pred_check
      _
    $region43: #{tpu_custom_call.1} parent=1 // pred_check_branch
      %91 = sbr.rel (0) target = $region45
    $region44: #{tpu_custom_call.1} parent=1 // pred_region
      %92 = dma.done [#allocation3], 256
    $region45: #{tpu_custom_call.1} parent=1 // pred_fallthru
      _
    // Predicated region
    $region46: #{tpu_custom_call.1} parent=1 // pred_check
      _
    $region47: #{tpu_custom_call.1} parent=1 // pred_check_branch
      %94 = sbr.rel (0) target = $region49
    $region48: #{tpu_custom_call.1} parent=1 // pred_region
      %95 = dma.done [#allocation5], 256
    $region49: #{tpu_custom_call.1} parent=1 // pred_fallthru
      _
    // Predicated region
    $region50: #{tpu_custom_call.1} parent=1 // pred_check
      _
    $region51: #{tpu_custom_call.1} parent=1 // pred_check_branch
      %97 = sbr.rel (0) target = $region53
    $region52: #{tpu_custom_call.1} parent=1 // pred_region
      %98 = dma.done [#allocation5], 128
    $region53: #{tpu_custom_call.1} parent=1 // pred_fallthru
      _
    // Predicated region
    $region54: #{tpu_custom_call.1} parent=1 // pred_check
      _
    $region55: #{tpu_custom_call.1} parent=1 // pred_check_branch
      %100 = sbr.rel (0) target = $region57
    $region56: #{tpu_custom_call.1} parent=1 // pred_region
      %101 = dma.done [#allocation8], 64
    $region57: #{tpu_custom_call.1} parent=1 // pred_fallthru
      _
    // Predicated region
    $region58: #{tpu_custom_call.1} parent=1 // pred_check
      _
    $region59: #{tpu_custom_call.1} parent=1 // pred_check_branch
      %103 = sbr.rel (0) target = $region61
    $region60: #{tpu_custom_call.1} parent=1 // pred_region
      %104 = dma.done [#allocation8], 256
    $region61: #{tpu_custom_call.1} parent=1 // pred_fallthru
      _
    %v106 = vld [vmem:[%s0] sm:$0xf]
    %v107 = vld [vmem:[%s0 + $0x4] sm:$0xf]
    %v108 = vld [vmem:[%s0 + $0x8] sm:$0xf]
    %v109 = vld [vmem:[%s0 + $0xc] sm:$0xf]
    %v110 = vld [vmem:[%s0 + $0x10] sm:$0xf]
    %v111 = vld [vmem:[%s0 + $0x14] sm:$0xf]
    %v112 = vld [vmem:[%s0 + $0x18] sm:$0xf]
    %v113 = vld [vmem:[%s0 + $0x1c] sm:$0xf]
    %v114 = vld [vmem:[#allocation2] sm:$0xff]
    %v115 = vld [vmem:[#allocation2 + $0x8] sm:$0x33]
    %v124 = vunpack.c.l.b16 %v106
    %v125 = vunpack.c.l.b16 %v107
    %v126 = vunpack.c.l.b16 %v108
    %v127 = vunpack.c.l.b16 %v109
    %v128 = vunpack.c.l.b16 %v110
    %v129 = vunpack.c.l.b16 %v111
    %v130 = vunpack.c.l.b16 %v112
    %v131 = vunpack.c.l.b16 %v113
    %v132 = vpack.c.b16 %v125, %v124
    %v133 = vpack.c.b16 %v127, %v126
    %v134 = vpack.c.b16 %v129, %v128
    %v135 = vpack.c.b16 %v131, %v130
    %v138 = vunpack.c.l.b16 %v114
    %v139 = vunpack.c.h.b16 %v114
    %v140 = vunpack.c.l.b16 %v115
    %v141 = vunpack.c.h.b16 %v115
    %v142 = vpack.c.b16 %v140, %v138
    %v143 = vpack.c.b16 %v141, %v139
    %vm144 = vcmask 89088
    %v146 = vsel %vm144, %v132, 0
    %v149 = vsel %vm144, %v133, 0
    %v152 = vsel %vm144, %v134, 0
    %v155 = vsel %vm144, %v135, 0
    %vm157 = vcmask 1044480
    %vm158 = vcmask 1045504
    %v159 = vsel %vm157, 4294967295, 65535
    %v160 = vsel %vm158, %v159, 0
    %v162 = vand.u32 %v142, %v160
    %v165 = vand.u32 %v143, %v160
    %167 = vmatprep.subr.bf16.mxu0 0
    %168 = vmatpush1.bf16.msra.mxu0 0
    %169 = vmatprep.subr.bf16.mxu0 0
    %170 = vmatpush1.bf16.msra.mxu0 0
    %171 = vmatprep.subr.bf16.mxu0 0
    %172 = vmatpush1.bf16.msra.mxu0 0
    %173 = vmatprep.subr.bf16.mxu0 0
    %174 = vmatpush1.bf16.msra.mxu0 0
    %175 = vmatprep.subr.bf16.mxu0 0
    %176 = vmatpush1.bf16.msra.mxu0 0
    %177 = vmatprep.subr.bf16.mxu0 0
    %178 = vmatpush1.bf16.msra.mxu0 0
    %179 = vmatprep.subr.bf16.mxu0 0
    %180 = vmatpush1.bf16.msra.mxu0 0
    %181 = vmatprep.subr.bf16.mxu0 %v165
    %182 = vmatpush1.bf16.msra.mxu0 %v162
    %183 = vmatprep.subr.bf16.mxu0 0
    %184 = vmatpush2.bf16.msra.mxu0 0
    %185 = vmatprep.subr.bf16.mxu0 0
    %186 = vmatpush2.bf16.msra.mxu0 0
    %187 = vmatprep.subr.bf16.mxu0 0
    %188 = vmatpush2.bf16.msra.mxu0 0
    %189 = vmatprep.subr.bf16.mxu0 0
    %190 = vmatpush2.bf16.msra.mxu0 0
    %191 = vmatprep.subr.bf16.mxu0 0
    %192 = vmatpush2.bf16.msra.mxu0 0
    %193 = vmatprep.subr.bf16.mxu0 0
    %194 = vmatpush2.bf16.msra.mxu0 0
    %195 = vmatprep.subr.bf16.mxu0 0
    %196 = vmatpush2.bf16.msra.mxu0 0
    %197 = vmatprep.subr.bf16.mxu0 0
    %198 = vmatpush2.bf16.msra.mxu0 0
    %199 = vmatprep.mubr.bf16.mxu0 0
    %200 = vmatmul.mubr.bf16.gmra.mxu0 %v146
    %v201 = vpop.f32.mrf.mxu0
    %v202 = vadd.f32 0.0, %v201
    %v203 = vpop.f32.mrf.mxu0
    %v204 = vadd.f32 0.0, %v203
    %v205 = vpop.f32.mrf.mxu0
    %v206 = vadd.f32 0.0, %v205
    %v207 = vpop.f32.mrf.mxu0
    %v208 = vadd.f32 0.0, %v207
    %209 = vmatprep.mubr.bf16.mxu0 0
    %210 = vmatmul.mubr.bf16.gmra.mxu0 %v149
    %v211 = vpop.f32.mrf.mxu0
    %v212 = vadd.f32 0.0, %v211
    %v213 = vpop.f32.mrf.mxu0
    %v214 = vadd.f32 0.0, %v213
    %v215 = vpop.f32.mrf.mxu0
    %v216 = vadd.f32 0.0, %v215
    %v217 = vpop.f32.mrf.mxu0
    %v218 = vadd.f32 0.0, %v217
    %219 = vmatprep.mubr.bf16.mxu0 0
    %220 = vmatmul.mubr.bf16.gmra.mxu0 %v152
    %v221 = vpop.f32.mrf.mxu0
    %v222 = vadd.f32 0.0, %v221
    %v223 = vpop.f32.mrf.mxu0
    %v224 = vadd.f32 0.0, %v223
    %v225 = vpop.f32.mrf.mxu0
    %v226 = vadd.f32 0.0, %v225
    %v227 = vpop.f32.mrf.mxu0
    %v228 = vadd.f32 0.0, %v227
    %229 = vmatprep.mubr.bf16.mxu0 0
    %230 = vmatmul.mubr.bf16.gmra.mxu0 %v155
    %v231 = vpop.f32.mrf.mxu0
    %v232 = vadd.f32 0.0, %v231
    %v233 = vpop.f32.mrf.mxu0
    %v234 = vadd.f32 0.0, %v233
    %v235 = vpop.f32.mrf.mxu0
    %v236 = vadd.f32 0.0, %v235
    %v237 = vpop.f32.mrf.mxu0
    %v238 = vadd.f32 0.0, %v237
    %239 = vdwg.mxu0
    %v240 = vld [vmem:[%s1] sm:$0xff]
    %v241 = vld [vmem:[%s1 + $0x8] sm:$0xff]
    %v242 = vld [vmem:[%s1 + $0x10] sm:$0xff]
    %v243 = vld [vmem:[%s1 + $0x18] sm:$0xff]
    %v244 = vld [vmem:[%s1 + $0x20] sm:$0xff]
    %v245 = vld [vmem:[%s1 + $0x28] sm:$0xff]
    %v246 = vld [vmem:[%s1 + $0x30] sm:$0xff]
    %v247 = vld [vmem:[%s1 + $0x38] sm:$0xff]
    %v248 = vld [vmem:[%s9 + $0x1] sm:$0x1]
    %v249 = vld [vmem:[%s9] sm:$0x1]
    %v250 = vlaneseq
    %v251 = vshrl.u32 %v250, 7
    %v252 = vsub.s32 0, %v251
    %v253 = vrot.slane %v249, %v252
    %v254 = vadd.f32 %v240, %v253
    %v255 = vadd.f32 %v241, %v253
    %v256 = vadd.f32 %v242, %v253
    %v257 = vadd.f32 %v243, %v253
    %v258 = vadd.f32 %v244, %v253
    %v259 = vadd.f32 %v245, %v253
    %v260 = vadd.f32 %v246, %v253
    %v261 = vadd.f32 %v247, %v253
    %v262 = vlaneseq
    %v263 = vshrl.u32 %v262, 7
    %v264 = vsub.s32 0, %v263
    %v265 = vrot.slane %v248, %v264
    %v266 = vmul.f32 %v265, %v254
    %v267 = vmul.f32 %v265, %v255
    %v268 = vmul.f32 %v265, %v256
    %v269 = vmul.f32 %v265, %v257
    %v270 = vmul.f32 %v265, %v258
    %v271 = vmul.f32 %v265, %v259
    %v272 = vmul.f32 %v265, %v260
    %v273 = vmul.f32 %v265, %v261
    %v274 = vpack.c.bf16 %v267, %v266
    %v275 = vpack.c.bf16 %v269, %v268
    %v276 = vpack.c.bf16 %v271, %v270
    %v277 = vpack.c.bf16 %v273, %v272
    %v278 = vld [vmem:[#allocation4] sm:$0xf]
    %vm279 = vcmask 64512
    %v281 = vsel %vm279, %v274, 0
    %v284 = vsel %vm279, %v275, 0
    %v287 = vsel %vm279, %v276, 0
    %v290 = vsel %vm279, %v277, 0
    %vm292 = vcmask 1043456
    %v294 = vsel %vm292, %v278, 0
    %296 = vmatprep.subr.bf16.mxu0 0
    %297 = vmatpush1.bf16.msra.mxu0 0
    %298 = vmatprep.subr.bf16.mxu0 0
    %299 = vmatpush1.bf16.msra.mxu0 0
    %300 = vmatprep.subr.bf16.mxu0 0
    %301 = vmatpush1.bf16.msra.mxu0 0
    %302 = vmatprep.subr.bf16.mxu0 0
    %303 = vmatpush1.bf16.msra.mxu0 0
    %304 = vmatprep.subr.bf16.mxu0 0
    %305 = vmatpush1.bf16.msra.mxu0 0
    %306 = vmatprep.subr.bf16.mxu0 0
    %307 = vmatpush1.bf16.msra.mxu0 0
    %308 = vmatprep.subr.bf16.mxu0 0
    %309 = vmatpush1.bf16.msra.mxu0 0
    %310 = vmatprep.subr.bf16.mxu0 0
    %311 = vmatpush1.bf16.msra.mxu0 %v294
    %312 = vmatprep.subr.bf16.mxu0 0
    %313 = vmatpush2.bf16.msra.mxu0 0
    %314 = vmatprep.subr.bf16.mxu0 0
    %315 = vmatpush2.bf16.msra.mxu0 0
    %316 = vmatprep.subr.bf16.mxu0 0
    %317 = vmatpush2.bf16.msra.mxu0 0
    %318 = vmatprep.subr.bf16.mxu0 0
    %319 = vmatpush2.bf16.msra.mxu0 0
    %320 = vmatprep.subr.bf16.mxu0 0
    %321 = vmatpush2.bf16.msra.mxu0 0
    %322 = vmatprep.subr.bf16.mxu0 0
    %323 = vmatpush2.bf16.msra.mxu0 0
    %324 = vmatprep.subr.bf16.mxu0 0
    %325 = vmatpush2.bf16.msra.mxu0 0
    %326 = vmatprep.subr.bf16.mxu0 0
    %327 = vmatpush2.bf16.msra.mxu0 0
    %328 = vmatprep.mubr.bf16.mxu0 0
    %329 = vmatmul.mubr.bf16.gmra.mxu0 %v281
    %v330 = vpop.f32.mrf.mxu0
    %v331 = vadd.f32 %v202, %v330
    %v332 = vpop.f32.mrf.mxu0
    %v333 = vpop.f32.mrf.mxu0
    %v334 = vadd.f32 %v206, %v333
    %v335 = vpop.f32.mrf.mxu0
    %336 = vmatprep.mubr.bf16.mxu0 0
    %337 = vmatmul.mubr.bf16.gmra.mxu0 %v284
    %v338 = vpop.f32.mrf.mxu0
    %v339 = vadd.f32 %v212, %v338
    %v340 = vpop.f32.mrf.mxu0
    %v341 = vpop.f32.mrf.mxu0
    %v342 = vadd.f32 %v216, %v341
    %v343 = vpop.f32.mrf.mxu0
    %344 = vmatprep.mubr.bf16.mxu0 0
    %345 = vmatmul.mubr.bf16.gmra.mxu0 %v287
    %v346 = vpop.f32.mrf.mxu0
    %v347 = vadd.f32 %v222, %v346
    %v348 = vpop.f32.mrf.mxu0
    %v349 = vpop.f32.mrf.mxu0
    %v350 = vadd.f32 %v226, %v349
    %v351 = vpop.f32.mrf.mxu0
    %352 = vmatprep.mubr.bf16.mxu0 0
    %353 = vmatmul.mubr.bf16.gmra.mxu0 %v290
    %v354 = vpop.f32.mrf.mxu0
    %v355 = vadd.f32 %v232, %v354
    %v356 = vpop.f32.mrf.mxu0
    %v357 = vpop.f32.mrf.mxu0
    %v358 = vadd.f32 %v236, %v357
    %v359 = vpop.f32.mrf.mxu0
    %360 = vdwg.mxu0
    %vm361 = vcmp.gt.f32.partialorder %v331, 0.0
    %vm362 = vcmp.gt.f32.partialorder %v334, 0.0
    %vm363 = vcmp.gt.f32.partialorder %v339, 0.0
    %vm364 = vcmp.gt.f32.partialorder %v342, 0.0
    %vm365 = vcmp.gt.f32.partialorder %v347, 0.0
    %vm366 = vcmp.gt.f32.partialorder %v350, 0.0
    %vm367 = vcmp.gt.f32.partialorder %v355, 0.0
    %vm368 = vcmp.gt.f32.partialorder %v358, 0.0
    %v369 = vmul.f32 %v331, 0.01
    %v370 = vmul.f32 %v334, 0.01
    %v371 = vmul.f32 %v339, 0.01
    %v372 = vmul.f32 %v342, 0.01
    %v373 = vmul.f32 %v347, 0.01
    %v374 = vmul.f32 %v350, 0.01
    %v375 = vmul.f32 %v355, 0.01
    %v376 = vmul.f32 %v358, 0.01
    %v377 = vsel %vm361, %v331, %v369
    %v378 = vsel %vm362, %v334, %v370
    %v379 = vsel %vm363, %v339, %v371
    %v380 = vsel %vm364, %v342, %v372
    %v381 = vsel %vm365, %v347, %v373
    %v382 = vsel %vm366, %v350, %v374
    %v383 = vsel %vm367, %v355, %v375
    %v384 = vsel %vm368, %v358, %v376
    %v385 = vpack.c.bf16 %v378, %v377
    %v386 = vpack.c.bf16 %v380, %v379
    %v387 = vpack.c.bf16 %v382, %v381
    %v388 = vpack.c.bf16 %v384, %v383
    %v389 = vld [vmem:[%s4] sm:$0xf]
    %v390 = vld [vmem:[%s4 + $0x4] sm:$0xf]
    %v391 = vld [vmem:[%s4 + $0x8] sm:$0xf]
    %v392 = vld [vmem:[%s4 + $0xc] sm:$0xf]
    %v393 = vld [vmem:[%s4 + $0x10] sm:$0xf]
    %v394 = vld [vmem:[%s4 + $0x14] sm:$0xf]
    %v395 = vld [vmem:[%s4 + $0x18] sm:$0xf]
    %v396 = vld [vmem:[%s4 + $0x1c] sm:$0xf]
    %v397 = vld [vmem:[#allocation6] sm:$0x1]
    %v399 = vlaneseq
    %v400 = vshrl.u32 %v399, 7
    %v401 = vsub.s32 0, %v400
    %v402 = vrot.slane %v397, %v401
    %v412 = vunpack.c.l.b16 %v389
    %v413 = vunpack.c.l.b16 %v390
    %v414 = vunpack.c.l.b16 %v391
    %v415 = vunpack.c.l.b16 %v392
    %v416 = vunpack.c.l.b16 %v393
    %v417 = vunpack.c.l.b16 %v394
    %v418 = vunpack.c.l.b16 %v395
    %v419 = vunpack.c.l.b16 %v396
    %v420 = vpack.c.b16 %v413, %v412
    %v421 = vpack.c.b16 %v415, %v414
    %v422 = vpack.c.b16 %v417, %v416
    %v423 = vpack.c.b16 %v419, %v418
    %vm428 = vcmask 523264
    %v430 = vsel %vm428, %v385, 0
    %v433 = vsel %vm428, %v386, 0
    %v436 = vsel %vm428, %v387, 0
    %v439 = vsel %vm428, %v388, 0
    %441 = vmatprep.subr.bf16.mxu0 0
    %442 = vmatpush1.bf16.msra.mxu0 0
    %443 = vmatprep.subr.bf16.mxu0 0
    %444 = vmatpush1.bf16.msra.mxu0 0
    %445 = vmatprep.subr.bf16.mxu0 0
    %446 = vmatpush1.bf16.msra.mxu0 0
    %447 = vmatprep.subr.bf16.mxu0 0
    %448 = vmatpush1.bf16.msra.mxu0 0
    %449 = vmatprep.subr.bf16.mxu0 0
    %450 = vmatpush1.bf16.msra.mxu0 %v423
    %451 = vmatprep.subr.bf16.mxu0 0
    %452 = vmatpush1.bf16.msra.mxu0 %v422
    %453 = vmatprep.subr.bf16.mxu0 0
    %454 = vmatpush1.bf16.msra.mxu0 %v421
    %455 = vmatprep.subr.bf16.mxu0 0
    %456 = vmatpush1.bf16.msra.mxu0 %v420
    %457 = vmatprep.subr.bf16.mxu0 0
    %458 = vmatpush2.bf16.msra.mxu0 0
    %459 = vmatprep.subr.bf16.mxu0 0
    %460 = vmatpush2.bf16.msra.mxu0 0
    %461 = vmatprep.subr.bf16.mxu0 0
    %462 = vmatpush2.bf16.msra.mxu0 0
    %463 = vmatprep.subr.bf16.mxu0 0
    %464 = vmatpush2.bf16.msra.mxu0 0
    %465 = vmatprep.subr.bf16.mxu0 0
    %466 = vmatpush2.bf16.msra.mxu0 0
    %467 = vmatprep.subr.bf16.mxu0 0
    %468 = vmatpush2.bf16.msra.mxu0 0
    %469 = vmatprep.subr.bf16.mxu0 0
    %470 = vmatpush2.bf16.msra.mxu0 0
    %471 = vmatprep.subr.bf16.mxu0 0
    %472 = vmatpush2.bf16.msra.mxu0 0
    %473 = vmatprep.mubr.bf16.mxu0 0
    %474 = vmatmul.mubr.bf16.gmra.mxu0 %v430
    %v475 = vpop.f32.mrf.mxu0
    %v476 = vadd.f32 %v402, %v475
    %v477 = vpop.f32.mrf.mxu0
    %v478 = vpop.f32.mrf.mxu0
    %v479 = vadd.f32 %v402, %v478
    %v480 = vpop.f32.mrf.mxu0
    %481 = vmatprep.mubr.bf16.mxu0 0
    %482 = vmatmul.mubr.bf16.gmra.mxu0 %v433
    %v483 = vpop.f32.mrf.mxu0
    %v484 = vadd.f32 %v402, %v483
    %v485 = vpop.f32.mrf.mxu0
    %v486 = vpop.f32.mrf.mxu0
    %v487 = vadd.f32 %v402, %v486
    %v488 = vpop.f32.mrf.mxu0
    %489 = vmatprep.mubr.bf16.mxu0 0
    %490 = vmatmul.mubr.bf16.gmra.mxu0 %v436
    %v491 = vpop.f32.mrf.mxu0
    %v492 = vadd.f32 %v402, %v491
    %v493 = vpop.f32.mrf.mxu0
    %v494 = vpop.f32.mrf.mxu0
    %v495 = vadd.f32 %v402, %v494
    %v496 = vpop.f32.mrf.mxu0
    %497 = vmatprep.mubr.bf16.mxu0 0
    %498 = vmatmul.mubr.bf16.gmra.mxu0 %v439
    %v499 = vpop.f32.mrf.mxu0
    %v500 = vadd.f32 %v402, %v499
    %v501 = vpop.f32.mrf.mxu0
    %v502 = vpop.f32.mrf.mxu0
    %v503 = vadd.f32 %v402, %v502
    %v504 = vpop.f32.mrf.mxu0
    %505 = vdwg.mxu0
    %vm506 = vcmp.gt.f32.partialorder %v476, 0.0
    %vm507 = vcmp.gt.f32.partialorder %v479, 0.0
    %vm508 = vcmp.gt.f32.partialorder %v484, 0.0
    %vm509 = vcmp.gt.f32.partialorder %v487, 0.0
    %vm510 = vcmp.gt.f32.partialorder %v492, 0.0
    %vm511 = vcmp.gt.f32.partialorder %v495, 0.0
    %vm512 = vcmp.gt.f32.partialorder %v500, 0.0
    %vm513 = vcmp.gt.f32.partialorder %v503, 0.0
    %v514 = vmul.f32 %v476, 0.01
    %v515 = vmul.f32 %v479, 0.01
    %v516 = vmul.f32 %v484, 0.01
    %v517 = vmul.f32 %v487, 0.01
    %v518 = vmul.f32 %v492, 0.01
    %v519 = vmul.f32 %v495, 0.01
    %v520 = vmul.f32 %v500, 0.01
    %v521 = vmul.f32 %v503, 0.01
    %v522 = vsel %vm506, %v476, %v514
    %v523 = vsel %vm507, %v479, %v515
    %v524 = vsel %vm508, %v484, %v516
    %v525 = vsel %vm509, %v487, %v517
    %v526 = vsel %vm510, %v492, %v518
    %v527 = vsel %vm511, %v495, %v519
    %v528 = vsel %vm512, %v500, %v520
    %v529 = vsel %vm513, %v503, %v521
    %v530 = vpack.c.bf16 %v523, %v522
    %v531 = vpack.c.bf16 %v525, %v524
    %v532 = vpack.c.bf16 %v527, %v526
    %v533 = vpack.c.bf16 %v529, %v528
    %s534 = scalar_lea.vmem %s4, 32
    %v535 = vld [vmem:[%s534] sm:$0xf]
    %v536 = vld [vmem:[%s534 + $0x4] sm:$0xf]
    %v537 = vld [vmem:[%s534 + $0x8] sm:$0xf]
    %v538 = vld [vmem:[%s534 + $0xc] sm:$0xf]
    %v539 = vld [vmem:[%s534 + $0x10] sm:$0xf]
    %v540 = vld [vmem:[%s534 + $0x14] sm:$0xf]
    %v541 = vld [vmem:[%s534 + $0x18] sm:$0xf]
    %v542 = vld [vmem:[%s534 + $0x1c] sm:$0xf]
    %s543 = scalar_lea.vmem [#allocation6], 1
    %v544 = vld [vmem:[%s543] sm:$0x1]
    %v546 = vlaneseq
    %v547 = vshrl.u32 %v546, 7
    %v548 = vsub.s32 0, %v547
    %v549 = vrot.slane %v544, %v548
    %v559 = vunpack.c.l.b16 %v535
    %v560 = vunpack.c.l.b16 %v536
    %v561 = vunpack.c.l.b16 %v537
    %v562 = vunpack.c.l.b16 %v538
    %v563 = vunpack.c.l.b16 %v539
    %v564 = vunpack.c.l.b16 %v540
    %v565 = vunpack.c.l.b16 %v541
    %v566 = vunpack.c.l.b16 %v542
    %v567 = vpack.c.b16 %v560, %v559
    %v568 = vpack.c.b16 %v562, %v561
    %v569 = vpack.c.b16 %v564, %v563
    %v570 = vpack.c.b16 %v566, %v565
    %v576 = vsel %vm428, %v530, 0
    %v579 = vsel %vm428, %v531, 0
    %v582 = vsel %vm428, %v532, 0
    %v585 = vsel %vm428, %v533, 0
    %587 = vmatprep.subr.bf16.mxu0 0
    %588 = vmatpush1.bf16.msra.mxu0 0
    %589 = vmatprep.subr.bf16.mxu0 0
    %590 = vmatpush1.bf16.msra.mxu0 0
    %591 = vmatprep.subr.bf16.mxu0 0
    %592 = vmatpush1.bf16.msra.mxu0 0
    %593 = vmatprep.subr.bf16.mxu0 0
    %594 = vmatpush1.bf16.msra.mxu0 0
    %595 = vmatprep.subr.bf16.mxu0 0
    %596 = vmatpush1.bf16.msra.mxu0 %v570
    %597 = vmatprep.subr.bf16.mxu0 0
    %598 = vmatpush1.bf16.msra.mxu0 %v569
    %599 = vmatprep.subr.bf16.mxu0 0
    %600 = vmatpush1.bf16.msra.mxu0 %v568
    %601 = vmatprep.subr.bf16.mxu0 0
    %602 = vmatpush1.bf16.msra.mxu0 %v567
    %603 = vmatprep.subr.bf16.mxu0 0
    %604 = vmatpush2.bf16.msra.mxu0 0
    %605 = vmatprep.subr.bf16.mxu0 0
    %606 = vmatpush2.bf16.msra.mxu0 0
    %607 = vmatprep.subr.bf16.mxu0 0
    %608 = vmatpush2.bf16.msra.mxu0 0
    %609 = vmatprep.subr.bf16.mxu0 0
    %610 = vmatpush2.bf16.msra.mxu0 0
    %611 = vmatprep.subr.bf16.mxu0 0
    %612 = vmatpush2.bf16.msra.mxu0 0
    %613 = vmatprep.subr.bf16.mxu0 0
    %614 = vmatpush2.bf16.msra.mxu0 0
    %615 = vmatprep.subr.bf16.mxu0 0
    %616 = vmatpush2.bf16.msra.mxu0 0
    %617 = vmatprep.subr.bf16.mxu0 0
    %618 = vmatpush2.bf16.msra.mxu0 0
    %619 = vmatprep.mubr.bf16.mxu0 0
    %620 = vmatmul.mubr.bf16.gmra.mxu0 %v576
    %v621 = vpop.f32.mrf.mxu0
    %v622 = vadd.f32 %v549, %v621
    %v623 = vpop.f32.mrf.mxu0
    %v624 = vpop.f32.mrf.mxu0
    %v625 = vadd.f32 %v549, %v624
    %v626 = vpop.f32.mrf.mxu0
    %627 = vmatprep.mubr.bf16.mxu0 0
    %628 = vmatmul.mubr.bf16.gmra.mxu0 %v579
    %v629 = vpop.f32.mrf.mxu0
    %v630 = vadd.f32 %v549, %v629
    %v631 = vpop.f32.mrf.mxu0
    %v632 = vpop.f32.mrf.mxu0
    %v633 = vadd.f32 %v549, %v632
    %v634 = vpop.f32.mrf.mxu0
    %635 = vmatprep.mubr.bf16.mxu0 0
    %636 = vmatmul.mubr.bf16.gmra.mxu0 %v582
    %v637 = vpop.f32.mrf.mxu0
    %v638 = vadd.f32 %v549, %v637
    %v639 = vpop.f32.mrf.mxu0
    %v640 = vpop.f32.mrf.mxu0
    %v641 = vadd.f32 %v549, %v640
    %v642 = vpop.f32.mrf.mxu0
    %643 = vmatprep.mubr.bf16.mxu0 0
    %644 = vmatmul.mubr.bf16.gmra.mxu0 %v585
    %v645 = vpop.f32.mrf.mxu0
    %v646 = vadd.f32 %v549, %v645
    %v647 = vpop.f32.mrf.mxu0
    %v648 = vpop.f32.mrf.mxu0
    %v649 = vadd.f32 %v549, %v648
    %v650 = vpop.f32.mrf.mxu0
    %651 = vdwg.mxu0
    %vm652 = vcmp.gt.f32.partialorder %v622, 0.0
    %vm653 = vcmp.gt.f32.partialorder %v625, 0.0
    %vm654 = vcmp.gt.f32.partialorder %v630, 0.0
    %vm655 = vcmp.gt.f32.partialorder %v633, 0.0
    %vm656 = vcmp.gt.f32.partialorder %v638, 0.0
    %vm657 = vcmp.gt.f32.partialorder %v641, 0.0
    %vm658 = vcmp.gt.f32.partialorder %v646, 0.0
    %vm659 = vcmp.gt.f32.partialorder %v649, 0.0
    %v660 = vmul.f32 %v622, 0.01
    %v661 = vmul.f32 %v625, 0.01
    %v662 = vmul.f32 %v630, 0.01
    %v663 = vmul.f32 %v633, 0.01
    %v664 = vmul.f32 %v638, 0.01
    %v665 = vmul.f32 %v641, 0.01
    %v666 = vmul.f32 %v646, 0.01
    %v667 = vmul.f32 %v649, 0.01
    %v668 = vsel %vm652, %v622, %v660
    %v669 = vsel %vm653, %v625, %v661
    %v670 = vsel %vm654, %v630, %v662
    %v671 = vsel %vm655, %v633, %v663
    %v672 = vsel %vm656, %v638, %v664
    %v673 = vsel %vm657, %v641, %v665
    %v674 = vsel %vm658, %v646, %v666
    %v675 = vsel %vm659, %v649, %v667
    %v676 = vpack.c.bf16 %v669, %v668
    %v677 = vpack.c.bf16 %v671, %v670
    %v678 = vpack.c.bf16 %v673, %v672
    %v679 = vpack.c.bf16 %v675, %v674
    %v680 = vld [vmem:[%s6] sm:$0xf]
    %v681 = vld [vmem:[%s6 + $0x4] sm:$0xf]
    %v682 = vld [vmem:[%s6 + $0x8] sm:$0xf]
    %v683 = vld [vmem:[%s6 + $0xc] sm:$0xf]
    %v684 = vld [vmem:[%s6 + $0x10] sm:$0xf]
    %v685 = vld [vmem:[%s6 + $0x14] sm:$0xf]
    %v686 = vld [vmem:[%s6 + $0x18] sm:$0xf]
    %v687 = vld [vmem:[%s6 + $0x1c] sm:$0xf]
    %v688 = vld [vmem:[#allocation7] sm:$0x1]
    %v690 = vlaneseq
    %v691 = vshrl.u32 %v690, 7
    %v692 = vsub.s32 0, %v691
    %v693 = vrot.slane %v688, %v692
    %v703 = vunpack.c.l.b16 %v680
    %v704 = vunpack.c.l.b16 %v681
    %v705 = vunpack.c.l.b16 %v682
    %v706 = vunpack.c.l.b16 %v683
    %v707 = vunpack.c.l.b16 %v684
    %v708 = vunpack.c.l.b16 %v685
    %v709 = vunpack.c.l.b16 %v686
    %v710 = vunpack.c.l.b16 %v687
    %v711 = vpack.c.b16 %v704, %v703
    %v712 = vpack.c.b16 %v706, %v705
    %v713 = vpack.c.b16 %v708, %v707
    %v714 = vpack.c.b16 %v710, %v709
    %v720 = vsel %vm428, %v676, 0
    %v723 = vsel %vm428, %v677, 0
    %v726 = vsel %vm428, %v678, 0
    %v729 = vsel %vm428, %v679, 0
    %731 = vmatprep.subr.bf16.mxu0 0
    %732 = vmatpush1.bf16.msra.mxu0 0
    %733 = vmatprep.subr.bf16.mxu0 0
    %734 = vmatpush1.bf16.msra.mxu0 0
    %735 = vmatprep.subr.bf16.mxu0 0
    %736 = vmatpush1.bf16.msra.mxu0 0
    %737 = vmatprep.subr.bf16.mxu0 0
    %738 = vmatpush1.bf16.msra.mxu0 0
    %739 = vmatprep.subr.bf16.mxu0 0
    %740 = vmatpush1.bf16.msra.mxu0 %v714
    %741 = vmatprep.subr.bf16.mxu0 0
    %742 = vmatpush1.bf16.msra.mxu0 %v713
    %743 = vmatprep.subr.bf16.mxu0 0
    %744 = vmatpush1.bf16.msra.mxu0 %v712
    %745 = vmatprep.subr.bf16.mxu0 0
    %746 = vmatpush1.bf16.msra.mxu0 %v711
    %747 = vmatprep.subr.bf16.mxu0 0
    %748 = vmatpush2.bf16.msra.mxu0 0
    %749 = vmatprep.subr.bf16.mxu0 0
    %750 = vmatpush2.bf16.msra.mxu0 0
    %751 = vmatprep.subr.bf16.mxu0 0
    %752 = vmatpush2.bf16.msra.mxu0 0
    %753 = vmatprep.subr.bf16.mxu0 0
    %754 = vmatpush2.bf16.msra.mxu0 0
    %755 = vmatprep.subr.bf16.mxu0 0
    %756 = vmatpush2.bf16.msra.mxu0 0
    %757 = vmatprep.subr.bf16.mxu0 0
    %758 = vmatpush2.bf16.msra.mxu0 0
    %759 = vmatprep.subr.bf16.mxu0 0
    %760 = vmatpush2.bf16.msra.mxu0 0
    %761 = vmatprep.subr.bf16.mxu0 0
    %762 = vmatpush2.bf16.msra.mxu0 0
    %763 = vmatprep.mubr.bf16.mxu0 0
    %764 = vmatmul.mubr.bf16.gmra.mxu0 %v720
    %v765 = vpop.f32.mrf.mxu0
    %v766 = vadd.f32 %v693, %v765
    %v767 = vpop.f32.mrf.mxu0
    %v768 = vpop.f32.mrf.mxu0
    %v769 = vadd.f32 %v693, %v768
    %v770 = vpop.f32.mrf.mxu0
    %771 = vmatprep.mubr.bf16.mxu0 0
    %772 = vmatmul.mubr.bf16.gmra.mxu0 %v723
    %v773 = vpop.f32.mrf.mxu0
    %v774 = vadd.f32 %v693, %v773
    %v775 = vpop.f32.mrf.mxu0
    %v776 = vpop.f32.mrf.mxu0
    %v777 = vadd.f32 %v693, %v776
    %v778 = vpop.f32.mrf.mxu0
    %779 = vmatprep.mubr.bf16.mxu0 0
    %780 = vmatmul.mubr.bf16.gmra.mxu0 %v726
    %v781 = vpop.f32.mrf.mxu0
    %v782 = vadd.f32 %v693, %v781
    %v783 = vpop.f32.mrf.mxu0
    %v784 = vpop.f32.mrf.mxu0
    %v785 = vadd.f32 %v693, %v784
    %v786 = vpop.f32.mrf.mxu0
    %787 = vmatprep.mubr.bf16.mxu0 0
    %788 = vmatmul.mubr.bf16.gmra.mxu0 %v729
    %v789 = vpop.f32.mrf.mxu0
    %v790 = vadd.f32 %v693, %v789
    %v791 = vpop.f32.mrf.mxu0
    %v792 = vpop.f32.mrf.mxu0
    %v793 = vadd.f32 %v693, %v792
    %v794 = vpop.f32.mrf.mxu0
    %795 = vdwg.mxu0
    %v796 = vtanh.pop %v766
    %v797 = vtanh.pop %v769
    %v798 = vtanh.pop %v774
    %v799 = vtanh.pop %v777
    %v800 = vtanh.pop %v782
    %v801 = vtanh.pop %v785
    %v802 = vtanh.pop %v790
    %v803 = vtanh.pop %v793
    %v804 = vmul.f32 %v796, 1.442695
    %v805 = vpow.pop %v804
    %v806 = vmul.f32 %v797, 1.442695
    %v807 = vpow.pop %v806
    %v808 = vmul.f32 %v798, 1.442695
    %v809 = vpow.pop %v808
    %v810 = vmul.f32 %v799, 1.442695
    %v811 = vpow.pop %v810
    %v812 = vmul.f32 %v800, 1.442695
    %v813 = vpow.pop %v812
    %v814 = vmul.f32 %v801, 1.442695
    %v815 = vpow.pop %v814
    %v816 = vmul.f32 %v802, 1.442695
    %v817 = vpow.pop %v816
    %v818 = vmul.f32 %v803, 1.442695
    %v819 = vpow.pop %v818
    %828 = vrot.lane.b32.xlu0 %v805, 8
    %v829 = vpop.permute.xlu0 %828
    %830 = vrot.lane.b32.xlu0 %v807, 8
    %v831 = vpop.permute.xlu0 %830
    %832 = vrot.lane.b32.xlu0 %v809, 8
    %v833 = vpop.permute.xlu0 %832
    %834 = vrot.lane.b32.xlu0 %v811, 8
    %v835 = vpop.permute.xlu0 %834
    %836 = vrot.lane.b32.xlu0 %v813, 8
    %v837 = vpop.permute.xlu0 %836
    %838 = vrot.lane.b32.xlu0 %v815, 8
    %v839 = vpop.permute.xlu0 %838
    %840 = vrot.lane.b32.xlu0 %v817, 8
    %v841 = vpop.permute.xlu0 %840
    %842 = vrot.lane.b32.xlu0 %v819, 8
    %v843 = vpop.permute.xlu0 %842
    %v852 = vmul.f32 %v266, %v829
    %v853 = vmul.f32 %v267, %v831
    %v854 = vmul.f32 %v268, %v833
    %v855 = vmul.f32 %v269, %v835
    %v856 = vmul.f32 %v270, %v837
    %v857 = vmul.f32 %v271, %v839
    %v858 = vmul.f32 %v272, %v841
    %v859 = vmul.f32 %v273, %v843
    %v860 = vadd.f32 %v852, %v766
    %v861 = vadd.f32 %v853, %v769
    %v862 = vadd.f32 %v854, %v774
    %v863 = vadd.f32 %v855, %v777
    %v864 = vadd.f32 %v856, %v782
    %v865 = vadd.f32 %v857, %v785
    %v866 = vadd.f32 %v858, %v790
    %v867 = vadd.f32 %v859, %v793
    %v868 = vadd.f32 %v796, 0.0
    %v869 = vadd.f32 %v797, 0.0
    %v870 = vadd.f32 %v798, 0.0
    %v871 = vadd.f32 %v799, 0.0
    %v872 = vadd.f32 %v800, 0.0
    %v873 = vadd.f32 %v801, 0.0
    %v874 = vadd.f32 %v802, 0.0
    %v875 = vadd.f32 %v803, 0.0
    %v876 = vpack.c.bf16 %v861, %v860
    %v877 = vpack.c.bf16 %v863, %v862
    %v878 = vpack.c.bf16 %v865, %v864
    %v879 = vpack.c.bf16 %v867, %v866
    %s880 = scalar_lea.vmem [#allocation4], 4
    %v881 = vld [vmem:[%s880] sm:$0xf]
    %886 = vrot.lane.b32.xlu0 %v876, 120
    %v887 = vpop.permute.xlu0 %886
    %888 = vrot.lane.b32.xlu0 %v877, 120
    %v889 = vpop.permute.xlu0 %888
    %890 = vrot.lane.b32.xlu0 %v878, 120
    %v891 = vpop.permute.xlu0 %890
    %892 = vrot.lane.b32.xlu0 %v879, 120
    %v893 = vpop.permute.xlu0 %892
    %902 = vrot.lane.b32.xlu0 %v202, 64
    %v903 = vpop.permute.xlu0 %902
    %904 = vrot.lane.b32.xlu0 %v206, 64
    %v905 = vpop.permute.xlu0 %904
    %906 = vrot.lane.b32.xlu0 %v212, 64
    %v907 = vpop.permute.xlu0 %906
    %908 = vrot.lane.b32.xlu0 %v216, 64
    %v909 = vpop.permute.xlu0 %908
    %910 = vrot.lane.b32.xlu0 %v222, 64
    %v911 = vpop.permute.xlu0 %910
    %912 = vrot.lane.b32.xlu0 %v226, 64
    %v913 = vpop.permute.xlu0 %912
    %914 = vrot.lane.b32.xlu0 %v232, 64
    %v915 = vpop.permute.xlu0 %914
    %916 = vrot.lane.b32.xlu0 %v236, 64
    %v917 = vpop.permute.xlu0 %916
    %v927 = vsel %vm279, %v887, 0
    %v930 = vsel %vm279, %v889, 0
    %v933 = vsel %vm279, %v891, 0
    %v936 = vsel %vm279, %v893, 0
    %v939 = vsel %vm292, %v881, 0
    %941 = vmatprep.subr.bf16.mxu0 0
    %942 = vmatpush1.bf16.msra.mxu0 0
    %943 = vmatprep.subr.bf16.mxu0 0
    %944 = vmatpush1.bf16.msra.mxu0 0
    %945 = vmatprep.subr.bf16.mxu0 0
    %946 = vmatpush1.bf16.msra.mxu0 0
    %947 = vmatprep.subr.bf16.mxu0 0
    %948 = vmatpush1.bf16.msra.mxu0 0
    %949 = vmatprep.subr.bf16.mxu0 0
    %950 = vmatpush1.bf16.msra.mxu0 0
    %951 = vmatprep.subr.bf16.mxu0 0
    %952 = vmatpush1.bf16.msra.mxu0 0
    %953 = vmatprep.subr.bf16.mxu0 0
    %954 = vmatpush1.bf16.msra.mxu0 0
    %955 = vmatprep.subr.bf16.mxu0 0
    %956 = vmatpush1.bf16.msra.mxu0 %v939
    %957 = vmatprep.subr.bf16.mxu0 0
    %958 = vmatpush2.bf16.msra.mxu0 0
    %959 = vmatprep.subr.bf16.mxu0 0
    %960 = vmatpush2.bf16.msra.mxu0 0
    %961 = vmatprep.subr.bf16.mxu0 0
    %962 = vmatpush2.bf16.msra.mxu0 0
    %963 = vmatprep.subr.bf16.mxu0 0
    %964 = vmatpush2.bf16.msra.mxu0 0
    %965 = vmatprep.subr.bf16.mxu0 0
    %966 = vmatpush2.bf16.msra.mxu0 0
    %967 = vmatprep.subr.bf16.mxu0 0
    %968 = vmatpush2.bf16.msra.mxu0 0
    %969 = vmatprep.subr.bf16.mxu0 0
    %970 = vmatpush2.bf16.msra.mxu0 0
    %971 = vmatprep.subr.bf16.mxu0 0
    %972 = vmatpush2.bf16.msra.mxu0 0
    %973 = vmatprep.mubr.bf16.mxu0 0
    %974 = vmatmul.mubr.bf16.gmra.mxu0 %v927
    %v975 = vpop.f32.mrf.mxu0
    %v976 = vadd.f32 %v903, %v975
    %v977 = vpop.f32.mrf.mxu0
    %v978 = vpop.f32.mrf.mxu0
    %v979 = vadd.f32 %v905, %v978
    %v980 = vpop.f32.mrf.mxu0
    %981 = vmatprep.mubr.bf16.mxu0 0
    %982 = vmatmul.mubr.bf16.gmra.mxu0 %v930
    %v983 = vpop.f32.mrf.mxu0
    %v984 = vadd.f32 %v907, %v983
    %v985 = vpop.f32.mrf.mxu0
    %v986 = vpop.f32.mrf.mxu0
    %v987 = vadd.f32 %v909, %v986
    %v988 = vpop.f32.mrf.mxu0
    %989 = vmatprep.mubr.bf16.mxu0 0
    %990 = vmatmul.mubr.bf16.gmra.mxu0 %v933
    %v991 = vpop.f32.mrf.mxu0
    %v992 = vadd.f32 %v911, %v991
    %v993 = vpop.f32.mrf.mxu0
    %v994 = vpop.f32.mrf.mxu0
    %v995 = vadd.f32 %v913, %v994
    %v996 = vpop.f32.mrf.mxu0
    %997 = vmatprep.mubr.bf16.mxu0 0
    %998 = vmatmul.mubr.bf16.gmra.mxu0 %v936
    %v999 = vpop.f32.mrf.mxu0
    %v1000 = vadd.f32 %v915, %v999
    %v1001 = vpop.f32.mrf.mxu0
    %v1002 = vpop.f32.mrf.mxu0
    %v1003 = vadd.f32 %v917, %v1002
    %v1004 = vpop.f32.mrf.mxu0
    %1005 = vdwg.mxu0
    %vm1006 = vcmp.gt.f32.partialorder %v976, 0.0
    %vm1007 = vcmp.gt.f32.partialorder %v979, 0.0
    %vm1008 = vcmp.gt.f32.partialorder %v984, 0.0
    %vm1009 = vcmp.gt.f32.partialorder %v987, 0.0
    %vm1010 = vcmp.gt.f32.partialorder %v992, 0.0
    %vm1011 = vcmp.gt.f32.partialorder %v995, 0.0
    %vm1012 = vcmp.gt.f32.partialorder %v1000, 0.0
    %vm1013 = vcmp.gt.f32.partialorder %v1003, 0.0
    %v1014 = vmul.f32 %v976, 0.01
    %v1015 = vmul.f32 %v979, 0.01
    %v1016 = vmul.f32 %v984, 0.01
    %v1017 = vmul.f32 %v987, 0.01
    %v1018 = vmul.f32 %v992, 0.01
    %v1019 = vmul.f32 %v995, 0.01
    %v1020 = vmul.f32 %v1000, 0.01
    %v1021 = vmul.f32 %v1003, 0.01
    %v1022 = vsel %vm1006, %v976, %v1014
    %v1023 = vsel %vm1007, %v979, %v1015
    %v1024 = vsel %vm1008, %v984, %v1016
    %v1025 = vsel %vm1009, %v987, %v1017
    %v1026 = vsel %vm1010, %v992, %v1018
    %v1027 = vsel %vm1011, %v995, %v1019
    %v1028 = vsel %vm1012, %v1000, %v1020
    %v1029 = vsel %vm1013, %v1003, %v1021
    %v1030 = vpack.c.bf16 %v1023, %v1022
    %v1031 = vpack.c.bf16 %v1025, %v1024
    %v1032 = vpack.c.bf16 %v1027, %v1026
    %v1033 = vpack.c.bf16 %v1029, %v1028
    %s1034 = scalar_lea.vmem %s4, 64
    %v1035 = vld [vmem:[%s1034] sm:$0xf]
    %v1036 = vld [vmem:[%s1034 + $0x4] sm:$0xf]
    %v1037 = vld [vmem:[%s1034 + $0x8] sm:$0xf]
    %v1038 = vld [vmem:[%s1034 + $0xc] sm:$0xf]
    %v1039 = vld [vmem:[%s1034 + $0x10] sm:$0xf]
    %v1040 = vld [vmem:[%s1034 + $0x14] sm:$0xf]
    %v1041 = vld [vmem:[%s1034 + $0x18] sm:$0xf]
    %v1042 = vld [vmem:[%s1034 + $0x1c] sm:$0xf]
    %s1043 = scalar_lea.vmem [#allocation6], 2
    %v1044 = vld [vmem:[%s1043] sm:$0x1]
    %v1046 = vlaneseq
    %v1047 = vshrl.u32 %v1046, 7
    %v1048 = vsub.s32 0, %v1047
    %v1049 = vrot.slane %v1044, %v1048
    %v1059 = vunpack.c.l.b16 %v1035
    %v1060 = vunpack.c.l.b16 %v1036
    %v1061 = vunpack.c.l.b16 %v1037
    %v1062 = vunpack.c.l.b16 %v1038
    %v1063 = vunpack.c.l.b16 %v1039
    %v1064 = vunpack.c.l.b16 %v1040
    %v1065 = vunpack.c.l.b16 %v1041
    %v1066 = vunpack.c.l.b16 %v1042
    %v1067 = vpack.c.b16 %v1060, %v1059
    %v1068 = vpack.c.b16 %v1062, %v1061
    %v1069 = vpack.c.b16 %v1064, %v1063
    %v1070 = vpack.c.b16 %v1066, %v1065
    %v1076 = vsel %vm428, %v1030, 0
    %v1079 = vsel %vm428, %v1031, 0
    %v1082 = vsel %vm428, %v1032, 0
    %v1085 = vsel %vm428, %v1033, 0
    %1087 = vmatprep.subr.bf16.mxu0 0
    %1088 = vmatpush1.bf16.msra.mxu0 0
    %1089 = vmatprep.subr.bf16.mxu0 0
    %1090 = vmatpush1.bf16.msra.mxu0 0
    %1091 = vmatprep.subr.bf16.mxu0 0
    %1092 = vmatpush1.bf16.msra.mxu0 0
    %1093 = vmatprep.subr.bf16.mxu0 0
    %1094 = vmatpush1.bf16.msra.mxu0 0
    %1095 = vmatprep.subr.bf16.mxu0 0
    %1096 = vmatpush1.bf16.msra.mxu0 %v1070
    %1097 = vmatprep.subr.bf16.mxu0 0
    %1098 = vmatpush1.bf16.msra.mxu0 %v1069
    %1099 = vmatprep.subr.bf16.mxu0 0
    %1100 = vmatpush1.bf16.msra.mxu0 %v1068
    %1101 = vmatprep.subr.bf16.mxu0 0
    %1102 = vmatpush1.bf16.msra.mxu0 %v1067
    %1103 = vmatprep.subr.bf16.mxu0 0
    %1104 = vmatpush2.bf16.msra.mxu0 0
    %1105 = vmatprep.subr.bf16.mxu0 0
    %1106 = vmatpush2.bf16.msra.mxu0 0
    %1107 = vmatprep.subr.bf16.mxu0 0
    %1108 = vmatpush2.bf16.msra.mxu0 0
    %1109 = vmatprep.subr.bf16.mxu0 0
    %1110 = vmatpush2.bf16.msra.mxu0 0
    %1111 = vmatprep.subr.bf16.mxu0 0
    %1112 = vmatpush2.bf16.msra.mxu0 0
    %1113 = vmatprep.subr.bf16.mxu0 0
    %1114 = vmatpush2.bf16.msra.mxu0 0
    %1115 = vmatprep.subr.bf16.mxu0 0
    %1116 = vmatpush2.bf16.msra.mxu0 0
    %1117 = vmatprep.subr.bf16.mxu0 0
    %1118 = vmatpush2.bf16.msra.mxu0 0
    %1119 = vmatprep.mubr.bf16.mxu0 0
    %1120 = vmatmul.mubr.bf16.gmra.mxu0 %v1076
    %v1121 = vpop.f32.mrf.mxu0
    %v1122 = vadd.f32 %v1049, %v1121
    %v1123 = vpop.f32.mrf.mxu0
    %v1124 = vpop.f32.mrf.mxu0
    %v1125 = vadd.f32 %v1049, %v1124
    %v1126 = vpop.f32.mrf.mxu0
    %1127 = vmatprep.mubr.bf16.mxu0 0
    %1128 = vmatmul.mubr.bf16.gmra.mxu0 %v1079
    %v1129 = vpop.f32.mrf.mxu0
    %v1130 = vadd.f32 %v1049, %v1129
    %v1131 = vpop.f32.mrf.mxu0
    %v1132 = vpop.f32.mrf.mxu0
    %v1133 = vadd.f32 %v1049, %v1132
    %v1134 = vpop.f32.mrf.mxu0
    %1135 = vmatprep.mubr.bf16.mxu0 0
    %1136 = vmatmul.mubr.bf16.gmra.mxu0 %v1082
    %v1137 = vpop.f32.mrf.mxu0
    %v1138 = vadd.f32 %v1049, %v1137
    %v1139 = vpop.f32.mrf.mxu0
    %v1140 = vpop.f32.mrf.mxu0
    %v1141 = vadd.f32 %v1049, %v1140
    %v1142 = vpop.f32.mrf.mxu0
    %1143 = vmatprep.mubr.bf16.mxu0 0
    %1144 = vmatmul.mubr.bf16.gmra.mxu0 %v1085
    %v1145 = vpop.f32.mrf.mxu0
    %v1146 = vadd.f32 %v1049, %v1145
    %v1147 = vpop.f32.mrf.mxu0
    %v1148 = vpop.f32.mrf.mxu0
    %v1149 = vadd.f32 %v1049, %v1148
    %v1150 = vpop.f32.mrf.mxu0
    %1151 = vdwg.mxu0
    %vm1152 = vcmp.gt.f32.partialorder %v1122, 0.0
    %vm1153 = vcmp.gt.f32.partialorder %v1125, 0.0
    %vm1154 = vcmp.gt.f32.partialorder %v1130, 0.0
    %vm1155 = vcmp.gt.f32.partialorder %v1133, 0.0
    %vm1156 = vcmp.gt.f32.partialorder %v1138, 0.0
    %vm1157 = vcmp.gt.f32.partialorder %v1141, 0.0
    %vm1158 = vcmp.gt.f32.partialorder %v1146, 0.0
    %vm1159 = vcmp.gt.f32.partialorder %v1149, 0.0
    %v1160 = vmul.f32 %v1122, 0.01
    %v1161 = vmul.f32 %v1125, 0.01
    %v1162 = vmul.f32 %v1130, 0.01
    %v1163 = vmul.f32 %v1133, 0.01
    %v1164 = vmul.f32 %v1138, 0.01
    %v1165 = vmul.f32 %v1141, 0.01
    %v1166 = vmul.f32 %v1146, 0.01
    %v1167 = vmul.f32 %v1149, 0.01
    %v1168 = vsel %vm1152, %v1122, %v1160
    %v1169 = vsel %vm1153, %v1125, %v1161
    %v1170 = vsel %vm1154, %v1130, %v1162
    %v1171 = vsel %vm1155, %v1133, %v1163
    %v1172 = vsel %vm1156, %v1138, %v1164
    %v1173 = vsel %vm1157, %v1141, %v1165
    %v1174 = vsel %vm1158, %v1146, %v1166
    %v1175 = vsel %vm1159, %v1149, %v1167
    %v1176 = vpack.c.bf16 %v1169, %v1168
    %v1177 = vpack.c.bf16 %v1171, %v1170
    %v1178 = vpack.c.bf16 %v1173, %v1172
    %v1179 = vpack.c.bf16 %v1175, %v1174
    %s1180 = scalar_lea.vmem %s4, 96
    %v1181 = vld [vmem:[%s1180] sm:$0xf]
    %v1182 = vld [vmem:[%s1180 + $0x4] sm:$0xf]
    %v1183 = vld [vmem:[%s1180 + $0x8] sm:$0xf]
    %v1184 = vld [vmem:[%s1180 + $0xc] sm:$0xf]
    %v1185 = vld [vmem:[%s1180 + $0x10] sm:$0xf]
    %v1186 = vld [vmem:[%s1180 + $0x14] sm:$0xf]
    %v1187 = vld [vmem:[%s1180 + $0x18] sm:$0xf]
    %v1188 = vld [vmem:[%s1180 + $0x1c] sm:$0xf]
    %s1189 = scalar_lea.vmem [#allocation6], 3
    %v1190 = vld [vmem:[%s1189] sm:$0x1]
    %v1192 = vlaneseq
    %v1193 = vshrl.u32 %v1192, 7
    %v1194 = vsub.s32 0, %v1193
    %v1195 = vrot.slane %v1190, %v1194
    %v1205 = vunpack.c.l.b16 %v1181
    %v1206 = vunpack.c.l.b16 %v1182
    %v1207 = vunpack.c.l.b16 %v1183
    %v1208 = vunpack.c.l.b16 %v1184
    %v1209 = vunpack.c.l.b16 %v1185
    %v1210 = vunpack.c.l.b16 %v1186
    %v1211 = vunpack.c.l.b16 %v1187
    %v1212 = vunpack.c.l.b16 %v1188
    %v1213 = vpack.c.b16 %v1206, %v1205
    %v1214 = vpack.c.b16 %v1208, %v1207
    %v1215 = vpack.c.b16 %v1210, %v1209
    %v1216 = vpack.c.b16 %v1212, %v1211
    %v1222 = vsel %vm428, %v1176, 0
    %v1225 = vsel %vm428, %v1177, 0
    %v1228 = vsel %vm428, %v1178, 0
    %v1231 = vsel %vm428, %v1179, 0
    %1233 = vmatprep.subr.bf16.mxu0 0
    %1234 = vmatpush1.bf16.msra.mxu0 0
    %1235 = vmatprep.subr.bf16.mxu0 0
    %1236 = vmatpush1.bf16.msra.mxu0 0
    %1237 = vmatprep.subr.bf16.mxu0 0
    %1238 = vmatpush1.bf16.msra.mxu0 0
    %1239 = vmatprep.subr.bf16.mxu0 0
    %1240 = vmatpush1.bf16.msra.mxu0 0
    %1241 = vmatprep.subr.bf16.mxu0 0
    %1242 = vmatpush1.bf16.msra.mxu0 %v1216
    %1243 = vmatprep.subr.bf16.mxu0 0
    %1244 = vmatpush1.bf16.msra.mxu0 %v1215
    %1245 = vmatprep.subr.bf16.mxu0 0
    %1246 = vmatpush1.bf16.msra.mxu0 %v1214
    %1247 = vmatprep.subr.bf16.mxu0 0
    %1248 = vmatpush1.bf16.msra.mxu0 %v1213
    %1249 = vmatprep.subr.bf16.mxu0 0
    %1250 = vmatpush2.bf16.msra.mxu0 0
    %1251 = vmatprep.subr.bf16.mxu0 0
    %1252 = vmatpush2.bf16.msra.mxu0 0
    %1253 = vmatprep.subr.bf16.mxu0 0
    %1254 = vmatpush2.bf16.msra.mxu0 0
    %1255 = vmatprep.subr.bf16.mxu0 0
    %1256 = vmatpush2.bf16.msra.mxu0 0
    %1257 = vmatprep.subr.bf16.mxu0 0
    %1258 = vmatpush2.bf16.msra.mxu0 0
    %1259 = vmatprep.subr.bf16.mxu0 0
    %1260 = vmatpush2.bf16.msra.mxu0 0
    %1261 = vmatprep.subr.bf16.mxu0 0
    %1262 = vmatpush2.bf16.msra.mxu0 0
    %1263 = vmatprep.subr.bf16.mxu0 0
    %1264 = vmatpush2.bf16.msra.mxu0 0
    %1265 = vmatprep.mubr.bf16.mxu0 0
    %1266 = vmatmul.mubr.bf16.gmra.mxu0 %v1222
    %v1267 = vpop.f32.mrf.mxu0
    %v1268 = vadd.f32 %v1195, %v1267
    %v1269 = vpop.f32.mrf.mxu0
    %v1270 = vpop.f32.mrf.mxu0
    %v1271 = vadd.f32 %v1195, %v1270
    %v1272 = vpop.f32.mrf.mxu0
    %1273 = vmatprep.mubr.bf16.mxu0 0
    %1274 = vmatmul.mubr.bf16.gmra.mxu0 %v1225
    %v1275 = vpop.f32.mrf.mxu0
    %v1276 = vadd.f32 %v1195, %v1275
    %v1277 = vpop.f32.mrf.mxu0
    %v1278 = vpop.f32.mrf.mxu0
    %v1279 = vadd.f32 %v1195, %v1278
    %v1280 = vpop.f32.mrf.mxu0
    %1281 = vmatprep.mubr.bf16.mxu0 0
    %1282 = vmatmul.mubr.bf16.gmra.mxu0 %v1228
    %v1283 = vpop.f32.mrf.mxu0
    %v1284 = vadd.f32 %v1195, %v1283
    %v1285 = vpop.f32.mrf.mxu0
    %v1286 = vpop.f32.mrf.mxu0
    %v1287 = vadd.f32 %v1195, %v1286
    %v1288 = vpop.f32.mrf.mxu0
    %1289 = vmatprep.mubr.bf16.mxu0 0
    %1290 = vmatmul.mubr.bf16.gmra.mxu0 %v1231
    %v1291 = vpop.f32.mrf.mxu0
    %v1292 = vadd.f32 %v1195, %v1291
    %v1293 = vpop.f32.mrf.mxu0
    %v1294 = vpop.f32.mrf.mxu0
    %v1295 = vadd.f32 %v1195, %v1294
    %v1296 = vpop.f32.mrf.mxu0
    %1297 = vdwg.mxu0
    %vm1298 = vcmp.gt.f32.partialorder %v1268, 0.0
    %vm1299 = vcmp.gt.f32.partialorder %v1271, 0.0
    %vm1300 = vcmp.gt.f32.partialorder %v1276, 0.0
    %vm1301 = vcmp.gt.f32.partialorder %v1279, 0.0
    %vm1302 = vcmp.gt.f32.partialorder %v1284, 0.0
    %vm1303 = vcmp.gt.f32.partialorder %v1287, 0.0
    %vm1304 = vcmp.gt.f32.partialorder %v1292, 0.0
    %vm1305 = vcmp.gt.f32.partialorder %v1295, 0.0
    %v1306 = vmul.f32 %v1268, 0.01
    %v1307 = vmul.f32 %v1271, 0.01
    %v1308 = vmul.f32 %v1276, 0.01
    %v1309 = vmul.f32 %v1279, 0.01
    %v1310 = vmul.f32 %v1284, 0.01
    %v1311 = vmul.f32 %v1287, 0.01
    %v1312 = vmul.f32 %v1292, 0.01
    %v1313 = vmul.f32 %v1295, 0.01
    %v1314 = vsel %vm1298, %v1268, %v1306
    %v1315 = vsel %vm1299, %v1271, %v1307
    %v1316 = vsel %vm1300, %v1276, %v1308
    %v1317 = vsel %vm1301, %v1279, %v1309
    %v1318 = vsel %vm1302, %v1284, %v1310
    %v1319 = vsel %vm1303, %v1287, %v1311
    %v1320 = vsel %vm1304, %v1292, %v1312
    %v1321 = vsel %vm1305, %v1295, %v1313
    %v1322 = vpack.c.bf16 %v1315, %v1314
    %v1323 = vpack.c.bf16 %v1317, %v1316
    %v1324 = vpack.c.bf16 %v1319, %v1318
    %v1325 = vpack.c.bf16 %v1321, %v1320
    %s1326 = scalar_lea.vmem %s6, 32
    %v1327 = vld [vmem:[%s1326] sm:$0xf]
    %v1328 = vld [vmem:[%s1326 + $0x4] sm:$0xf]
    %v1329 = vld [vmem:[%s1326 + $0x8] sm:$0xf]
    %v1330 = vld [vmem:[%s1326 + $0xc] sm:$0xf]
    %v1331 = vld [vmem:[%s1326 + $0x10] sm:$0xf]
    %v1332 = vld [vmem:[%s1326 + $0x14] sm:$0xf]
    %v1333 = vld [vmem:[%s1326 + $0x18] sm:$0xf]
    %v1334 = vld [vmem:[%s1326 + $0x1c] sm:$0xf]
    %s1335 = scalar_lea.vmem [#allocation7], 1
    %v1336 = vld [vmem:[%s1335] sm:$0x1]
    %v1338 = vlaneseq
    %v1339 = vshrl.u32 %v1338, 7
    %v1340 = vsub.s32 0, %v1339
    %v1341 = vrot.slane %v1336, %v1340
    %v1351 = vunpack.c.l.b16 %v1327
    %v1352 = vunpack.c.l.b16 %v1328
    %v1353 = vunpack.c.l.b16 %v1329
    %v1354 = vunpack.c.l.b16 %v1330
    %v1355 = vunpack.c.l.b16 %v1331
    %v1356 = vunpack.c.l.b16 %v1332
    %v1357 = vunpack.c.l.b16 %v1333
    %v1358 = vunpack.c.l.b16 %v1334
    %v1359 = vpack.c.b16 %v1352, %v1351
    %v1360 = vpack.c.b16 %v1354, %v1353
    %v1361 = vpack.c.b16 %v1356, %v1355
    %v1362 = vpack.c.b16 %v1358, %v1357
    %v1368 = vsel %vm428, %v1322, 0
    %v1371 = vsel %vm428, %v1323, 0
    %v1374 = vsel %vm428, %v1324, 0
    %v1377 = vsel %vm428, %v1325, 0
    %1379 = vmatprep.subr.bf16.mxu0 0
    %1380 = vmatpush1.bf16.msra.mxu0 0
    %1381 = vmatprep.subr.bf16.mxu0 0
    %1382 = vmatpush1.bf16.msra.mxu0 0
    %1383 = vmatprep.subr.bf16.mxu0 0
    %1384 = vmatpush1.bf16.msra.mxu0 0
    %1385 = vmatprep.subr.bf16.mxu0 0
    %1386 = vmatpush1.bf16.msra.mxu0 0
    %1387 = vmatprep.subr.bf16.mxu0 0
    %1388 = vmatpush1.bf16.msra.mxu0 %v1362
    %1389 = vmatprep.subr.bf16.mxu0 0
    %1390 = vmatpush1.bf16.msra.mxu0 %v1361
    %1391 = vmatprep.subr.bf16.mxu0 0
    %1392 = vmatpush1.bf16.msra.mxu0 %v1360
    %1393 = vmatprep.subr.bf16.mxu0 0
    %1394 = vmatpush1.bf16.msra.mxu0 %v1359
    %1395 = vmatprep.subr.bf16.mxu0 0
    %1396 = vmatpush2.bf16.msra.mxu0 0
    %1397 = vmatprep.subr.bf16.mxu0 0
    %1398 = vmatpush2.bf16.msra.mxu0 0
    %1399 = vmatprep.subr.bf16.mxu0 0
    %1400 = vmatpush2.bf16.msra.mxu0 0
    %1401 = vmatprep.subr.bf16.mxu0 0
    %1402 = vmatpush2.bf16.msra.mxu0 0
    %1403 = vmatprep.subr.bf16.mxu0 0
    %1404 = vmatpush2.bf16.msra.mxu0 0
    %1405 = vmatprep.subr.bf16.mxu0 0
    %1406 = vmatpush2.bf16.msra.mxu0 0
    %1407 = vmatprep.subr.bf16.mxu0 0
    %1408 = vmatpush2.bf16.msra.mxu0 0
    %1409 = vmatprep.subr.bf16.mxu0 0
    %1410 = vmatpush2.bf16.msra.mxu0 0
    %1411 = vmatprep.mubr.bf16.mxu0 0
    %1412 = vmatmul.mubr.bf16.gmra.mxu0 %v1368
    %v1413 = vpop.f32.mrf.mxu0
    %v1414 = vadd.f32 %v1341, %v1413
    %v1415 = vpop.f32.mrf.mxu0
    %v1416 = vpop.f32.mrf.mxu0
    %v1417 = vadd.f32 %v1341, %v1416
    %v1418 = vpop.f32.mrf.mxu0
    %1419 = vmatprep.mubr.bf16.mxu0 0
    %1420 = vmatmul.mubr.bf16.gmra.mxu0 %v1371
    %v1421 = vpop.f32.mrf.mxu0
    %v1422 = vadd.f32 %v1341, %v1421
    %v1423 = vpop.f32.mrf.mxu0
    %v1424 = vpop.f32.mrf.mxu0
    %v1425 = vadd.f32 %v1341, %v1424
    %v1426 = vpop.f32.mrf.mxu0
    %1427 = vmatprep.mubr.bf16.mxu0 0
    %1428 = vmatmul.mubr.bf16.gmra.mxu0 %v1374
    %v1429 = vpop.f32.mrf.mxu0
    %v1430 = vadd.f32 %v1341, %v1429
    %v1431 = vpop.f32.mrf.mxu0
    %v1432 = vpop.f32.mrf.mxu0
    %v1433 = vadd.f32 %v1341, %v1432
    %v1434 = vpop.f32.mrf.mxu0
    %1435 = vmatprep.mubr.bf16.mxu0 0
    %1436 = vmatmul.mubr.bf16.gmra.mxu0 %v1377
    %v1437 = vpop.f32.mrf.mxu0
    %v1438 = vadd.f32 %v1341, %v1437
    %v1439 = vpop.f32.mrf.mxu0
    %v1440 = vpop.f32.mrf.mxu0
    %v1441 = vadd.f32 %v1341, %v1440
    %v1442 = vpop.f32.mrf.mxu0
    %1443 = vdwg.mxu0
    %v1444 = vtanh.pop %v1414
    %v1445 = vtanh.pop %v1417
    %v1446 = vtanh.pop %v1422
    %v1447 = vtanh.pop %v1425
    %v1448 = vtanh.pop %v1430
    %v1449 = vtanh.pop %v1433
    %v1450 = vtanh.pop %v1438
    %v1451 = vtanh.pop %v1441
    %v1452 = vmul.f32 %v1444, 1.442695
    %v1453 = vpow.pop %v1452
    %v1454 = vmul.f32 %v1445, 1.442695
    %v1455 = vpow.pop %v1454
    %v1456 = vmul.f32 %v1446, 1.442695
    %v1457 = vpow.pop %v1456
    %v1458 = vmul.f32 %v1447, 1.442695
    %v1459 = vpow.pop %v1458
    %v1460 = vmul.f32 %v1448, 1.442695
    %v1461 = vpow.pop %v1460
    %v1462 = vmul.f32 %v1449, 1.442695
    %v1463 = vpow.pop %v1462
    %v1464 = vmul.f32 %v1450, 1.442695
    %v1465 = vpow.pop %v1464
    %v1466 = vmul.f32 %v1451, 1.442695
    %v1467 = vpow.pop %v1466
    %v1468 = vmul.f32 %v266, %v1453
    %v1469 = vmul.f32 %v267, %v1455
    %v1470 = vmul.f32 %v268, %v1457
    %v1471 = vmul.f32 %v269, %v1459
    %v1472 = vmul.f32 %v270, %v1461
    %v1473 = vmul.f32 %v271, %v1463
    %v1474 = vmul.f32 %v272, %v1465
    %v1475 = vmul.f32 %v273, %v1467
    %1484 = vrot.lane.b32.xlu0 %v1414, 120
    %v1485 = vpop.permute.xlu0 %1484
    %1486 = vrot.lane.b32.xlu0 %v1417, 120
    %v1487 = vpop.permute.xlu0 %1486
    %1488 = vrot.lane.b32.xlu0 %v1422, 120
    %v1489 = vpop.permute.xlu0 %1488
    %1490 = vrot.lane.b32.xlu0 %v1425, 120
    %v1491 = vpop.permute.xlu0 %1490
    %1492 = vrot.lane.b32.xlu0 %v1430, 120
    %v1493 = vpop.permute.xlu0 %1492
    %1494 = vrot.lane.b32.xlu0 %v1433, 120
    %v1495 = vpop.permute.xlu0 %1494
    %1496 = vrot.lane.b32.xlu0 %v1438, 120
    %v1497 = vpop.permute.xlu0 %1496
    %1498 = vrot.lane.b32.xlu0 %v1441, 120
    %v1499 = vpop.permute.xlu0 %1498
    %v1508 = vadd.f32 %v1468, %v1485
    %v1509 = vadd.f32 %v1469, %v1487
    %v1510 = vadd.f32 %v1470, %v1489
    %v1511 = vadd.f32 %v1471, %v1491
    %v1512 = vadd.f32 %v1472, %v1493
    %v1513 = vadd.f32 %v1473, %v1495
    %v1514 = vadd.f32 %v1474, %v1497
    %v1515 = vadd.f32 %v1475, %v1499
    %v1516 = vadd.f32 %v868, %v1444
    %v1517 = vadd.f32 %v869, %v1445
    %v1518 = vadd.f32 %v870, %v1446
    %v1519 = vadd.f32 %v871, %v1447
    %v1520 = vadd.f32 %v872, %v1448
    %v1521 = vadd.f32 %v873, %v1449
    %v1522 = vadd.f32 %v874, %v1450
    %v1523 = vadd.f32 %v875, %v1451
    %1532 = vrot.lane.b32.xlu0 %v860, 120
    %v1533 = vpop.permute.xlu0 %1532
    %1534 = vrot.lane.b32.xlu0 %v861, 120
    %v1535 = vpop.permute.xlu0 %1534
    %1536 = vrot.lane.b32.xlu0 %v862, 120
    %v1537 = vpop.permute.xlu0 %1536
    %1538 = vrot.lane.b32.xlu0 %v863, 120
    %v1539 = vpop.permute.xlu0 %1538
    %1540 = vrot.lane.b32.xlu0 %v864, 120
    %v1541 = vpop.permute.xlu0 %1540
    %1542 = vrot.lane.b32.xlu0 %v865, 120
    %v1543 = vpop.permute.xlu0 %1542
    %1544 = vrot.lane.b32.xlu0 %v866, 120
    %v1545 = vpop.permute.xlu0 %1544
    %1546 = vrot.lane.b32.xlu0 %v867, 120
    %v1547 = vpop.permute.xlu0 %1546
    %1564 = vrot.lane.b32.xlu0 %v1508, 8
    %v1565 = vpop.permute.xlu0 %1564
    %1566 = vrot.lane.b32.xlu0 %v1509, 8
    %v1567 = vpop.permute.xlu0 %1566
    %1568 = vrot.lane.b32.xlu0 %v1510, 8
    %v1569 = vpop.permute.xlu0 %1568
    %1570 = vrot.lane.b32.xlu0 %v1511, 8
    %v1571 = vpop.permute.xlu0 %1570
    %1572 = vrot.lane.b32.xlu0 %v1512, 8
    %v1573 = vpop.permute.xlu0 %1572
    %1574 = vrot.lane.b32.xlu0 %v1513, 8
    %v1575 = vpop.permute.xlu0 %1574
    %1576 = vrot.lane.b32.xlu0 %v1514, 8
    %v1577 = vpop.permute.xlu0 %1576
    %1578 = vrot.lane.b32.xlu0 %v1515, 8
    %v1579 = vpop.permute.xlu0 %1578
    %v1588 = vsel %vm279, %v1533, %v1565
    %v1589 = vsel %vm279, %v1535, %v1567
    %v1590 = vsel %vm279, %v1537, %v1569
    %v1591 = vsel %vm279, %v1539, %v1571
    %v1592 = vsel %vm279, %v1541, %v1573
    %v1593 = vsel %vm279, %v1543, %v1575
    %v1594 = vsel %vm279, %v1545, %v1577
    %v1595 = vsel %vm279, %v1547, %v1579
    %v1596 = vpack.c.bf16 %v1589, %v1588
    %v1597 = vpack.c.bf16 %v1591, %v1590
    %v1598 = vpack.c.bf16 %v1593, %v1592
    %v1599 = vpack.c.bf16 %v1595, %v1594
    %v1600 = vld [vmem:[#allocation9] sm:$0xf]
    %v1601 = vld [vmem:[#allocation9 + $0x4] sm:$0xf]
    %v1602 = vld [vmem:[%s9 + $0x2] sm:$0x1]
    %v1603 = vlaneseq
    %v1604 = vshrl.u32 %v1603, 7
    %v1605 = vsub.s32 0, %v1604
    %v1606 = vrot.slane %v1602, %v1605
    %v1609 = vunpack.c.l.b16 %v1600
    %v1610 = vunpack.c.l.b16 %v1601
    %v1611 = vpack.c.b16 %v1610, %v1609
    %vm1613 = vcmask 130048
    %v1615 = vsel %vm1613, %v1596, 0
    %v1618 = vsel %vm1613, %v1597, 0
    %v1621 = vsel %vm1613, %v1598, 0
    %v1624 = vsel %vm1613, %v1599, 0
    %1626 = vmatprep.subr.bf16.mxu0 0
    %1627 = vmatpush1.bf16.msra.mxu0 0
    %1628 = vmatprep.subr.bf16.mxu0 0
    %1629 = vmatpush1.bf16.msra.mxu0 0
    %1630 = vmatprep.subr.bf16.mxu0 0
    %1631 = vmatpush1.bf16.msra.mxu0 0
    %1632 = vmatprep.subr.bf16.mxu0 0
    %1633 = vmatpush1.bf16.msra.mxu0 0
    %1634 = vmatprep.subr.bf16.mxu0 0
    %1635 = vmatpush1.bf16.msra.mxu0 0
    %1636 = vmatprep.subr.bf16.mxu0 0
    %1637 = vmatpush1.bf16.msra.mxu0 0
    %1638 = vmatprep.subr.bf16.mxu0 0
    %1639 = vmatpush1.bf16.msra.mxu0 0
    %1640 = vmatprep.subr.bf16.mxu0 0
    %1641 = vmatpush1.bf16.msra.mxu0 %v1611
    %1642 = vmatprep.subr.bf16.mxu0 0
    %1643 = vmatpush2.bf16.msra.mxu0 0
    %1644 = vmatprep.subr.bf16.mxu0 0
    %1645 = vmatpush2.bf16.msra.mxu0 0
    %1646 = vmatprep.subr.bf16.mxu0 0
    %1647 = vmatpush2.bf16.msra.mxu0 0
    %1648 = vmatprep.subr.bf16.mxu0 0
    %1649 = vmatpush2.bf16.msra.mxu0 0
    %1650 = vmatprep.subr.bf16.mxu0 0
    %1651 = vmatpush2.bf16.msra.mxu0 0
    %1652 = vmatprep.subr.bf16.mxu0 0
    %1653 = vmatpush2.bf16.msra.mxu0 0
    %1654 = vmatprep.subr.bf16.mxu0 0
    %1655 = vmatpush2.bf16.msra.mxu0 0
    %1656 = vmatprep.subr.bf16.mxu0 0
    %1657 = vmatpush2.bf16.msra.mxu0 0
    %1658 = vmatprep.mubr.bf16.mxu0 0
    %1659 = vmatmul.mubr.bf16.gmra.mxu0 %v1615
    %v1660 = vpop.f32.mrf.mxu0
    %v1661 = vadd.f32 %v1606, %v1660
    %v1662 = vpop.f32.mrf.mxu0
    %v1663 = vpop.f32.mrf.mxu0
    %v1664 = vadd.f32 %v1606, %v1663
    %v1665 = vpop.f32.mrf.mxu0
    %1666 = vmatprep.mubr.bf16.mxu0 0
    %1667 = vmatmul.mubr.bf16.gmra.mxu0 %v1618
    %v1668 = vpop.f32.mrf.mxu0
    %v1669 = vadd.f32 %v1606, %v1668
    %v1670 = vpop.f32.mrf.mxu0
    %v1671 = vpop.f32.mrf.mxu0
    %v1672 = vadd.f32 %v1606, %v1671
    %v1673 = vpop.f32.mrf.mxu0
    %1674 = vmatprep.mubr.bf16.mxu0 0
    %1675 = vmatmul.mubr.bf16.gmra.mxu0 %v1621
    %v1676 = vpop.f32.mrf.mxu0
    %v1677 = vadd.f32 %v1606, %v1676
    %v1678 = vpop.f32.mrf.mxu0
    %v1679 = vpop.f32.mrf.mxu0
    %v1680 = vadd.f32 %v1606, %v1679
    %v1681 = vpop.f32.mrf.mxu0
    %1682 = vmatprep.mubr.bf16.mxu0 0
    %1683 = vmatmul.mubr.bf16.gmra.mxu0 %v1624
    %v1684 = vpop.f32.mrf.mxu0
    %v1685 = vadd.f32 %v1606, %v1684
    %v1686 = vpop.f32.mrf.mxu0
    %v1687 = vpop.f32.mrf.mxu0
    %v1688 = vadd.f32 %v1606, %v1687
    %v1689 = vpop.f32.mrf.mxu0
    %1690 = vdwg.mxu0
    %v1691 = vpack.c.bf16 %v1664, %v1661
    %v1692 = vpack.c.bf16 %v1672, %v1669
    %v1693 = vpack.c.bf16 %v1680, %v1677
    %v1694 = vpack.c.bf16 %v1688, %v1685
    %s1695 = scalar_lea.vmem [#allocation4], 8
    %v1696 = vld [vmem:[%s1695] sm:$0xf]
    %v1698 = vsel %vm279, %v1691, 0
    %v1701 = vsel %vm279, %v1692, 0
    %v1704 = vsel %vm279, %v1693, 0
    %v1707 = vsel %vm279, %v1694, 0
    %v1710 = vsel %vm292, %v1696, 0
    %1712 = vmatprep.subr.bf16.mxu0 0
    %1713 = vmatpush1.bf16.msra.mxu0 0
    %1714 = vmatprep.subr.bf16.mxu0 0
    %1715 = vmatpush1.bf16.msra.mxu0 0
    %1716 = vmatprep.subr.bf16.mxu0 0
    %1717 = vmatpush1.bf16.msra.mxu0 0
    %1718 = vmatprep.subr.bf16.mxu0 0
    %1719 = vmatpush1.bf16.msra.mxu0 0
    %1720 = vmatprep.subr.bf16.mxu0 0
    %1721 = vmatpush1.bf16.msra.mxu0 0
    %1722 = vmatprep.subr.bf16.mxu0 0
    %1723 = vmatpush1.bf16.msra.mxu0 0
    %1724 = vmatprep.subr.bf16.mxu0 0
    %1725 = vmatpush1.bf16.msra.mxu0 0
    %1726 = vmatprep.subr.bf16.mxu0 0
    %1727 = vmatpush1.bf16.msra.mxu0 %v1710
    %1728 = vmatprep.subr.bf16.mxu0 0
    %1729 = vmatpush2.bf16.msra.mxu0 0
    %1730 = vmatprep.subr.bf16.mxu0 0
    %1731 = vmatpush2.bf16.msra.mxu0 0
    %1732 = vmatprep.subr.bf16.mxu0 0
    %1733 = vmatpush2.bf16.msra.mxu0 0
    %1734 = vmatprep.subr.bf16.mxu0 0
    %1735 = vmatpush2.bf16.msra.mxu0 0
    %1736 = vmatprep.subr.bf16.mxu0 0
    %1737 = vmatpush2.bf16.msra.mxu0 0
    %1738 = vmatprep.subr.bf16.mxu0 0
    %1739 = vmatpush2.bf16.msra.mxu0 0
    %1740 = vmatprep.subr.bf16.mxu0 0
    %1741 = vmatpush2.bf16.msra.mxu0 0
    %1742 = vmatprep.subr.bf16.mxu0 0
    %1743 = vmatpush2.bf16.msra.mxu0 0
    %1744 = vmatprep.mubr.bf16.mxu0 0
    %1745 = vmatmul.mubr.bf16.gmra.mxu0 %v1698
    %v1746 = vpop.f32.mrf.mxu0
    %v1747 = vadd.f32 %v204, %v1746
    %v1748 = vpop.f32.mrf.mxu0
    %v1749 = vpop.f32.mrf.mxu0
    %v1750 = vadd.f32 %v208, %v1749
    %v1751 = vpop.f32.mrf.mxu0
    %1752 = vmatprep.mubr.bf16.mxu0 0
    %1753 = vmatmul.mubr.bf16.gmra.mxu0 %v1701
    %v1754 = vpop.f32.mrf.mxu0
    %v1755 = vadd.f32 %v214, %v1754
    %v1756 = vpop.f32.mrf.mxu0
    %v1757 = vpop.f32.mrf.mxu0
    %v1758 = vadd.f32 %v218, %v1757
    %v1759 = vpop.f32.mrf.mxu0
    %1760 = vmatprep.mubr.bf16.mxu0 0
    %1761 = vmatmul.mubr.bf16.gmra.mxu0 %v1704
    %v1762 = vpop.f32.mrf.mxu0
    %v1763 = vadd.f32 %v224, %v1762
    %v1764 = vpop.f32.mrf.mxu0
    %v1765 = vpop.f32.mrf.mxu0
    %v1766 = vadd.f32 %v228, %v1765
    %v1767 = vpop.f32.mrf.mxu0
    %1768 = vmatprep.mubr.bf16.mxu0 0
    %1769 = vmatmul.mubr.bf16.gmra.mxu0 %v1707
    %v1770 = vpop.f32.mrf.mxu0
    %v1771 = vadd.f32 %v234, %v1770
    %v1772 = vpop.f32.mrf.mxu0
    %v1773 = vpop.f32.mrf.mxu0
    %v1774 = vadd.f32 %v238, %v1773
    %v1775 = vpop.f32.mrf.mxu0
    %1776 = vdwg.mxu0
    %vm1777 = vcmp.gt.f32.partialorder %v1747, 0.0
    %vm1778 = vcmp.gt.f32.partialorder %v1750, 0.0
    %vm1779 = vcmp.gt.f32.partialorder %v1755, 0.0
    %vm1780 = vcmp.gt.f32.partialorder %v1758, 0.0
    %vm1781 = vcmp.gt.f32.partialorder %v1763, 0.0
    %vm1782 = vcmp.gt.f32.partialorder %v1766, 0.0
    %vm1783 = vcmp.gt.f32.partialorder %v1771, 0.0
    %vm1784 = vcmp.gt.f32.partialorder %v1774, 0.0
    %v1785 = vmul.f32 %v1747, 0.01
    %v1786 = vmul.f32 %v1750, 0.01
    %v1787 = vmul.f32 %v1755, 0.01
    %v1788 = vmul.f32 %v1758, 0.01
    %v1789 = vmul.f32 %v1763, 0.01
    %v1790 = vmul.f32 %v1766, 0.01
    %v1791 = vmul.f32 %v1771, 0.01
    %v1792 = vmul.f32 %v1774, 0.01
    %v1793 = vsel %vm1777, %v1747, %v1785
    %v1794 = vsel %vm1778, %v1750, %v1786
    %v1795 = vsel %vm1779, %v1755, %v1787
    %v1796 = vsel %vm1780, %v1758, %v1788
    %v1797 = vsel %vm1781, %v1763, %v1789
    %v1798 = vsel %vm1782, %v1766, %v1790
    %v1799 = vsel %vm1783, %v1771, %v1791
    %v1800 = vsel %vm1784, %v1774, %v1792
    %v1801 = vpack.c.bf16 %v1794, %v1793
    %v1802 = vpack.c.bf16 %v1796, %v1795
    %v1803 = vpack.c.bf16 %v1798, %v1797
    %v1804 = vpack.c.bf16 %v1800, %v1799
    %s1805 = scalar_lea.vmem %s4, 128
    %v1806 = vld [vmem:[%s1805] sm:$0xf]
    %v1807 = vld [vmem:[%s1805 + $0x4] sm:$0xf]
    %v1808 = vld [vmem:[%s1805 + $0x8] sm:$0xf]
    %v1809 = vld [vmem:[%s1805 + $0xc] sm:$0xf]
    %v1810 = vld [vmem:[%s1805 + $0x10] sm:$0xf]
    %v1811 = vld [vmem:[%s1805 + $0x14] sm:$0xf]
    %v1812 = vld [vmem:[%s1805 + $0x18] sm:$0xf]
    %v1813 = vld [vmem:[%s1805 + $0x1c] sm:$0xf]
    %s1814 = scalar_lea.vmem [#allocation6], 4
    %v1815 = vld [vmem:[%s1814] sm:$0x1]
    %v1817 = vlaneseq
    %v1818 = vshrl.u32 %v1817, 7
    %v1819 = vsub.s32 0, %v1818
    %v1820 = vrot.slane %v1815, %v1819
    %v1830 = vunpack.c.l.b16 %v1806
    %v1831 = vunpack.c.l.b16 %v1807
    %v1832 = vunpack.c.l.b16 %v1808
    %v1833 = vunpack.c.l.b16 %v1809
    %v1834 = vunpack.c.l.b16 %v1810
    %v1835 = vunpack.c.l.b16 %v1811
    %v1836 = vunpack.c.l.b16 %v1812
    %v1837 = vunpack.c.l.b16 %v1813
    %v1838 = vpack.c.b16 %v1831, %v1830
    %v1839 = vpack.c.b16 %v1833, %v1832
    %v1840 = vpack.c.b16 %v1835, %v1834
    %v1841 = vpack.c.b16 %v1837, %v1836
    %v1847 = vsel %vm428, %v1801, 0
    %v1850 = vsel %vm428, %v1802, 0
    %v1853 = vsel %vm428, %v1803, 0
    %v1856 = vsel %vm428, %v1804, 0
    %1858 = vmatprep.subr.bf16.mxu0 0
    %1859 = vmatpush1.bf16.msra.mxu0 0
    %1860 = vmatprep.subr.bf16.mxu0 0
    %1861 = vmatpush1.bf16.msra.mxu0 0
    %1862 = vmatprep.subr.bf16.mxu0 0
    %1863 = vmatpush1.bf16.msra.mxu0 0
    %1864 = vmatprep.subr.bf16.mxu0 0
    %1865 = vmatpush1.bf16.msra.mxu0 0
    %1866 = vmatprep.subr.bf16.mxu0 0
    %1867 = vmatpush1.bf16.msra.mxu0 %v1841
    %1868 = vmatprep.subr.bf16.mxu0 0
    %1869 = vmatpush1.bf16.msra.mxu0 %v1840
    %1870 = vmatprep.subr.bf16.mxu0 0
    %1871 = vmatpush1.bf16.msra.mxu0 %v1839
    %1872 = vmatprep.subr.bf16.mxu0 0
    %1873 = vmatpush1.bf16.msra.mxu0 %v1838
    %1874 = vmatprep.subr.bf16.mxu0 0
    %1875 = vmatpush2.bf16.msra.mxu0 0
    %1876 = vmatprep.subr.bf16.mxu0 0
    %1877 = vmatpush2.bf16.msra.mxu0 0
    %1878 = vmatprep.subr.bf16.mxu0 0
    %1879 = vmatpush2.bf16.msra.mxu0 0
    %1880 = vmatprep.subr.bf16.mxu0 0
    %1881 = vmatpush2.bf16.msra.mxu0 0
    %1882 = vmatprep.subr.bf16.mxu0 0
    %1883 = vmatpush2.bf16.msra.mxu0 0
    %1884 = vmatprep.subr.bf16.mxu0 0
    %1885 = vmatpush2.bf16.msra.mxu0 0
    %1886 = vmatprep.subr.bf16.mxu0 0
    %1887 = vmatpush2.bf16.msra.mxu0 0
    %1888 = vmatprep.subr.bf16.mxu0 0
    %1889 = vmatpush2.bf16.msra.mxu0 0
    %1890 = vmatprep.mubr.bf16.mxu0 0
    %1891 = vmatmul.mubr.bf16.gmra.mxu0 %v1847
    %v1892 = vpop.f32.mrf.mxu0
    %v1893 = vadd.f32 %v1820, %v1892
    %v1894 = vpop.f32.mrf.mxu0
    %v1895 = vpop.f32.mrf.mxu0
    %v1896 = vadd.f32 %v1820, %v1895
    %v1897 = vpop.f32.mrf.mxu0
    %1898 = vmatprep.mubr.bf16.mxu0 0
    %1899 = vmatmul.mubr.bf16.gmra.mxu0 %v1850
    %v1900 = vpop.f32.mrf.mxu0
    %v1901 = vadd.f32 %v1820, %v1900
    %v1902 = vpop.f32.mrf.mxu0
    %v1903 = vpop.f32.mrf.mxu0
    %v1904 = vadd.f32 %v1820, %v1903
    %v1905 = vpop.f32.mrf.mxu0
    %1906 = vmatprep.mubr.bf16.mxu0 0
    %1907 = vmatmul.mubr.bf16.gmra.mxu0 %v1853
    %v1908 = vpop.f32.mrf.mxu0
    %v1909 = vadd.f32 %v1820, %v1908
    %v1910 = vpop.f32.mrf.mxu0
    %v1911 = vpop.f32.mrf.mxu0
    %v1912 = vadd.f32 %v1820, %v1911
    %v1913 = vpop.f32.mrf.mxu0
    %1914 = vmatprep.mubr.bf16.mxu0 0
    %1915 = vmatmul.mubr.bf16.gmra.mxu0 %v1856
    %v1916 = vpop.f32.mrf.mxu0
    %v1917 = vadd.f32 %v1820, %v1916
    %v1918 = vpop.f32.mrf.mxu0
    %v1919 = vpop.f32.mrf.mxu0
    %v1920 = vadd.f32 %v1820, %v1919
    %v1921 = vpop.f32.mrf.mxu0
    %1922 = vdwg.mxu0
    %vm1923 = vcmp.gt.f32.partialorder %v1893, 0.0
    %vm1924 = vcmp.gt.f32.partialorder %v1896, 0.0
    %vm1925 = vcmp.gt.f32.partialorder %v1901, 0.0
    %vm1926 = vcmp.gt.f32.partialorder %v1904, 0.0
    %vm1927 = vcmp.gt.f32.partialorder %v1909, 0.0
    %vm1928 = vcmp.gt.f32.partialorder %v1912, 0.0
    %vm1929 = vcmp.gt.f32.partialorder %v1917, 0.0
    %vm1930 = vcmp.gt.f32.partialorder %v1920, 0.0
    %v1931 = vmul.f32 %v1893, 0.01
    %v1932 = vmul.f32 %v1896, 0.01
    %v1933 = vmul.f32 %v1901, 0.01
    %v1934 = vmul.f32 %v1904, 0.01
    %v1935 = vmul.f32 %v1909, 0.01
    %v1936 = vmul.f32 %v1912, 0.01
    %v1937 = vmul.f32 %v1917, 0.01
    %v1938 = vmul.f32 %v1920, 0.01
    %v1939 = vsel %vm1923, %v1893, %v1931
    %v1940 = vsel %vm1924, %v1896, %v1932
    %v1941 = vsel %vm1925, %v1901, %v1933
    %v1942 = vsel %vm1926, %v1904, %v1934
    %v1943 = vsel %vm1927, %v1909, %v1935
    %v1944 = vsel %vm1928, %v1912, %v1936
    %v1945 = vsel %vm1929, %v1917, %v1937
    %v1946 = vsel %vm1930, %v1920, %v1938
    %v1947 = vpack.c.bf16 %v1940, %v1939
    %v1948 = vpack.c.bf16 %v1942, %v1941
    %v1949 = vpack.c.bf16 %v1944, %v1943
    %v1950 = vpack.c.bf16 %v1946, %v1945
    %s1951 = scalar_lea.vmem %s4, 160
    %v1952 = vld [vmem:[%s1951] sm:$0xf]
    %v1953 = vld [vmem:[%s1951 + $0x4] sm:$0xf]
    %v1954 = vld [vmem:[%s1951 + $0x8] sm:$0xf]
    %v1955 = vld [vmem:[%s1951 + $0xc] sm:$0xf]
    %v1956 = vld [vmem:[%s1951 + $0x10] sm:$0xf]
    %v1957 = vld [vmem:[%s1951 + $0x14] sm:$0xf]
    %v1958 = vld [vmem:[%s1951 + $0x18] sm:$0xf]
    %v1959 = vld [vmem:[%s1951 + $0x1c] sm:$0xf]
    %s1960 = scalar_lea.vmem [#allocation6], 5
    %v1961 = vld [vmem:[%s1960] sm:$0x1]
    %v1963 = vlaneseq
    %v1964 = vshrl.u32 %v1963, 7
    %v1965 = vsub.s32 0, %v1964
    %v1966 = vrot.slane %v1961, %v1965
    %v1976 = vunpack.c.l.b16 %v1952
    %v1977 = vunpack.c.l.b16 %v1953
    %v1978 = vunpack.c.l.b16 %v1954
    %v1979 = vunpack.c.l.b16 %v1955
    %v1980 = vunpack.c.l.b16 %v1956
    %v1981 = vunpack.c.l.b16 %v1957
    %v1982 = vunpack.c.l.b16 %v1958
    %v1983 = vunpack.c.l.b16 %v1959
    %v1984 = vpack.c.b16 %v1977, %v1976
    %v1985 = vpack.c.b16 %v1979, %v1978
    %v1986 = vpack.c.b16 %v1981, %v1980
    %v1987 = vpack.c.b16 %v1983, %v1982
    %v1993 = vsel %vm428, %v1947, 0
    %v1996 = vsel %vm428, %v1948, 0
    %v1999 = vsel %vm428, %v1949, 0
    %v2002 = vsel %vm428, %v1950, 0
    %2004 = vmatprep.subr.bf16.mxu0 0
    %2005 = vmatpush1.bf16.msra.mxu0 0
    %2006 = vmatprep.subr.bf16.mxu0 0
    %2007 = vmatpush1.bf16.msra.mxu0 0
    %2008 = vmatprep.subr.bf16.mxu0 0
    %2009 = vmatpush1.bf16.msra.mxu0 0
    %2010 = vmatprep.subr.bf16.mxu0 0
    %2011 = vmatpush1.bf16.msra.mxu0 0
    %2012 = vmatprep.subr.bf16.mxu0 0
    %2013 = vmatpush1.bf16.msra.mxu0 %v1987
    %2014 = vmatprep.subr.bf16.mxu0 0
    %2015 = vmatpush1.bf16.msra.mxu0 %v1986
    %2016 = vmatprep.subr.bf16.mxu0 0
    %2017 = vmatpush1.bf16.msra.mxu0 %v1985
    %2018 = vmatprep.subr.bf16.mxu0 0
    %2019 = vmatpush1.bf16.msra.mxu0 %v1984
    %2020 = vmatprep.subr.bf16.mxu0 0
    %2021 = vmatpush2.bf16.msra.mxu0 0
    %2022 = vmatprep.subr.bf16.mxu0 0
    %2023 = vmatpush2.bf16.msra.mxu0 0
    %2024 = vmatprep.subr.bf16.mxu0 0
    %2025 = vmatpush2.bf16.msra.mxu0 0
    %2026 = vmatprep.subr.bf16.mxu0 0
    %2027 = vmatpush2.bf16.msra.mxu0 0
    %2028 = vmatprep.subr.bf16.mxu0 0
    %2029 = vmatpush2.bf16.msra.mxu0 0
    %2030 = vmatprep.subr.bf16.mxu0 0
    %2031 = vmatpush2.bf16.msra.mxu0 0
    %2032 = vmatprep.subr.bf16.mxu0 0
    %2033 = vmatpush2.bf16.msra.mxu0 0
    %2034 = vmatprep.subr.bf16.mxu0 0
    %2035 = vmatpush2.bf16.msra.mxu0 0
    %2036 = vmatprep.mubr.bf16.mxu0 0
    %2037 = vmatmul.mubr.bf16.gmra.mxu0 %v1993
    %v2038 = vpop.f32.mrf.mxu0
    %v2039 = vadd.f32 %v1966, %v2038
    %v2040 = vpop.f32.mrf.mxu0
    %v2041 = vpop.f32.mrf.mxu0
    %v2042 = vadd.f32 %v1966, %v2041
    %v2043 = vpop.f32.mrf.mxu0
    %2044 = vmatprep.mubr.bf16.mxu0 0
    %2045 = vmatmul.mubr.bf16.gmra.mxu0 %v1996
    %v2046 = vpop.f32.mrf.mxu0
    %v2047 = vadd.f32 %v1966, %v2046
    %v2048 = vpop.f32.mrf.mxu0
    %v2049 = vpop.f32.mrf.mxu0
    %v2050 = vadd.f32 %v1966, %v2049
    %v2051 = vpop.f32.mrf.mxu0
    %2052 = vmatprep.mubr.bf16.mxu0 0
    %2053 = vmatmul.mubr.bf16.gmra.mxu0 %v1999
    %v2054 = vpop.f32.mrf.mxu0
    %v2055 = vadd.f32 %v1966, %v2054
    %v2056 = vpop.f32.mrf.mxu0
    %v2057 = vpop.f32.mrf.mxu0
    %v2058 = vadd.f32 %v1966, %v2057
    %v2059 = vpop.f32.mrf.mxu0
    %2060 = vmatprep.mubr.bf16.mxu0 0
    %2061 = vmatmul.mubr.bf16.gmra.mxu0 %v2002
    %v2062 = vpop.f32.mrf.mxu0
    %v2063 = vadd.f32 %v1966, %v2062
    %v2064 = vpop.f32.mrf.mxu0
    %v2065 = vpop.f32.mrf.mxu0
    %v2066 = vadd.f32 %v1966, %v2065
    %v2067 = vpop.f32.mrf.mxu0
    %2068 = vdwg.mxu0
    %vm2069 = vcmp.gt.f32.partialorder %v2039, 0.0
    %vm2070 = vcmp.gt.f32.partialorder %v2042, 0.0
    %vm2071 = vcmp.gt.f32.partialorder %v2047, 0.0
    %vm2072 = vcmp.gt.f32.partialorder %v2050, 0.0
    %vm2073 = vcmp.gt.f32.partialorder %v2055, 0.0
    %vm2074 = vcmp.gt.f32.partialorder %v2058, 0.0
    %vm2075 = vcmp.gt.f32.partialorder %v2063, 0.0
    %vm2076 = vcmp.gt.f32.partialorder %v2066, 0.0
    %v2077 = vmul.f32 %v2039, 0.01
    %v2078 = vmul.f32 %v2042, 0.01
    %v2079 = vmul.f32 %v2047, 0.01
    %v2080 = vmul.f32 %v2050, 0.01
    %v2081 = vmul.f32 %v2055, 0.01
    %v2082 = vmul.f32 %v2058, 0.01
    %v2083 = vmul.f32 %v2063, 0.01
    %v2084 = vmul.f32 %v2066, 0.01
    %v2085 = vsel %vm2069, %v2039, %v2077
    %v2086 = vsel %vm2070, %v2042, %v2078
    %v2087 = vsel %vm2071, %v2047, %v2079
    %v2088 = vsel %vm2072, %v2050, %v2080
    %v2089 = vsel %vm2073, %v2055, %v2081
    %v2090 = vsel %vm2074, %v2058, %v2082
    %v2091 = vsel %vm2075, %v2063, %v2083
    %v2092 = vsel %vm2076, %v2066, %v2084
    %v2093 = vpack.c.bf16 %v2086, %v2085
    %v2094 = vpack.c.bf16 %v2088, %v2087
    %v2095 = vpack.c.bf16 %v2090, %v2089
    %v2096 = vpack.c.bf16 %v2092, %v2091
    %s2097 = scalar_lea.vmem %s6, 64
    %v2098 = vld [vmem:[%s2097] sm:$0xf]
    %v2099 = vld [vmem:[%s2097 + $0x4] sm:$0xf]
    %v2100 = vld [vmem:[%s2097 + $0x8] sm:$0xf]
    %v2101 = vld [vmem:[%s2097 + $0xc] sm:$0xf]
    %v2102 = vld [vmem:[%s2097 + $0x10] sm:$0xf]
    %v2103 = vld [vmem:[%s2097 + $0x14] sm:$0xf]
    %v2104 = vld [vmem:[%s2097 + $0x18] sm:$0xf]
    %v2105 = vld [vmem:[%s2097 + $0x1c] sm:$0xf]
    %s2106 = scalar_lea.vmem [#allocation7], 2
    %v2107 = vld [vmem:[%s2106] sm:$0x1]
    %v2109 = vlaneseq
    %v2110 = vshrl.u32 %v2109, 7
    %v2111 = vsub.s32 0, %v2110
    %v2112 = vrot.slane %v2107, %v2111
    %v2122 = vunpack.c.l.b16 %v2098
    %v2123 = vunpack.c.l.b16 %v2099
    %v2124 = vunpack.c.l.b16 %v2100
    %v2125 = vunpack.c.l.b16 %v2101
    %v2126 = vunpack.c.l.b16 %v2102
    %v2127 = vunpack.c.l.b16 %v2103
    %v2128 = vunpack.c.l.b16 %v2104
    %v2129 = vunpack.c.l.b16 %v2105
    %v2130 = vpack.c.b16 %v2123, %v2122
    %v2131 = vpack.c.b16 %v2125, %v2124
    %v2132 = vpack.c.b16 %v2127, %v2126
    %v2133 = vpack.c.b16 %v2129, %v2128
    %v2139 = vsel %vm428, %v2093, 0
    %v2142 = vsel %vm428, %v2094, 0
    %v2145 = vsel %vm428, %v2095, 0
    %v2148 = vsel %vm428, %v2096, 0
    %2150 = vmatprep.subr.bf16.mxu0 0
    %2151 = vmatpush1.bf16.msra.mxu0 0
    %2152 = vmatprep.subr.bf16.mxu0 0
    %2153 = vmatpush1.bf16.msra.mxu0 0
    %2154 = vmatprep.subr.bf16.mxu0 0
    %2155 = vmatpush1.bf16.msra.mxu0 0
    %2156 = vmatprep.subr.bf16.mxu0 0
    %2157 = vmatpush1.bf16.msra.mxu0 0
    %2158 = vmatprep.subr.bf16.mxu0 0
    %2159 = vmatpush1.bf16.msra.mxu0 %v2133
    %2160 = vmatprep.subr.bf16.mxu0 0
    %2161 = vmatpush1.bf16.msra.mxu0 %v2132
    %2162 = vmatprep.subr.bf16.mxu0 0
    %2163 = vmatpush1.bf16.msra.mxu0 %v2131
    %2164 = vmatprep.subr.bf16.mxu0 0
    %2165 = vmatpush1.bf16.msra.mxu0 %v2130
    %2166 = vmatprep.subr.bf16.mxu0 0
    %2167 = vmatpush2.bf16.msra.mxu0 0
    %2168 = vmatprep.subr.bf16.mxu0 0
    %2169 = vmatpush2.bf16.msra.mxu0 0
    %2170 = vmatprep.subr.bf16.mxu0 0
    %2171 = vmatpush2.bf16.msra.mxu0 0
    %2172 = vmatprep.subr.bf16.mxu0 0
    %2173 = vmatpush2.bf16.msra.mxu0 0
    %2174 = vmatprep.subr.bf16.mxu0 0
    %2175 = vmatpush2.bf16.msra.mxu0 0
    %2176 = vmatprep.subr.bf16.mxu0 0
    %2177 = vmatpush2.bf16.msra.mxu0 0
    %2178 = vmatprep.subr.bf16.mxu0 0
    %2179 = vmatpush2.bf16.msra.mxu0 0
    %2180 = vmatprep.subr.bf16.mxu0 0
    %2181 = vmatpush2.bf16.msra.mxu0 0
    %2182 = vmatprep.mubr.bf16.mxu0 0
    %2183 = vmatmul.mubr.bf16.gmra.mxu0 %v2139
    %v2184 = vpop.f32.mrf.mxu0
    %v2185 = vadd.f32 %v2112, %v2184
    %v2186 = vpop.f32.mrf.mxu0
    %v2187 = vpop.f32.mrf.mxu0
    %v2188 = vadd.f32 %v2112, %v2187
    %v2189 = vpop.f32.mrf.mxu0
    %2190 = vmatprep.mubr.bf16.mxu0 0
    %2191 = vmatmul.mubr.bf16.gmra.mxu0 %v2142
    %v2192 = vpop.f32.mrf.mxu0
    %v2193 = vadd.f32 %v2112, %v2192
    %v2194 = vpop.f32.mrf.mxu0
    %v2195 = vpop.f32.mrf.mxu0
    %v2196 = vadd.f32 %v2112, %v2195
    %v2197 = vpop.f32.mrf.mxu0
    %2198 = vmatprep.mubr.bf16.mxu0 0
    %2199 = vmatmul.mubr.bf16.gmra.mxu0 %v2145
    %v2200 = vpop.f32.mrf.mxu0
    %v2201 = vadd.f32 %v2112, %v2200
    %v2202 = vpop.f32.mrf.mxu0
    %v2203 = vpop.f32.mrf.mxu0
    %v2204 = vadd.f32 %v2112, %v2203
    %v2205 = vpop.f32.mrf.mxu0
    %2206 = vmatprep.mubr.bf16.mxu0 0
    %2207 = vmatmul.mubr.bf16.gmra.mxu0 %v2148
    %v2208 = vpop.f32.mrf.mxu0
    %v2209 = vadd.f32 %v2112, %v2208
    %v2210 = vpop.f32.mrf.mxu0
    %v2211 = vpop.f32.mrf.mxu0
    %v2212 = vadd.f32 %v2112, %v2211
    %v2213 = vpop.f32.mrf.mxu0
    %2214 = vdwg.mxu0
    %v2215 = vtanh.pop %v2185
    %v2216 = vtanh.pop %v2188
    %v2217 = vtanh.pop %v2193
    %v2218 = vtanh.pop %v2196
    %v2219 = vtanh.pop %v2201
    %v2220 = vtanh.pop %v2204
    %v2221 = vtanh.pop %v2209
    %v2222 = vtanh.pop %v2212
    %v2223 = vmul.f32 %v2215, 1.442695
    %v2224 = vpow.pop %v2223
    %v2225 = vmul.f32 %v2216, 1.442695
    %v2226 = vpow.pop %v2225
    %v2227 = vmul.f32 %v2217, 1.442695
    %v2228 = vpow.pop %v2227
    %v2229 = vmul.f32 %v2218, 1.442695
    %v2230 = vpow.pop %v2229
    %v2231 = vmul.f32 %v2219, 1.442695
    %v2232 = vpow.pop %v2231
    %v2233 = vmul.f32 %v2220, 1.442695
    %v2234 = vpow.pop %v2233
    %v2235 = vmul.f32 %v2221, 1.442695
    %v2236 = vpow.pop %v2235
    %v2237 = vmul.f32 %v2222, 1.442695
    %v2238 = vpow.pop %v2237
    %2247 = vrot.lane.b32.xlu0 %v2224, 8
    %v2248 = vpop.permute.xlu0 %2247
    %2249 = vrot.lane.b32.xlu0 %v2226, 8
    %v2250 = vpop.permute.xlu0 %2249
    %2251 = vrot.lane.b32.xlu0 %v2228, 8
    %v2252 = vpop.permute.xlu0 %2251
    %2253 = vrot.lane.b32.xlu0 %v2230, 8
    %v2254 = vpop.permute.xlu0 %2253
    %2255 = vrot.lane.b32.xlu0 %v2232, 8
    %v2256 = vpop.permute.xlu0 %2255
    %2257 = vrot.lane.b32.xlu0 %v2234, 8
    %v2258 = vpop.permute.xlu0 %2257
    %2259 = vrot.lane.b32.xlu0 %v2236, 8
    %v2260 = vpop.permute.xlu0 %2259
    %2261 = vrot.lane.b32.xlu0 %v2238, 8
    %v2262 = vpop.permute.xlu0 %2261
    %v2271 = vmul.f32 %v1661, %v2248
    %v2272 = vmul.f32 %v1664, %v2250
    %v2273 = vmul.f32 %v1669, %v2252
    %v2274 = vmul.f32 %v1672, %v2254
    %v2275 = vmul.f32 %v1677, %v2256
    %v2276 = vmul.f32 %v1680, %v2258
    %v2277 = vmul.f32 %v1685, %v2260
    %v2278 = vmul.f32 %v1688, %v2262
    %v2279 = vadd.f32 %v2271, %v2185
    %v2280 = vadd.f32 %v2272, %v2188
    %v2281 = vadd.f32 %v2273, %v2193
    %v2282 = vadd.f32 %v2274, %v2196
    %v2283 = vadd.f32 %v2275, %v2201
    %v2284 = vadd.f32 %v2276, %v2204
    %v2285 = vadd.f32 %v2277, %v2209
    %v2286 = vadd.f32 %v2278, %v2212
    %v2287 = vadd.f32 %v1516, %v2215
    %v2288 = vadd.f32 %v1517, %v2216
    %v2289 = vadd.f32 %v1518, %v2217
    %v2290 = vadd.f32 %v1519, %v2218
    %v2291 = vadd.f32 %v1520, %v2219
    %v2292 = vadd.f32 %v1521, %v2220
    %v2293 = vadd.f32 %v1522, %v2221
    %v2294 = vadd.f32 %v1523, %v2222
    %v2295 = vpack.c.bf16 %v2280, %v2279
    %v2296 = vpack.c.bf16 %v2282, %v2281
    %v2297 = vpack.c.bf16 %v2284, %v2283
    %v2298 = vpack.c.bf16 %v2286, %v2285
    %s2299 = scalar_lea.vmem [#allocation4], 12
    %v2300 = vld [vmem:[%s2299] sm:$0xf]
    %2305 = vrot.lane.b32.xlu0 %v2295, 120
    %v2306 = vpop.permute.xlu0 %2305
    %2307 = vrot.lane.b32.xlu0 %v2296, 120
    %v2308 = vpop.permute.xlu0 %2307
    %2309 = vrot.lane.b32.xlu0 %v2297, 120
    %v2310 = vpop.permute.xlu0 %2309
    %2311 = vrot.lane.b32.xlu0 %v2298, 120
    %v2312 = vpop.permute.xlu0 %2311
    %2321 = vrot.lane.b32.xlu0 %v204, 64
    %v2322 = vpop.permute.xlu0 %2321
    %2323 = vrot.lane.b32.xlu0 %v208, 64
    %v2324 = vpop.permute.xlu0 %2323
    %2325 = vrot.lane.b32.xlu0 %v214, 64
    %v2326 = vpop.permute.xlu0 %2325
    %2327 = vrot.lane.b32.xlu0 %v218, 64
    %v2328 = vpop.permute.xlu0 %2327
    %2329 = vrot.lane.b32.xlu0 %v224, 64
    %v2330 = vpop.permute.xlu0 %2329
    %2331 = vrot.lane.b32.xlu0 %v228, 64
    %v2332 = vpop.permute.xlu0 %2331
    %2333 = vrot.lane.b32.xlu0 %v234, 64
    %v2334 = vpop.permute.xlu0 %2333
    %2335 = vrot.lane.b32.xlu0 %v238, 64
    %v2336 = vpop.permute.xlu0 %2335
    %v2346 = vsel %vm279, %v2306, 0
    %v2349 = vsel %vm279, %v2308, 0
    %v2352 = vsel %vm279, %v2310, 0
    %v2355 = vsel %vm279, %v2312, 0
    %v2358 = vsel %vm292, %v2300, 0
    %2360 = vmatprep.subr.bf16.mxu0 0
    %2361 = vmatpush1.bf16.msra.mxu0 0
    %2362 = vmatprep.subr.bf16.mxu0 0
    %2363 = vmatpush1.bf16.msra.mxu0 0
    %2364 = vmatprep.subr.bf16.mxu0 0
    %2365 = vmatpush1.bf16.msra.mxu0 0
    %2366 = vmatprep.subr.bf16.mxu0 0
    %2367 = vmatpush1.bf16.msra.mxu0 0
    %2368 = vmatprep.subr.bf16.mxu0 0
    %2369 = vmatpush1.bf16.msra.mxu0 0
    %2370 = vmatprep.subr.bf16.mxu0 0
    %2371 = vmatpush1.bf16.msra.mxu0 0
    %2372 = vmatprep.subr.bf16.mxu0 0
    %2373 = vmatpush1.bf16.msra.mxu0 0
    %2374 = vmatprep.subr.bf16.mxu0 0
    %2375 = vmatpush1.bf16.msra.mxu0 %v2358
    %2376 = vmatprep.subr.bf16.mxu0 0
    %2377 = vmatpush2.bf16.msra.mxu0 0
    %2378 = vmatprep.subr.bf16.mxu0 0
    %2379 = vmatpush2.bf16.msra.mxu0 0
    %2380 = vmatprep.subr.bf16.mxu0 0
    %2381 = vmatpush2.bf16.msra.mxu0 0
    %2382 = vmatprep.subr.bf16.mxu0 0
    %2383 = vmatpush2.bf16.msra.mxu0 0
    %2384 = vmatprep.subr.bf16.mxu0 0
    %2385 = vmatpush2.bf16.msra.mxu0 0
    %2386 = vmatprep.subr.bf16.mxu0 0
    %2387 = vmatpush2.bf16.msra.mxu0 0
    %2388 = vmatprep.subr.bf16.mxu0 0
    %2389 = vmatpush2.bf16.msra.mxu0 0
    %2390 = vmatprep.subr.bf16.mxu0 0
    %2391 = vmatpush2.bf16.msra.mxu0 0
    %2392 = vmatprep.mubr.bf16.mxu0 0
    %2393 = vmatmul.mubr.bf16.gmra.mxu0 %v2346
    %v2394 = vpop.f32.mrf.mxu0
    %v2395 = vadd.f32 %v2322, %v2394
    %v2396 = vpop.f32.mrf.mxu0
    %v2397 = vpop.f32.mrf.mxu0
    %v2398 = vadd.f32 %v2324, %v2397
    %v2399 = vpop.f32.mrf.mxu0
    %2400 = vmatprep.mubr.bf16.mxu0 0
    %2401 = vmatmul.mubr.bf16.gmra.mxu0 %v2349
    %v2402 = vpop.f32.mrf.mxu0
    %v2403 = vadd.f32 %v2326, %v2402
    %v2404 = vpop.f32.mrf.mxu0
    %v2405 = vpop.f32.mrf.mxu0
    %v2406 = vadd.f32 %v2328, %v2405
    %v2407 = vpop.f32.mrf.mxu0
    %2408 = vmatprep.mubr.bf16.mxu0 0
    %2409 = vmatmul.mubr.bf16.gmra.mxu0 %v2352
    %v2410 = vpop.f32.mrf.mxu0
    %v2411 = vadd.f32 %v2330, %v2410
    %v2412 = vpop.f32.mrf.mxu0
    %v2413 = vpop.f32.mrf.mxu0
    %v2414 = vadd.f32 %v2332, %v2413
    %v2415 = vpop.f32.mrf.mxu0
    %2416 = vmatprep.mubr.bf16.mxu0 0
    %2417 = vmatmul.mubr.bf16.gmra.mxu0 %v2355
    %v2418 = vpop.f32.mrf.mxu0
    %v2419 = vadd.f32 %v2334, %v2418
    %v2420 = vpop.f32.mrf.mxu0
    %v2421 = vpop.f32.mrf.mxu0
    %v2422 = vadd.f32 %v2336, %v2421
    %v2423 = vpop.f32.mrf.mxu0
    %2424 = vdwg.mxu0
    %vm2425 = vcmp.gt.f32.partialorder %v2395, 0.0
    %vm2426 = vcmp.gt.f32.partialorder %v2398, 0.0
    %vm2427 = vcmp.gt.f32.partialorder %v2403, 0.0
    %vm2428 = vcmp.gt.f32.partialorder %v2406, 0.0
    %vm2429 = vcmp.gt.f32.partialorder %v2411, 0.0
    %vm2430 = vcmp.gt.f32.partialorder %v2414, 0.0
    %vm2431 = vcmp.gt.f32.partialorder %v2419, 0.0
    %vm2432 = vcmp.gt.f32.partialorder %v2422, 0.0
    %v2433 = vmul.f32 %v2395, 0.01
    %v2434 = vmul.f32 %v2398, 0.01
    %v2435 = vmul.f32 %v2403, 0.01
    %v2436 = vmul.f32 %v2406, 0.01
    %v2437 = vmul.f32 %v2411, 0.01
    %v2438 = vmul.f32 %v2414, 0.01
    %v2439 = vmul.f32 %v2419, 0.01
    %v2440 = vmul.f32 %v2422, 0.01
    %v2441 = vsel %vm2425, %v2395, %v2433
    %v2442 = vsel %vm2426, %v2398, %v2434
    %v2443 = vsel %vm2427, %v2403, %v2435
    %v2444 = vsel %vm2428, %v2406, %v2436
    %v2445 = vsel %vm2429, %v2411, %v2437
    %v2446 = vsel %vm2430, %v2414, %v2438
    %v2447 = vsel %vm2431, %v2419, %v2439
    %v2448 = vsel %vm2432, %v2422, %v2440
    %v2449 = vpack.c.bf16 %v2442, %v2441
    %v2450 = vpack.c.bf16 %v2444, %v2443
    %v2451 = vpack.c.bf16 %v2446, %v2445
    %v2452 = vpack.c.bf16 %v2448, %v2447
    %s2453 = scalar_lea.vmem %s4, 192
    %v2454 = vld [vmem:[%s2453] sm:$0xf]
    %v2455 = vld [vmem:[%s2453 + $0x4] sm:$0xf]
    %v2456 = vld [vmem:[%s2453 + $0x8] sm:$0xf]
    %v2457 = vld [vmem:[%s2453 + $0xc] sm:$0xf]
    %v2458 = vld [vmem:[%s2453 + $0x10] sm:$0xf]
    %v2459 = vld [vmem:[%s2453 + $0x14] sm:$0xf]
    %v2460 = vld [vmem:[%s2453 + $0x18] sm:$0xf]
    %v2461 = vld [vmem:[%s2453 + $0x1c] sm:$0xf]
    %s2462 = scalar_lea.vmem [#allocation6], 6
    %v2463 = vld [vmem:[%s2462] sm:$0x1]
    %v2465 = vlaneseq
    %v2466 = vshrl.u32 %v2465, 7
    %v2467 = vsub.s32 0, %v2466
    %v2468 = vrot.slane %v2463, %v2467
    %v2478 = vunpack.c.l.b16 %v2454
    %v2479 = vunpack.c.l.b16 %v2455
    %v2480 = vunpack.c.l.b16 %v2456
    %v2481 = vunpack.c.l.b16 %v2457
    %v2482 = vunpack.c.l.b16 %v2458
    %v2483 = vunpack.c.l.b16 %v2459
    %v2484 = vunpack.c.l.b16 %v2460
    %v2485 = vunpack.c.l.b16 %v2461
    %v2486 = vpack.c.b16 %v2479, %v2478
    %v2487 = vpack.c.b16 %v2481, %v2480
    %v2488 = vpack.c.b16 %v2483, %v2482
    %v2489 = vpack.c.b16 %v2485, %v2484
    %v2495 = vsel %vm428, %v2449, 0
    %v2498 = vsel %vm428, %v2450, 0
    %v2501 = vsel %vm428, %v2451, 0
    %v2504 = vsel %vm428, %v2452, 0
    %2506 = vmatprep.subr.bf16.mxu0 0
    %2507 = vmatpush1.bf16.msra.mxu0 0
    %2508 = vmatprep.subr.bf16.mxu0 0
    %2509 = vmatpush1.bf16.msra.mxu0 0
    %2510 = vmatprep.subr.bf16.mxu0 0
    %2511 = vmatpush1.bf16.msra.mxu0 0
    %2512 = vmatprep.subr.bf16.mxu0 0
    %2513 = vmatpush1.bf16.msra.mxu0 0
    %2514 = vmatprep.subr.bf16.mxu0 0
    %2515 = vmatpush1.bf16.msra.mxu0 %v2489
    %2516 = vmatprep.subr.bf16.mxu0 0
    %2517 = vmatpush1.bf16.msra.mxu0 %v2488
    %2518 = vmatprep.subr.bf16.mxu0 0
    %2519 = vmatpush1.bf16.msra.mxu0 %v2487
    %2520 = vmatprep.subr.bf16.mxu0 0
    %2521 = vmatpush1.bf16.msra.mxu0 %v2486
    %2522 = vmatprep.subr.bf16.mxu0 0
    %2523 = vmatpush2.bf16.msra.mxu0 0
    %2524 = vmatprep.subr.bf16.mxu0 0
    %2525 = vmatpush2.bf16.msra.mxu0 0
    %2526 = vmatprep.subr.bf16.mxu0 0
    %2527 = vmatpush2.bf16.msra.mxu0 0
    %2528 = vmatprep.subr.bf16.mxu0 0
    %2529 = vmatpush2.bf16.msra.mxu0 0
    %2530 = vmatprep.subr.bf16.mxu0 0
    %2531 = vmatpush2.bf16.msra.mxu0 0
    %2532 = vmatprep.subr.bf16.mxu0 0
    %2533 = vmatpush2.bf16.msra.mxu0 0
    %2534 = vmatprep.subr.bf16.mxu0 0
    %2535 = vmatpush2.bf16.msra.mxu0 0
    %2536 = vmatprep.subr.bf16.mxu0 0
    %2537 = vmatpush2.bf16.msra.mxu0 0
    %2538 = vmatprep.mubr.bf16.mxu0 0
    %2539 = vmatmul.mubr.bf16.gmra.mxu0 %v2495
    %v2540 = vpop.f32.mrf.mxu0
    %v2541 = vadd.f32 %v2468, %v2540
    %v2542 = vpop.f32.mrf.mxu0
    %v2543 = vpop.f32.mrf.mxu0
    %v2544 = vadd.f32 %v2468, %v2543
    %v2545 = vpop.f32.mrf.mxu0
    %2546 = vmatprep.mubr.bf16.mxu0 0
    %2547 = vmatmul.mubr.bf16.gmra.mxu0 %v2498
    %v2548 = vpop.f32.mrf.mxu0
    %v2549 = vadd.f32 %v2468, %v2548
    %v2550 = vpop.f32.mrf.mxu0
    %v2551 = vpop.f32.mrf.mxu0
    %v2552 = vadd.f32 %v2468, %v2551
    %v2553 = vpop.f32.mrf.mxu0
    %2554 = vmatprep.mubr.bf16.mxu0 0
    %2555 = vmatmul.mubr.bf16.gmra.mxu0 %v2501
    %v2556 = vpop.f32.mrf.mxu0
    %v2557 = vadd.f32 %v2468, %v2556
    %v2558 = vpop.f32.mrf.mxu0
    %v2559 = vpop.f32.mrf.mxu0
    %v2560 = vadd.f32 %v2468, %v2559
    %v2561 = vpop.f32.mrf.mxu0
    %2562 = vmatprep.mubr.bf16.mxu0 0
    %2563 = vmatmul.mubr.bf16.gmra.mxu0 %v2504
    %v2564 = vpop.f32.mrf.mxu0
    %v2565 = vadd.f32 %v2468, %v2564
    %v2566 = vpop.f32.mrf.mxu0
    %v2567 = vpop.f32.mrf.mxu0
    %v2568 = vadd.f32 %v2468, %v2567
    %v2569 = vpop.f32.mrf.mxu0
    %2570 = vdwg.mxu0
    %vm2571 = vcmp.gt.f32.partialorder %v2541, 0.0
    %vm2572 = vcmp.gt.f32.partialorder %v2544, 0.0
    %vm2573 = vcmp.gt.f32.partialorder %v2549, 0.0
    %vm2574 = vcmp.gt.f32.partialorder %v2552, 0.0
    %vm2575 = vcmp.gt.f32.partialorder %v2557, 0.0
    %vm2576 = vcmp.gt.f32.partialorder %v2560, 0.0
    %vm2577 = vcmp.gt.f32.partialorder %v2565, 0.0
    %vm2578 = vcmp.gt.f32.partialorder %v2568, 0.0
    %v2579 = vmul.f32 %v2541, 0.01
    %v2580 = vmul.f32 %v2544, 0.01
    %v2581 = vmul.f32 %v2549, 0.01
    %v2582 = vmul.f32 %v2552, 0.01
    %v2583 = vmul.f32 %v2557, 0.01
    %v2584 = vmul.f32 %v2560, 0.01
    %v2585 = vmul.f32 %v2565, 0.01
    %v2586 = vmul.f32 %v2568, 0.01
    %v2587 = vsel %vm2571, %v2541, %v2579
    %v2588 = vsel %vm2572, %v2544, %v2580
    %v2589 = vsel %vm2573, %v2549, %v2581
    %v2590 = vsel %vm2574, %v2552, %v2582
    %v2591 = vsel %vm2575, %v2557, %v2583
    %v2592 = vsel %vm2576, %v2560, %v2584
    %v2593 = vsel %vm2577, %v2565, %v2585
    %v2594 = vsel %vm2578, %v2568, %v2586
    %v2595 = vpack.c.bf16 %v2588, %v2587
    %v2596 = vpack.c.bf16 %v2590, %v2589
    %v2597 = vpack.c.bf16 %v2592, %v2591
    %v2598 = vpack.c.bf16 %v2594, %v2593
    %s2599 = scalar_lea.vmem %s4, 224
    %v2600 = vld [vmem:[%s2599] sm:$0xf]
    %v2601 = vld [vmem:[%s2599 + $0x4] sm:$0xf]
    %v2602 = vld [vmem:[%s2599 + $0x8] sm:$0xf]
    %v2603 = vld [vmem:[%s2599 + $0xc] sm:$0xf]
    %v2604 = vld [vmem:[%s2599 + $0x10] sm:$0xf]
    %v2605 = vld [vmem:[%s2599 + $0x14] sm:$0xf]
    %v2606 = vld [vmem:[%s2599 + $0x18] sm:$0xf]
    %v2607 = vld [vmem:[%s2599 + $0x1c] sm:$0xf]
    %s2608 = scalar_lea.vmem [#allocation6], 7
    %v2609 = vld [vmem:[%s2608] sm:$0x1]
    %v2611 = vlaneseq
    %v2612 = vshrl.u32 %v2611, 7
    %v2613 = vsub.s32 0, %v2612
    %v2614 = vrot.slane %v2609, %v2613
    %v2624 = vunpack.c.l.b16 %v2600
    %v2625 = vunpack.c.l.b16 %v2601
    %v2626 = vunpack.c.l.b16 %v2602
    %v2627 = vunpack.c.l.b16 %v2603
    %v2628 = vunpack.c.l.b16 %v2604
    %v2629 = vunpack.c.l.b16 %v2605
    %v2630 = vunpack.c.l.b16 %v2606
    %v2631 = vunpack.c.l.b16 %v2607
    %v2632 = vpack.c.b16 %v2625, %v2624
    %v2633 = vpack.c.b16 %v2627, %v2626
    %v2634 = vpack.c.b16 %v2629, %v2628
    %v2635 = vpack.c.b16 %v2631, %v2630
    %v2641 = vsel %vm428, %v2595, 0
    %v2644 = vsel %vm428, %v2596, 0
    %v2647 = vsel %vm428, %v2597, 0
    %v2650 = vsel %vm428, %v2598, 0
    %2652 = vmatprep.subr.bf16.mxu0 0
    %2653 = vmatpush1.bf16.msra.mxu0 0
    %2654 = vmatprep.subr.bf16.mxu0 0
    %2655 = vmatpush1.bf16.msra.mxu0 0
    %2656 = vmatprep.subr.bf16.mxu0 0
    %2657 = vmatpush1.bf16.msra.mxu0 0
    %2658 = vmatprep.subr.bf16.mxu0 0
    %2659 = vmatpush1.bf16.msra.mxu0 0
    %2660 = vmatprep.subr.bf16.mxu0 0
    %2661 = vmatpush1.bf16.msra.mxu0 %v2635
    %2662 = vmatprep.subr.bf16.mxu0 0
    %2663 = vmatpush1.bf16.msra.mxu0 %v2634
    %2664 = vmatprep.subr.bf16.mxu0 0
    %2665 = vmatpush1.bf16.msra.mxu0 %v2633
    %2666 = vmatprep.subr.bf16.mxu0 0
    %2667 = vmatpush1.bf16.msra.mxu0 %v2632
    %2668 = vmatprep.subr.bf16.mxu0 0
    %2669 = vmatpush2.bf16.msra.mxu0 0
    %2670 = vmatprep.subr.bf16.mxu0 0
    %2671 = vmatpush2.bf16.msra.mxu0 0
    %2672 = vmatprep.subr.bf16.mxu0 0
    %2673 = vmatpush2.bf16.msra.mxu0 0
    %2674 = vmatprep.subr.bf16.mxu0 0
    %2675 = vmatpush2.bf16.msra.mxu0 0
    %2676 = vmatprep.subr.bf16.mxu0 0
    %2677 = vmatpush2.bf16.msra.mxu0 0
    %2678 = vmatprep.subr.bf16.mxu0 0
    %2679 = vmatpush2.bf16.msra.mxu0 0
    %2680 = vmatprep.subr.bf16.mxu0 0
    %2681 = vmatpush2.bf16.msra.mxu0 0
    %2682 = vmatprep.subr.bf16.mxu0 0
    %2683 = vmatpush2.bf16.msra.mxu0 0
    %2684 = vmatprep.mubr.bf16.mxu0 0
    %2685 = vmatmul.mubr.bf16.gmra.mxu0 %v2641
    %v2686 = vpop.f32.mrf.mxu0
    %v2687 = vadd.f32 %v2614, %v2686
    %v2688 = vpop.f32.mrf.mxu0
    %v2689 = vpop.f32.mrf.mxu0
    %v2690 = vadd.f32 %v2614, %v2689
    %v2691 = vpop.f32.mrf.mxu0
    %2692 = vmatprep.mubr.bf16.mxu0 0
    %2693 = vmatmul.mubr.bf16.gmra.mxu0 %v2644
    %v2694 = vpop.f32.mrf.mxu0
    %v2695 = vadd.f32 %v2614, %v2694
    %v2696 = vpop.f32.mrf.mxu0
    %v2697 = vpop.f32.mrf.mxu0
    %v2698 = vadd.f32 %v2614, %v2697
    %v2699 = vpop.f32.mrf.mxu0
    %2700 = vmatprep.mubr.bf16.mxu0 0
    %2701 = vmatmul.mubr.bf16.gmra.mxu0 %v2647
    %v2702 = vpop.f32.mrf.mxu0
    %v2703 = vadd.f32 %v2614, %v2702
    %v2704 = vpop.f32.mrf.mxu0
    %v2705 = vpop.f32.mrf.mxu0
    %v2706 = vadd.f32 %v2614, %v2705
    %v2707 = vpop.f32.mrf.mxu0
    %2708 = vmatprep.mubr.bf16.mxu0 0
    %2709 = vmatmul.mubr.bf16.gmra.mxu0 %v2650
    %v2710 = vpop.f32.mrf.mxu0
    %v2711 = vadd.f32 %v2614, %v2710
    %v2712 = vpop.f32.mrf.mxu0
    %v2713 = vpop.f32.mrf.mxu0
    %v2714 = vadd.f32 %v2614, %v2713
    %v2715 = vpop.f32.mrf.mxu0
    %2716 = vdwg.mxu0
    %vm2717 = vcmp.gt.f32.partialorder %v2687, 0.0
    %vm2718 = vcmp.gt.f32.partialorder %v2690, 0.0
    %vm2719 = vcmp.gt.f32.partialorder %v2695, 0.0
    %vm2720 = vcmp.gt.f32.partialorder %v2698, 0.0
    %vm2721 = vcmp.gt.f32.partialorder %v2703, 0.0
    %vm2722 = vcmp.gt.f32.partialorder %v2706, 0.0
    %vm2723 = vcmp.gt.f32.partialorder %v2711, 0.0
    %vm2724 = vcmp.gt.f32.partialorder %v2714, 0.0
    %v2725 = vmul.f32 %v2687, 0.01
    %v2726 = vmul.f32 %v2690, 0.01
    %v2727 = vmul.f32 %v2695, 0.01
    %v2728 = vmul.f32 %v2698, 0.01
    %v2729 = vmul.f32 %v2703, 0.01
    %v2730 = vmul.f32 %v2706, 0.01
    %v2731 = vmul.f32 %v2711, 0.01
    %v2732 = vmul.f32 %v2714, 0.01
    %v2733 = vsel %vm2717, %v2687, %v2725
    %v2734 = vsel %vm2718, %v2690, %v2726
    %v2735 = vsel %vm2719, %v2695, %v2727
    %v2736 = vsel %vm2720, %v2698, %v2728
    %v2737 = vsel %vm2721, %v2703, %v2729
    %v2738 = vsel %vm2722, %v2706, %v2730
    %v2739 = vsel %vm2723, %v2711, %v2731
    %v2740 = vsel %vm2724, %v2714, %v2732
    %v2741 = vpack.c.bf16 %v2734, %v2733
    %v2742 = vpack.c.bf16 %v2736, %v2735
    %v2743 = vpack.c.bf16 %v2738, %v2737
    %v2744 = vpack.c.bf16 %v2740, %v2739
    %s2745 = scalar_lea.vmem %s6, 96
    %v2746 = vld [vmem:[%s2745] sm:$0xf]
    %v2747 = vld [vmem:[%s2745 + $0x4] sm:$0xf]
    %v2748 = vld [vmem:[%s2745 + $0x8] sm:$0xf]
    %v2749 = vld [vmem:[%s2745 + $0xc] sm:$0xf]
    %v2750 = vld [vmem:[%s2745 + $0x10] sm:$0xf]
    %v2751 = vld [vmem:[%s2745 + $0x14] sm:$0xf]
    %v2752 = vld [vmem:[%s2745 + $0x18] sm:$0xf]
    %v2753 = vld [vmem:[%s2745 + $0x1c] sm:$0xf]
    %s2754 = scalar_lea.vmem [#allocation7], 3
    %v2755 = vld [vmem:[%s2754] sm:$0x1]
    %v2757 = vlaneseq
    %v2758 = vshrl.u32 %v2757, 7
    %v2759 = vsub.s32 0, %v2758
    %v2760 = vrot.slane %v2755, %v2759
    %v2770 = vunpack.c.l.b16 %v2746
    %v2771 = vunpack.c.l.b16 %v2747
    %v2772 = vunpack.c.l.b16 %v2748
    %v2773 = vunpack.c.l.b16 %v2749
    %v2774 = vunpack.c.l.b16 %v2750
    %v2775 = vunpack.c.l.b16 %v2751
    %v2776 = vunpack.c.l.b16 %v2752
    %v2777 = vunpack.c.l.b16 %v2753
    %v2778 = vpack.c.b16 %v2771, %v2770
    %v2779 = vpack.c.b16 %v2773, %v2772
    %v2780 = vpack.c.b16 %v2775, %v2774
    %v2781 = vpack.c.b16 %v2777, %v2776
    %v2787 = vsel %vm428, %v2741, 0
    %v2790 = vsel %vm428, %v2742, 0
    %v2793 = vsel %vm428, %v2743, 0
    %v2796 = vsel %vm428, %v2744, 0
    %2798 = vmatprep.subr.bf16.mxu0 0
    %2799 = vmatpush1.bf16.msra.mxu0 0
    %2800 = vmatprep.subr.bf16.mxu0 0
    %2801 = vmatpush1.bf16.msra.mxu0 0
    %2802 = vmatprep.subr.bf16.mxu0 0
    %2803 = vmatpush1.bf16.msra.mxu0 0
    %2804 = vmatprep.subr.bf16.mxu0 0
    %2805 = vmatpush1.bf16.msra.mxu0 0
    %2806 = vmatprep.subr.bf16.mxu0 0
    %2807 = vmatpush1.bf16.msra.mxu0 %v2781
    %2808 = vmatprep.subr.bf16.mxu0 0
    %2809 = vmatpush1.bf16.msra.mxu0 %v2780
    %2810 = vmatprep.subr.bf16.mxu0 0
    %2811 = vmatpush1.bf16.msra.mxu0 %v2779
    %2812 = vmatprep.subr.bf16.mxu0 0
    %2813 = vmatpush1.bf16.msra.mxu0 %v2778
    %2814 = vmatprep.subr.bf16.mxu0 0
    %2815 = vmatpush2.bf16.msra.mxu0 0
    %2816 = vmatprep.subr.bf16.mxu0 0
    %2817 = vmatpush2.bf16.msra.mxu0 0
    %2818 = vmatprep.subr.bf16.mxu0 0
    %2819 = vmatpush2.bf16.msra.mxu0 0
    %2820 = vmatprep.subr.bf16.mxu0 0
    %2821 = vmatpush2.bf16.msra.mxu0 0
    %2822 = vmatprep.subr.bf16.mxu0 0
    %2823 = vmatpush2.bf16.msra.mxu0 0
    %2824 = vmatprep.subr.bf16.mxu0 0
    %2825 = vmatpush2.bf16.msra.mxu0 0
    %2826 = vmatprep.subr.bf16.mxu0 0
    %2827 = vmatpush2.bf16.msra.mxu0 0
    %2828 = vmatprep.subr.bf16.mxu0 0
    %2829 = vmatpush2.bf16.msra.mxu0 0
    %2830 = vmatprep.mubr.bf16.mxu0 0
    %2831 = vmatmul.mubr.bf16.gmra.mxu0 %v2787
    %v2832 = vpop.f32.mrf.mxu0
    %v2833 = vadd.f32 %v2760, %v2832
    %v2834 = vpop.f32.mrf.mxu0
    %v2835 = vpop.f32.mrf.mxu0
    %v2836 = vadd.f32 %v2760, %v2835
    %v2837 = vpop.f32.mrf.mxu0
    %2838 = vmatprep.mubr.bf16.mxu0 0
    %2839 = vmatmul.mubr.bf16.gmra.mxu0 %v2790
    %v2840 = vpop.f32.mrf.mxu0
    %v2841 = vadd.f32 %v2760, %v2840
    %v2842 = vpop.f32.mrf.mxu0
    %v2843 = vpop.f32.mrf.mxu0
    %v2844 = vadd.f32 %v2760, %v2843
    %v2845 = vpop.f32.mrf.mxu0
    %2846 = vmatprep.mubr.bf16.mxu0 0
    %2847 = vmatmul.mubr.bf16.gmra.mxu0 %v2793
    %v2848 = vpop.f32.mrf.mxu0
    %v2849 = vadd.f32 %v2760, %v2848
    %v2850 = vpop.f32.mrf.mxu0
    %v2851 = vpop.f32.mrf.mxu0
    %v2852 = vadd.f32 %v2760, %v2851
    %v2853 = vpop.f32.mrf.mxu0
    %2854 = vmatprep.mubr.bf16.mxu0 0
    %2855 = vmatmul.mubr.bf16.gmra.mxu0 %v2796
    %v2856 = vpop.f32.mrf.mxu0
    %v2857 = vadd.f32 %v2760, %v2856
    %v2858 = vpop.f32.mrf.mxu0
    %v2859 = vpop.f32.mrf.mxu0
    %v2860 = vadd.f32 %v2760, %v2859
    %v2861 = vpop.f32.mrf.mxu0
    %2862 = vdwg.mxu0
    %v2863 = vtanh.pop %v2833
    %v2864 = vtanh.pop %v2836
    %v2865 = vtanh.pop %v2841
    %v2866 = vtanh.pop %v2844
    %v2867 = vtanh.pop %v2849
    %v2868 = vtanh.pop %v2852
    %v2869 = vtanh.pop %v2857
    %v2870 = vtanh.pop %v2860
    %v2871 = vmul.f32 %v2863, 1.442695
    %v2872 = vpow.pop %v2871
    %v2873 = vmul.f32 %v2864, 1.442695
    %v2874 = vpow.pop %v2873
    %v2875 = vmul.f32 %v2865, 1.442695
    %v2876 = vpow.pop %v2875
    %v2877 = vmul.f32 %v2866, 1.442695
    %v2878 = vpow.pop %v2877
    %v2879 = vmul.f32 %v2867, 1.442695
    %v2880 = vpow.pop %v2879
    %v2881 = vmul.f32 %v2868, 1.442695
    %v2882 = vpow.pop %v2881
    %v2883 = vmul.f32 %v2869, 1.442695
    %v2884 = vpow.pop %v2883
    %v2885 = vmul.f32 %v2870, 1.442695
    %v2886 = vpow.pop %v2885
    %v2887 = vmul.f32 %v1661, %v2872
    %v2888 = vmul.f32 %v1664, %v2874
    %v2889 = vmul.f32 %v1669, %v2876
    %v2890 = vmul.f32 %v1672, %v2878
    %v2891 = vmul.f32 %v1677, %v2880
    %v2892 = vmul.f32 %v1680, %v2882
    %v2893 = vmul.f32 %v1685, %v2884
    %v2894 = vmul.f32 %v1688, %v2886
    %2903 = vrot.lane.b32.xlu0 %v2833, 120
    %v2904 = vpop.permute.xlu0 %2903
    %2905 = vrot.lane.b32.xlu0 %v2836, 120
    %v2906 = vpop.permute.xlu0 %2905
    %2907 = vrot.lane.b32.xlu0 %v2841, 120
    %v2908 = vpop.permute.xlu0 %2907
    %2909 = vrot.lane.b32.xlu0 %v2844, 120
    %v2910 = vpop.permute.xlu0 %2909
    %2911 = vrot.lane.b32.xlu0 %v2849, 120
    %v2912 = vpop.permute.xlu0 %2911
    %2913 = vrot.lane.b32.xlu0 %v2852, 120
    %v2914 = vpop.permute.xlu0 %2913
    %2915 = vrot.lane.b32.xlu0 %v2857, 120
    %v2916 = vpop.permute.xlu0 %2915
    %2917 = vrot.lane.b32.xlu0 %v2860, 120
    %v2918 = vpop.permute.xlu0 %2917
    %v2927 = vadd.f32 %v2887, %v2904
    %v2928 = vadd.f32 %v2888, %v2906
    %v2929 = vadd.f32 %v2889, %v2908
    %v2930 = vadd.f32 %v2890, %v2910
    %v2931 = vadd.f32 %v2891, %v2912
    %v2932 = vadd.f32 %v2892, %v2914
    %v2933 = vadd.f32 %v2893, %v2916
    %v2934 = vadd.f32 %v2894, %v2918
    %v2935 = vadd.f32 %v2287, %v2863
    %v2936 = vadd.f32 %v2288, %v2864
    %v2937 = vadd.f32 %v2289, %v2865
    %v2938 = vadd.f32 %v2290, %v2866
    %v2939 = vadd.f32 %v2291, %v2867
    %v2940 = vadd.f32 %v2292, %v2868
    %v2941 = vadd.f32 %v2293, %v2869
    %v2942 = vadd.f32 %v2294, %v2870
    %2951 = vrot.lane.b32.xlu0 %v2279, 120
    %v2952 = vpop.permute.xlu0 %2951
    %2953 = vrot.lane.b32.xlu0 %v2280, 120
    %v2954 = vpop.permute.xlu0 %2953
    %2955 = vrot.lane.b32.xlu0 %v2281, 120
    %v2956 = vpop.permute.xlu0 %2955
    %2957 = vrot.lane.b32.xlu0 %v2282, 120
    %v2958 = vpop.permute.xlu0 %2957
    %2959 = vrot.lane.b32.xlu0 %v2283, 120
    %v2960 = vpop.permute.xlu0 %2959
    %2961 = vrot.lane.b32.xlu0 %v2284, 120
    %v2962 = vpop.permute.xlu0 %2961
    %2963 = vrot.lane.b32.xlu0 %v2285, 120
    %v2964 = vpop.permute.xlu0 %2963
    %2965 = vrot.lane.b32.xlu0 %v2286, 120
    %v2966 = vpop.permute.xlu0 %2965
    %2983 = vrot.lane.b32.xlu0 %v2927, 8
    %v2984 = vpop.permute.xlu0 %2983
    %2985 = vrot.lane.b32.xlu0 %v2928, 8
    %v2986 = vpop.permute.xlu0 %2985
    %2987 = vrot.lane.b32.xlu0 %v2929, 8
    %v2988 = vpop.permute.xlu0 %2987
    %2989 = vrot.lane.b32.xlu0 %v2930, 8
    %v2990 = vpop.permute.xlu0 %2989
    %2991 = vrot.lane.b32.xlu0 %v2931, 8
    %v2992 = vpop.permute.xlu0 %2991
    %2993 = vrot.lane.b32.xlu0 %v2932, 8
    %v2994 = vpop.permute.xlu0 %2993
    %2995 = vrot.lane.b32.xlu0 %v2933, 8
    %v2996 = vpop.permute.xlu0 %2995
    %2997 = vrot.lane.b32.xlu0 %v2934, 8
    %v2998 = vpop.permute.xlu0 %2997
    %v3007 = vsel %vm279, %v2952, %v2984
    %v3008 = vsel %vm279, %v2954, %v2986
    %v3009 = vsel %vm279, %v2956, %v2988
    %v3010 = vsel %vm279, %v2958, %v2990
    %v3011 = vsel %vm279, %v2960, %v2992
    %v3012 = vsel %vm279, %v2962, %v2994
    %v3013 = vsel %vm279, %v2964, %v2996
    %v3014 = vsel %vm279, %v2966, %v2998
    %v3015 = vpack.c.bf16 %v3008, %v3007
    %v3016 = vpack.c.bf16 %v3010, %v3009
    %v3017 = vpack.c.bf16 %v3012, %v3011
    %v3018 = vpack.c.bf16 %v3014, %v3013
    %s3019 = scalar_lea.vmem [#allocation9], 8
    %v3020 = vld [vmem:[%s3019] sm:$0xf]
    %v3021 = vld [vmem:[%s3019 + $0x4] sm:$0xf]
    %v3024 = vunpack.c.l.b16 %v3020
    %v3025 = vunpack.c.l.b16 %v3021
    %v3026 = vpack.c.b16 %v3025, %v3024
    %v3029 = vsel %vm1613, %v3015, 0
    %v3032 = vsel %vm1613, %v3016, 0
    %v3035 = vsel %vm1613, %v3017, 0
    %v3038 = vsel %vm1613, %v3018, 0
    %3040 = vmatprep.subr.bf16.mxu0 0
    %3041 = vmatpush1.bf16.msra.mxu0 0
    %3042 = vmatprep.subr.bf16.mxu0 0
    %3043 = vmatpush1.bf16.msra.mxu0 0
    %3044 = vmatprep.subr.bf16.mxu0 0
    %3045 = vmatpush1.bf16.msra.mxu0 0
    %3046 = vmatprep.subr.bf16.mxu0 0
    %3047 = vmatpush1.bf16.msra.mxu0 0
    %3048 = vmatprep.subr.bf16.mxu0 0
    %3049 = vmatpush1.bf16.msra.mxu0 0
    %3050 = vmatprep.subr.bf16.mxu0 0
    %3051 = vmatpush1.bf16.msra.mxu0 0
    %3052 = vmatprep.subr.bf16.mxu0 0
    %3053 = vmatpush1.bf16.msra.mxu0 0
    %3054 = vmatprep.subr.bf16.mxu0 0
    %3055 = vmatpush1.bf16.msra.mxu0 %v3026
    %3056 = vmatprep.subr.bf16.mxu0 0
    %3057 = vmatpush2.bf16.msra.mxu0 0
    %3058 = vmatprep.subr.bf16.mxu0 0
    %3059 = vmatpush2.bf16.msra.mxu0 0
    %3060 = vmatprep.subr.bf16.mxu0 0
    %3061 = vmatpush2.bf16.msra.mxu0 0
    %3062 = vmatprep.subr.bf16.mxu0 0
    %3063 = vmatpush2.bf16.msra.mxu0 0
    %3064 = vmatprep.subr.bf16.mxu0 0
    %3065 = vmatpush2.bf16.msra.mxu0 0
    %3066 = vmatprep.subr.bf16.mxu0 0
    %3067 = vmatpush2.bf16.msra.mxu0 0
    %3068 = vmatprep.subr.bf16.mxu0 0
    %3069 = vmatpush2.bf16.msra.mxu0 0
    %3070 = vmatprep.subr.bf16.mxu0 0
    %3071 = vmatpush2.bf16.msra.mxu0 0
    %3072 = vmatprep.mubr.bf16.mxu0 0
    %3073 = vmatmul.mubr.bf16.gmra.mxu0 %v3029
    %v3074 = vpop.f32.mrf.mxu0
    %v3075 = vadd.f32 0.0, %v3074
    %v3076 = vpop.f32.mrf.mxu0
    %v3077 = vpop.f32.mrf.mxu0
    %v3078 = vadd.f32 0.0, %v3077
    %v3079 = vpop.f32.mrf.mxu0
    %3080 = vmatprep.mubr.bf16.mxu0 0
    %3081 = vmatmul.mubr.bf16.gmra.mxu0 %v3032
    %v3082 = vpop.f32.mrf.mxu0
    %v3083 = vadd.f32 0.0, %v3082
    %v3084 = vpop.f32.mrf.mxu0
    %v3085 = vpop.f32.mrf.mxu0
    %v3086 = vadd.f32 0.0, %v3085
    %v3087 = vpop.f32.mrf.mxu0
    %3088 = vmatprep.mubr.bf16.mxu0 0
    %3089 = vmatmul.mubr.bf16.gmra.mxu0 %v3035
    %v3090 = vpop.f32.mrf.mxu0
    %v3091 = vadd.f32 0.0, %v3090
    %v3092 = vpop.f32.mrf.mxu0
    %v3093 = vpop.f32.mrf.mxu0
    %v3094 = vadd.f32 0.0, %v3093
    %v3095 = vpop.f32.mrf.mxu0
    %3096 = vmatprep.mubr.bf16.mxu0 0
    %3097 = vmatmul.mubr.bf16.gmra.mxu0 %v3038
    %v3098 = vpop.f32.mrf.mxu0
    %v3099 = vadd.f32 0.0, %v3098
    %v3100 = vpop.f32.mrf.mxu0
    %v3101 = vpop.f32.mrf.mxu0
    %v3102 = vadd.f32 0.0, %v3101
    %v3103 = vpop.f32.mrf.mxu0
    %3104 = vdwg.mxu0
    %3105 = vst.msk [vmem:[%s10] sm:$0xff] %vm1613, %v3075
    %3106 = vst.msk [vmem:[%s10 + $0x8] sm:$0xff] %vm1613, %v3078
    %3107 = vst.msk [vmem:[%s10 + $0x10] sm:$0xff] %vm1613, %v3083
    %3108 = vst.msk [vmem:[%s10 + $0x18] sm:$0xff] %vm1613, %v3086
    %3109 = vst.msk [vmem:[%s10 + $0x20] sm:$0xff] %vm1613, %v3091
    %3110 = vst.msk [vmem:[%s10 + $0x28] sm:$0xff] %vm1613, %v3094
    %3111 = vst.msk [vmem:[%s10 + $0x30] sm:$0xff] %vm1613, %v3099
    %3112 = vst.msk [vmem:[%s10 + $0x38] sm:$0xff] %vm1613, %v3102
    %v3113 = vsel %vm279, %v2935, 0.0
    %3114 = vadd.xlane.f32.xlu0 %v3113
    %v3115 = vpop.xlane.xlu0 %3114
    %v3116 = vsel %vm279, %v2936, 0.0
    %3117 = vadd.xlane.f32.xlu0 %v3116
    %v3118 = vpop.xlane.xlu0 %3117
    %v3119 = vsel %vm279, %v2937, 0.0
    %3120 = vadd.xlane.f32.xlu0 %v3119
    %v3121 = vpop.xlane.xlu0 %3120
    %v3122 = vsel %vm279, %v2938, 0.0
    %3123 = vadd.xlane.f32.xlu0 %v3122
    %v3124 = vpop.xlane.xlu0 %3123
    %v3125 = vsel %vm279, %v2939, 0.0
    %3126 = vadd.xlane.f32.xlu0 %v3125
    %v3127 = vpop.xlane.xlu0 %3126
    %v3128 = vsel %vm279, %v2940, 0.0
    %3129 = vadd.xlane.f32.xlu0 %v3128
    %v3130 = vpop.xlane.xlu0 %3129
    %v3131 = vsel %vm279, %v2941, 0.0
    %3132 = vadd.xlane.f32.xlu0 %v3131
    %v3133 = vpop.xlane.xlu0 %3132
    %v3134 = vsel %vm279, %v2942, 0.0
    %3135 = vadd.xlane.f32.xlu0 %v3134
    %v3136 = vpop.xlane.xlu0 %3135
    %vm3137 = vcmask 7168
    %3138 = vst.msk [vmem:[%s11] sm:$0xff] %vm3137, %v3115
    %3139 = vst.msk [vmem:[%s11 + $0x8] sm:$0xff] %vm3137, %v3118
    %3140 = vst.msk [vmem:[%s11 + $0x10] sm:$0xff] %vm3137, %v3121
    %3141 = vst.msk [vmem:[%s11 + $0x18] sm:$0xff] %vm3137, %v3124
    %3142 = vst.msk [vmem:[%s11 + $0x20] sm:$0xff] %vm3137, %v3127
    %3143 = vst.msk [vmem:[%s11 + $0x28] sm:$0xff] %vm3137, %v3130
    %3144 = vst.msk [vmem:[%s11 + $0x30] sm:$0xff] %vm3137, %v3133
    %3145 = vst.msk [vmem:[%s11 + $0x38] sm:$0xff] %vm3137, %v3136
    // Predicated region
    $region62: #{tpu_custom_call.1} parent=1 // pred_check
      _
    $region63: #{tpu_custom_call.1} parent=1 // pred_check_branch
      %3147 = sbr.rel (0) target = $region65
    $region64: #{tpu_custom_call.1} parent=1 // pred_region
      _
    $region65: #{tpu_custom_call.1} parent=1 // pred_fallthru
      _
    // Predicated region
    $region66: #{tpu_custom_call.1} parent=1 // pred_check
      _
    $region67: #{tpu_custom_call.1} parent=1 // pred_check_branch
      %3149 = sbr.rel (0) target = $region69
    $region68: #{tpu_custom_call.1} parent=1 // pred_region
      _
    $region69: #{tpu_custom_call.1} parent=1 // pred_fallthru
      _
    // Predicated region
    $region70: #{tpu_custom_call.1} parent=1 // pred_check
      _
    $region71: #{tpu_custom_call.1} parent=1 // pred_check_branch
      %3151 = sbr.rel (0) target = $region73
    $region72: #{tpu_custom_call.1} parent=1 // pred_region
      _
    $region73: #{tpu_custom_call.1} parent=1 // pred_fallthru
      _
    // Predicated region
    $region74: #{tpu_custom_call.1} parent=1 // pred_check
      _
    $region75: #{tpu_custom_call.1} parent=1 // pred_check_branch
      %3153 = sbr.rel (0) target = $region77
    $region76: #{tpu_custom_call.1} parent=1 // pred_region
      _
    $region77: #{tpu_custom_call.1} parent=1 // pred_fallthru
      _
    %3154 = vsyncpa [#allocation3], 1
    %3155 = vsyncpa [#allocation5], 1
    %3156 = vsyncpa [#allocation8], 1

</llo_original>
